<compile_context>
chip_gen: v7x
topology: tpu7x:2x2x1
jax: 0.10.0
libtpu: 0.0.40
codegen_flags: <defaults>
</compile_context>

<pallas_src>
import functools

import jax
import jax.numpy as jnp
from jax.experimental import pallas as pl
from jax.experimental.pallas import tpu as pltpu

EPS = 1e-5                     # torch nn.LayerNorm default eps
_SQRT_HALF = 0.7071067811865476
_VMEM_LIMIT = 64 * 1024 * 1024


# ----------------------------- small helpers --------------------------------
def _round_up(n, m):
    return ((n + m - 1) // m) * m


def _pick_tile(n, target):
    """Largest t <= target with n % t == 0 and (t % 8 == 0 or t == n)."""
    t = min(n, target)
    while t > 1:
        if n % t == 0 and (t % 8 == 0 or t == n):
            return t
        t -= 1
    return n


def _erf(x):
    # Abramowitz & Stegun 7.1.26 polynomial approximation, |err| < 1.5e-7.
    a1, a2, a3, a4, a5 = 0.254829592, -0.284496736, 1.421413741, -1.453152027, 1.061405429
    p = 0.3275911
    ax = jnp.abs(x)
    t = 1.0 / (1.0 + p * ax)
    poly = ((((a5 * t + a4) * t + a3) * t + a2) * t + a1) * t
    y = 1.0 - poly * jnp.exp(-ax * ax)
    return jnp.where(x >= 0, y, -y)


def _gelu(x):
    return 0.5 * x * (1.0 + _erf(x * _SQRT_HALF))


def _ln(x, gamma, beta, d_real):
    """LayerNorm over the last (zero-padded) axis, statistics over d_real cols.

    Padded columns of x are exactly 0, so sum/sum-of-squares over the padded
    width equal the real sums; with padded gamma/beta == 0 the padded output
    columns stay exactly 0.
    """
    inv_d = 1.0 / float(d_real)
    mu = jnp.sum(x, axis=-1, keepdims=True) * inv_d
    ex2 = jnp.sum(x * x, axis=-1, keepdims=True) * inv_d
    var = jnp.maximum(ex2 - mu * mu, 0.0)
    return (x - mu) * jax.lax.rsqrt(var + EPS) * gamma + beta


def _bmm(a, b):
    return jnp.dot(a.astype(jnp.bfloat16), b.astype(jnp.bfloat16),
                   preferred_element_type=jnp.float32)


# ------------------------------- kernels -------------------------------------
def _patch_embed_kernel(x_ref, w_ref, b_ref, g_ref, beta_ref, pos_ref, o_ref, *, d_real):
    # x_ref: (tile_n, patch_dim)   w_ref: (patch_dim, dim_p)
    x = x_ref[...].astype(jnp.float32)
    y = _bmm(x, w_ref[...]) + b_ref[...]
    y = _ln(y, g_ref[...], beta_ref[...], d_real)
    o_ref[...] = (y + pos_ref[...].astype(jnp.float32)).astype(o_ref.dtype)


def _transformer_block_kernel(x_ref, ag_ref, ab_ref, wqkv_ref, wo_ref, bo_ref,
                              fg_ref, fb_ref, w1_ref, b1_ref, w2_ref, b2_ref,
                              o_ref, *, heads, dim_head, d_real, scale):
    bf16 = jnp.bfloat16
    xb = x_ref[...].astype(jnp.float32)                        # (N, dim_p)
    n_seq = xb.shape[0]
    inner = heads * dim_head

    # ---- Attention (pre-LN, qkv proj, per-head softmax attn, out proj) ----
    xn = _ln(xb, ag_ref[...], ab_ref[...], d_real)
    qkv = _bmm(xn, wqkv_ref[...])                              # (N, 3*inner) f32
    q = qkv[:, :inner]
    k = qkv[:, inner:2 * inner]
    v = qkv[:, 2 * inner:3 * inner]
    wo = wo_ref[...].astype(bf16)                              # (inner, dim_p)

    acc = jnp.zeros((n_seq, xb.shape[1]), jnp.float32)
    for h in range(heads):                                     # static unroll
        sl = slice(h * dim_head, (h + 1) * dim_head)
        qh = q[:, sl].astype(bf16)
        kh = k[:, sl].astype(bf16)
        vh = v[:, sl].astype(bf16)
        s = jax.lax.dot_general(qh, kh, (((1,), (1,)), ((), ())),
                                preferred_element_type=jnp.float32) * scale
        s = s - jnp.max(s, axis=-1, keepdims=True)
        e = jnp.exp(s)
        p = e / jnp.sum(e, axis=-1, keepdims=True)
        oh = jnp.dot(p.astype(bf16), vh, preferred_element_type=jnp.float32)
        # Fold the per-head output projection in (block matmul == concat+proj).
        acc = acc + jnp.dot(oh.astype(bf16), wo[sl, :],
                            preferred_element_type=jnp.float32)
    x1 = acc + bo_ref[...] + xb                                # residual 1

    # ---- FeedForward (pre-LN, Linear, GELU, Linear) ----
    xn2 = _ln(x1, fg_ref[...], fb_ref[...], d_real)
    hid = _bmm(xn2, w1_ref[...]) + b1_ref[...]
    hid = _gelu(hid)
    y = _bmm(hid, w2_ref[...]) + b2_ref[...]
    o_ref[...] = (y + x1).astype(o_ref.dtype)                  # residual 2


def _rebuild_kernel(x_ref, tg_ref, tb_ref, rg_ref, rb_ref, wd_ref, bd_ref, o_ref, *, d_real):
    xb = x_ref[...].astype(jnp.float32)
    xn = _ln(xb, tg_ref[...], tb_ref[...], d_real)             # Transformer final norm
    xn = _ln(xn, rg_ref[...], rb_ref[...], d_real)             # RebuildImage norm
    y = _bmm(xn, wd_ref[...]) + bd_ref[...]                    # deconv as matmul
    o_ref[...] = y.astype(o_ref.dtype)


# ------------------------------ forward pass ---------------------------------
def transformer_layer_forward(img, params, *, patch_size, heads=8, dim_head=64,
                              residual=True):
    f32 = jnp.float32
    B, C, H, W = img.shape
    P = patch_size
    Hp, Wp = H // P, W // P
    N = Hp * Wp
    cpp = C * P * P
    embed = params["embed_w"].shape[0]
    inner = heads * dim_head
    mlp = params["layers"][0]["w1"].shape[1]

    dim_p = _round_up(embed, 128)
    mlp_p = _round_up(mlp, 128)
    cpp_p = _round_up(cpp, 128)

    def pad2(a, r, c):
        a = a.astype(f32)
        return jnp.pad(a, ((0, r - a.shape[0]), (0, c - a.shape[1])))

    def padrow(a, c):
        a = a.astype(f32).reshape(1, -1)
        return jnp.pad(a, ((0, 0), (0, c - a.shape[1])))

    # ---------------- Patch embed (Conv2d k=stride=P as matmul) -------------
    patches = img.astype(f32).reshape(B, C, Hp, P, Wp, P)
    patches = patches.transpose(0, 2, 4, 1, 3, 5).reshape(B, N, cpp)

    w_embed = pad2(params["embed_w"].reshape(embed, cpp).T, cpp, dim_p)
    b_embed = padrow(params["embed_b"], dim_p)
    g_embed = padrow(params["embed_g"], dim_p)
    be_embed = padrow(params["embed_beta"], dim_p)
    pos = jnp.pad(params["pos"][0, :N].astype(f32),
                  ((0, 0), (0, dim_p - embed)))                # (N, dim_p)

    tile_n = _pick_tile(N, 256)
    full2 = lambda b, j: (0, 0)
    cost = pl.CostEstimate(
        flops=2 * B * N * cpp * dim_p,
        transcendentals=0,
        bytes_accessed=4 * (B * N * cpp + cpp * dim_p + 2 * B * N * dim_p))
    x = pl.pallas_call(
        functools.partial(_patch_embed_kernel, d_real=embed),
        out_shape=jax.ShapeDtypeStruct((B, N, dim_p), f32),
        grid_spec=pltpu.PrefetchScalarGridSpec(
            num_scalar_prefetch=0,
            grid=(B, N // tile_n),
            in_specs=[
                pl.BlockSpec((None, tile_n, cpp), lambda b, j: (b, j, 0)),
                pl.BlockSpec((cpp, dim_p), full2),
                pl.BlockSpec((1, dim_p), full2),
                pl.BlockSpec((1, dim_p), full2),
                pl.BlockSpec((1, dim_p), full2),
                pl.BlockSpec((tile_n, dim_p), lambda b, j: (j, 0)),
            ],
            out_specs=pl.BlockSpec((None, tile_n, dim_p), lambda b, j: (b, j, 0)),
        ),
        compiler_params=pltpu.CompilerParams(
            dimension_semantics=("parallel", "parallel"),
            vmem_limit_bytes=_VMEM_LIMIT,
            allow_input_fusion=[True, False, False, False, False, False],
        ),
        cost_estimate=cost,
    )(patches, w_embed, b_embed, g_embed, be_embed, pos)

    # ---------------- Transformer blocks (one fused kernel / layer) ---------
    xmap = lambda b: (b, 0, 0)
    full1 = lambda b: (0, 0)
    for layer in params["layers"]:
        wqkv_p = pad2(layer["wqkv"], dim_p, 3 * inner)
        wo_p = pad2(layer["wo"], inner, dim_p)
        bo_p = padrow(layer["bo"], dim_p)
        ag_p = padrow(layer["attn_g"], dim_p)
        ab_p = padrow(layer["attn_b"], dim_p)
        fg_p = padrow(layer["ff_g"], dim_p)
        fb_p = padrow(layer["ff_b"], dim_p)
        w1_p = pad2(layer["w1"], dim_p, mlp_p)
        b1_p = padrow(layer["b1"], mlp_p)
        w2_p = pad2(layer["w2"], mlp_p, dim_p)
        b2_p = padrow(layer["b2"], dim_p)

        cost = pl.CostEstimate(
            flops=(2 * B * N * dim_p * 4 * inner
                   + 4 * B * heads * N * N * dim_head
                   + 4 * B * N * dim_p * mlp_p),
            transcendentals=B * heads * N * N + B * N * mlp_p,
            bytes_accessed=4 * (2 * B * N * dim_p + 4 * dim_p * inner
                                + 2 * dim_p * mlp_p))
        x = pl.pallas_call(
            functools.partial(_transformer_block_kernel, heads=heads,
                              dim_head=dim_head, d_real=embed,
                              scale=float(dim_head) ** -0.5),
            out_shape=jax.ShapeDtypeStruct((B, N, dim_p), f32),
            grid_spec=pltpu.PrefetchScalarGridSpec(
                num_scalar_prefetch=0,
                grid=(B,),
                in_specs=[
                    pl.BlockSpec((None, N, dim_p), xmap),
                    pl.BlockSpec((1, dim_p), full1),
                    pl.BlockSpec((1, dim_p), full1),
                    pl.BlockSpec((dim_p, 3 * inner), full1),
                    pl.BlockSpec((inner, dim_p), full1),
                    pl.BlockSpec((1, dim_p), full1),
                    pl.BlockSpec((1, dim_p), full1),
                    pl.BlockSpec((1, dim_p), full1),
                    pl.BlockSpec((dim_p, mlp_p), full1),
                    pl.BlockSpec((1, mlp_p), full1),
                    pl.BlockSpec((mlp_p, dim_p), full1),
                    pl.BlockSpec((1, dim_p), full1),
                ],
                out_specs=pl.BlockSpec((None, N, dim_p), xmap),
            ),
            compiler_params=pltpu.CompilerParams(
                dimension_semantics=("parallel",),
                vmem_limit_bytes=_VMEM_LIMIT),
            cost_estimate=cost,
        )(x, ag_p, ab_p, wqkv_p, wo_p, bo_p, fg_p, fb_p, w1_p, b1_p, w2_p, b2_p)

    # --------- final LN + rebuild LN + ConvTranspose2d (as matmul) ----------
    rows = B * N
    tile_r = _pick_tile(rows, 512)
    xr = x.reshape(rows, dim_p)
    tg = padrow(params["final_g"], dim_p)
    tb = padrow(params["final_b"], dim_p)
    rg = padrow(params["reb_g"], dim_p)
    rb = padrow(params["reb_b"], dim_p)
    wd = pad2(params["reb_w"].reshape(embed, cpp), dim_p, cpp_p)
    bd = padrow(jnp.repeat(params["reb_bias"].astype(f32), P * P), cpp_p)

    rmap = lambda i: (i, 0)
    rfull = lambda i: (0, 0)
    cost = pl.CostEstimate(
        flops=2 * rows * dim_p * cpp_p,
        transcendentals=0,
        bytes_accessed=4 * (rows * dim_p + dim_p * cpp_p + rows * cpp_p))
    y = pl.pallas_call(
        functools.partial(_rebuild_kernel, d_real=embed),
        out_shape=jax.ShapeDtypeStruct((rows, cpp_p), f32),
        grid_spec=pltpu.PrefetchScalarGridSpec(
            num_scalar_prefetch=0,
            grid=(rows // tile_r,),
            in_specs=[
                pl.BlockSpec((tile_r, dim_p), rmap),
                pl.BlockSpec((1, dim_p), rfull),
                pl.BlockSpec((1, dim_p), rfull),
                pl.BlockSpec((1, dim_p), rfull),
                pl.BlockSpec((1, dim_p), rfull),
                pl.BlockSpec((dim_p, cpp_p), rfull),
                pl.BlockSpec((1, cpp_p), rfull),
            ],
            out_specs=pl.BlockSpec((tile_r, cpp_p), rmap),
        ),
        compiler_params=pltpu.CompilerParams(
            dimension_semantics=("parallel",),
            vmem_limit_bytes=_VMEM_LIMIT),
        cost_estimate=cost,
    )(xr, tg, tb, rg, rb, wd, bd)

    # Un-patchify: n = h*Wp + w; rebuild uses 'b (h w) c -> b w h c' (h/w swap),
    # so patch (h, w) lands at output spatial block (w*P + p1, h*P + p2).
    y = y[:, :cpp].reshape(B, Hp, Wp, C, P, P)
    y = y.transpose(0, 3, 2, 4, 1, 5).reshape(B, C, Wp * P, Hp * P)
    if residual:
        y = y + img
    return y


# ------------------------------ pure-JAX reference ---------------------------
def reference_forward(img, params, *, patch_size, heads=8, dim_head=64):
    f32 = jnp.float32
    B, C, H, W = img.shape
    P = patch_size
    Hp, Wp = H // P, W // P
    N = Hp * Wp
    cpp = C * P * P
    embed = params["embed_w"].shape[0]
    inner = heads * dim_head
    scale = float(dim_head) ** -0.5

    def ln(x, g, b):
        mu = jnp.mean(x, axis=-1, keepdims=True)
        var = jnp.mean((x - mu) ** 2, axis=-1, keepdims=True)
        return (x - mu) * jax.lax.rsqrt(var + EPS) * g + b

    patches = img.astype(f32).reshape(B, C, Hp, P, Wp, P)
    patches = patches.transpose(0, 2, 4, 1, 3, 5).reshape(B, N, cpp)
    x = _bmm(patches, params["embed_w"].reshape(embed, cpp).T) + params["embed_b"]
    x = ln(x, params["embed_g"], params["embed_beta"])
    x = x + params["pos"][:, :N]

    for layer in params["layers"]:
        xn = ln(x, layer["attn_g"], layer["attn_b"])
        qkv = _bmm(xn, layer["wqkv"])
        q, k, v = qkv[..., :inner], qkv[..., inner:2 * inner], qkv[..., 2 * inner:]
        q = q.reshape(B, N, heads, dim_head)
        k = k.reshape(B, N, heads, dim_head)
        v = v.reshape(B, N, heads, dim_head)
        s = jnp.einsum("bnhd,bmhd->bhnm", q.astype(jnp.bfloat16),
                       k.astype(jnp.bfloat16),
                       preferred_element_type=f32) * scale
        p = jax.nn.softmax(s, axis=-1)
        o = jnp.einsum("bhnm,bmhd->bnhd", p.astype(jnp.bfloat16),
                       v.astype(jnp.bfloat16),
                       preferred_element_type=f32).reshape(B, N, inner)
        x = _bmm(o, layer["wo"]) + layer["bo"] + x

        xn = ln(x, layer["ff_g"], layer["ff_b"])
        h = _gelu(_bmm(xn, layer["w1"]) + layer["b1"])
        x = _bmm(h, layer["w2"]) + layer["b2"] + x

    x = ln(x, params["final_g"], params["final_b"])
    x = ln(x, params["reb_g"], params["reb_b"])
    y = _bmm(x, params["reb_w"].reshape(embed, cpp)) + jnp.repeat(params["reb_bias"], P * P)
    y = y.reshape(B, Hp, Wp, C, P, P).transpose(0, 3, 2, 4, 1, 5)
    y = y.reshape(B, C, Wp * P, Hp * P)
    return y + img


# ----------------------------------- main ------------------------------------
if __name__ == "__main__":
    B, C, H, W = 2, 4, 16, 16
    patch_size = 4
    embed_dim = 96
    depth = 2
    heads, dim_head = 8, 64
    mlp_dim = embed_dim * 4
    Hp = H // patch_size
    N = Hp * Hp
    cpp = C * patch_size * patch_size
    inner = heads * dim_head

    key = jax.random.PRNGKey(0)
    keys = iter(jax.random.split(key, 64))

    def nrm(shape, s=1.0):
        return s * jax.random.normal(next(keys), shape, jnp.float32)

    params = {
        "embed_w": nrm((embed_dim, C, patch_size, patch_size), 1.0 / (cpp ** 0.5)),
        "embed_b": nrm((embed_dim,), 0.02),
        "embed_g": 1.0 + nrm((embed_dim,), 0.02),
        "embed_beta": nrm((embed_dim,), 0.02),
        "pos": nrm((1, N, embed_dim), 0.02),
        "layers": [],
        "final_g": 1.0 + nrm((embed_dim,), 0.02),
        "final_b": nrm((embed_dim,), 0.02),
        "reb_g": 1.0 + nrm((embed_dim,), 0.02),
        "reb_b": nrm((embed_dim,), 0.02),
        "reb_w": nrm((embed_dim, C, patch_size, patch_size), 1.0 / (embed_dim ** 0.5)),
        "reb_bias": nrm((C,), 0.02),
    }
    for _ in range(depth):
        params["layers"].append({
            "attn_g": 1.0 + nrm((embed_dim,), 0.02),
            "attn_b": nrm((embed_dim,), 0.02),
            "wqkv": nrm((embed_dim, 3 * inner), 1.0 / (embed_dim ** 0.5)),
            "wo": nrm((inner, embed_dim), 1.0 / (inner ** 0.5)),
            "bo": nrm((embed_dim,), 0.02),
            "ff_g": 1.0 + nrm((embed_dim,), 0.02),
            "ff_b": nrm((embed_dim,), 0.02),
            "w1": nrm((embed_dim, mlp_dim), 1.0 / (embed_dim ** 0.5)),
            "b1": nrm((mlp_dim,), 0.02),
            "w2": nrm((mlp_dim, embed_dim), 1.0 / (mlp_dim ** 0.5)),
            "b2": nrm((embed_dim,), 0.02),
        })

    img = nrm((B, C, H, W))

    fwd = jax.jit(functools.partial(transformer_layer_forward,
                                    patch_size=patch_size, heads=heads,
                                    dim_head=dim_head))
    ref_fn = jax.jit(functools.partial(reference_forward,
                                       patch_size=patch_size, heads=heads,
                                       dim_head=dim_head))

    out = jax.block_until_ready(fwd(img, params))
    ref = jax.block_until_ready(ref_fn(img, params))

    assert out.shape == (B, C, H, W)
    assert jnp.allclose(out, ref, atol=3e-2, rtol=3e-2), "mismatch vs reference"

    print("KERNEL_OK")
</pallas_src>

<mosaic_0001>
module attributes {stable_mosaic.version = 11 : i64} {
  func.func @_patch_embed_kernel(%arg0: i32, %arg1: i32, %arg2: memref<1x16x64xf32, #tpu.memory_space<vmem>>, %arg3: memref<64x128xf32, #tpu.memory_space<vmem>>, %arg4: memref<1x128xf32, #tpu.memory_space<vmem>>, %arg5: memref<1x128xf32, #tpu.memory_space<vmem>>, %arg6: memref<1x128xf32, #tpu.memory_space<vmem>>, %arg7: memref<16x128xf32, #tpu.memory_space<vmem>>, %arg8: memref<1x16x128xf32, #tpu.memory_space<vmem>>) attributes {dimension_semantics = [#tpu.dimension_semantics<parallel>, #tpu.dimension_semantics<parallel>], iteration_bounds = array<i64: 2, 1>, scalar_prefetch = 0 : i64, scratch_operands = 0 : i64, tpu.core_type = #tpu.core_type<tc>, window_params = [{transform_indices = @transform_0, window_bounds = array<i64: 1, 16, 64>}, {pipeline_mode = #tpu.pipeline_mode<synchronous>, transform_indices = @transform_1, window_bounds = array<i64: 64, 128>}, {pipeline_mode = #tpu.pipeline_mode<synchronous>, transform_indices = @transform_2, window_bounds = array<i64: 1, 128>}, {pipeline_mode = #tpu.pipeline_mode<synchronous>, transform_indices = @transform_3, window_bounds = array<i64: 1, 128>}, {pipeline_mode = #tpu.pipeline_mode<synchronous>, transform_indices = @transform_4, window_bounds = array<i64: 1, 128>}, {transform_indices = @transform_5, window_bounds = array<i64: 16, 128>}, {transform_indices = @transform_6, window_bounds = array<i64: 1, 16, 128>}]} {
    %c0 = arith.constant 0 : index
    %c0_0 = arith.constant 0 : index
    %c0_1 = arith.constant 0 : index
    %0 = vector.load %arg2[%c0, %c0_0, %c0_1] : memref<1x16x64xf32, #tpu.memory_space<vmem>>, vector<1x16x64xf32>
    %1 = vector.shape_cast %0 : vector<1x16x64xf32> to vector<16x64xf32>
    %c0_2 = arith.constant 0 : index
    %c0_3 = arith.constant 0 : index
    %2 = vector.load %arg3[%c0_2, %c0_3] : memref<64x128xf32, #tpu.memory_space<vmem>>, vector<64x128xf32>
    %3 = arith.truncf %1 : vector<16x64xf32> to vector<16x64xbf16>
    %4 = arith.truncf %2 : vector<64x128xf32> to vector<64x128xbf16>
    %cst = arith.constant dense<0.000000e+00> : vector<16x128xf32>
    %5 = tpu.matmul %3, %4, %cst {dimension_numbers = #tpu.dot_dimension_numbers<[1], [0], [0], [1], [0, 0, 1, 1], [], []>} : vector<16x64xbf16>, vector<64x128xbf16>, vector<16x128xf32> -> vector<16x128xf32>
    %c0_4 = arith.constant 0 : index
    %c0_5 = arith.constant 0 : index
    %6 = vector.load %arg4[%c0_4, %c0_5] : memref<1x128xf32, #tpu.memory_space<vmem>>, vector<1x128xf32>
    %7 = vector.broadcast %6 : vector<1x128xf32> to vector<16x128xf32>
    %8 = arith.addf %5, %7 : vector<16x128xf32>
    %c0_6 = arith.constant 0 : index
    %c0_7 = arith.constant 0 : index
    %9 = vector.load %arg5[%c0_6, %c0_7] : memref<1x128xf32, #tpu.memory_space<vmem>>, vector<1x128xf32>
    %c0_8 = arith.constant 0 : index
    %c0_9 = arith.constant 0 : index
    %10 = vector.load %arg6[%c0_8, %c0_9] : memref<1x128xf32, #tpu.memory_space<vmem>>, vector<1x128xf32>
    %cst_10 = arith.constant dense<0.000000e+00> : vector<16xf32>
    %11 = vector.multi_reduction <add>, %8, %cst_10 [1] : vector<16x128xf32> to vector<16xf32>
    %12 = vector.shape_cast %11 : vector<16xf32> to vector<16x1xf32>
    %cst_11 = arith.constant 0.010416667 : f32
    %13 = vector.broadcast %cst_11 : f32 to vector<16x1xf32>
    %14 = arith.mulf %12, %13 : vector<16x1xf32>
    %15 = arith.mulf %8, %8 : vector<16x128xf32>
    %cst_12 = arith.constant dense<0.000000e+00> : vector<16xf32>
    %16 = vector.multi_reduction <add>, %15, %cst_12 [1] : vector<16x128xf32> to vector<16xf32>
    %17 = vector.shape_cast %16 : vector<16xf32> to vector<16x1xf32>
    %cst_13 = arith.constant 0.010416667 : f32
    %18 = vector.broadcast %cst_13 : f32 to vector<16x1xf32>
    %19 = arith.mulf %17, %18 : vector<16x1xf32>
    %20 = arith.mulf %14, %14 : vector<16x1xf32>
    %21 = arith.subf %19, %20 : vector<16x1xf32>
    %cst_14 = arith.constant 0.000000e+00 : f32
    %22 = vector.broadcast %cst_14 : f32 to vector<16x1xf32>
    %23 = arith.maximumf %21, %22 : vector<16x1xf32>
    %24 = vector.broadcast %14 : vector<16x1xf32> to vector<16x128xf32>
    %25 = arith.subf %8, %24 : vector<16x128xf32>
    %cst_15 = arith.constant 9.99999974E-6 : f32
    %26 = vector.broadcast %cst_15 : f32 to vector<16x1xf32>
    %27 = arith.addf %23, %26 : vector<16x1xf32>
    %28 = math.rsqrt %27 : vector<16x1xf32>
    %29 = vector.broadcast %28 : vector<16x1xf32> to vector<16x128xf32>
    %30 = arith.mulf %25, %29 : vector<16x128xf32>
    %31 = vector.broadcast %9 : vector<1x128xf32> to vector<16x128xf32>
    %32 = arith.mulf %30, %31 : vector<16x128xf32>
    %33 = vector.broadcast %10 : vector<1x128xf32> to vector<16x128xf32>
    %34 = arith.addf %32, %33 : vector<16x128xf32>
    %c0_16 = arith.constant 0 : index
    %c0_17 = arith.constant 0 : index
    %35 = vector.load %arg7[%c0_16, %c0_17] : memref<16x128xf32, #tpu.memory_space<vmem>>, vector<16x128xf32>
    %36 = arith.addf %34, %35 : vector<16x128xf32>
    %c0_18 = arith.constant 0 : index
    %c0_19 = arith.constant 0 : index
    %c0_20 = arith.constant 0 : index
    %37 = vector.load %arg8[%c0_18, %c0_19, %c0_20] : memref<1x16x128xf32, #tpu.memory_space<vmem>>, vector<1x16x128xf32>
    %38 = vector.shape_cast %37 : vector<1x16x128xf32> to vector<16x128xf32>
    %39 = vector.shape_cast %36 : vector<16x128xf32> to vector<1x16x128xf32>
    tpu.vector_store %arg8[%c0_18, %c0_19, %c0_20], %39 {strides = array<i32>} : memref<1x16x128xf32, #tpu.memory_space<vmem>>, vector<1x16x128xf32>,
    return
  }
  func.func @transform_0(%arg0: i32, %arg1: i32) -> (i32, i32, i32) {
    %c0_i32 = arith.constant 0 : i32
    %c0_i32_0 = arith.constant 0 : i32
    return %arg0, %arg1, %c0_i32 : i32, i32, i32
  }
  func.func @transform_1(%arg0: i32, %arg1: i32) -> (i32, i32) {
    %c0_i32 = arith.constant 0 : i32
    %c0_i32_0 = arith.constant 0 : i32
    %c0_i32_1 = arith.constant 0 : i32
    return %c0_i32, %c0_i32_0 : i32, i32
  }
  func.func @transform_2(%arg0: i32, %arg1: i32) -> (i32, i32) {
    %c0_i32 = arith.constant 0 : i32
    %c0_i32_0 = arith.constant 0 : i32
    %c0_i32_1 = arith.constant 0 : i32
    return %c0_i32, %c0_i32_0 : i32, i32
  }
  func.func @transform_3(%arg0: i32, %arg1: i32) -> (i32, i32) {
    %c0_i32 = arith.constant 0 : i32
    %c0_i32_0 = arith.constant 0 : i32
    %c0_i32_1 = arith.constant 0 : i32
    return %c0_i32, %c0_i32_0 : i32, i32
  }
  func.func @transform_4(%arg0: i32, %arg1: i32) -> (i32, i32) {
    %c0_i32 = arith.constant 0 : i32
    %c0_i32_0 = arith.constant 0 : i32
    %c0_i32_1 = arith.constant 0 : i32
    return %c0_i32, %c0_i32_0 : i32, i32
  }
  func.func @transform_5(%arg0: i32, %arg1: i32) -> (i32, i32) {
    %c0_i32 = arith.constant 0 : i32
    %c0_i32_0 = arith.constant 0 : i32
    return %arg1, %c0_i32 : i32, i32
  }
  func.func @transform_6(%arg0: i32, %arg1: i32) -> (i32, i32, i32) {
    %c0_i32 = arith.constant 0 : i32
    %c0_i32_0 = arith.constant 0 : i32
    return %arg0, %arg1, %c0_i32 : i32, i32, i32
  }
}

module attributes {stable_mosaic.version = 11 : i64} {
  func.func @_transformer_block_kernel(%arg0: i32, %arg1: memref<1x16x128xf32, #tpu.memory_space<vmem>>, %arg2: memref<1x128xf32, #tpu.memory_space<vmem>>, %arg3: memref<1x128xf32, #tpu.memory_space<vmem>>, %arg4: memref<128x1536xf32, #tpu.memory_space<vmem>>, %arg5: memref<512x128xf32, #tpu.memory_space<vmem>>, %arg6: memref<1x128xf32, #tpu.memory_space<vmem>>, %arg7: memref<1x128xf32, #tpu.memory_space<vmem>>, %arg8: memref<1x128xf32, #tpu.memory_space<vmem>>, %arg9: memref<128x384xf32, #tpu.memory_space<vmem>>, %arg10: memref<1x384xf32, #tpu.memory_space<vmem>>, %arg11: memref<384x128xf32, #tpu.memory_space<vmem>>, %arg12: memref<1x128xf32, #tpu.memory_space<vmem>>, %arg13: memref<1x16x128xf32, #tpu.memory_space<vmem>>) attributes {dimension_semantics = [#tpu.dimension_semantics<parallel>], iteration_bounds = array<i64: 2>, scalar_prefetch = 0 : i64, scratch_operands = 0 : i64, tpu.core_type = #tpu.core_type<tc>, window_params = [{transform_indices = @transform_0, window_bounds = array<i64: 1, 16, 128>}, {pipeline_mode = #tpu.pipeline_mode<synchronous>, transform_indices = @transform_1, window_bounds = array<i64: 1, 128>}, {pipeline_mode = #tpu.pipeline_mode<synchronous>, transform_indices = @transform_2, window_bounds = array<i64: 1, 128>}, {pipeline_mode = #tpu.pipeline_mode<synchronous>, transform_indices = @transform_3, window_bounds = array<i64: 128, 1536>}, {pipeline_mode = #tpu.pipeline_mode<synchronous>, transform_indices = @transform_4, window_bounds = array<i64: 512, 128>}, {pipeline_mode = #tpu.pipeline_mode<synchronous>, transform_indices = @transform_5, window_bounds = array<i64: 1, 128>}, {pipeline_mode = #tpu.pipeline_mode<synchronous>, transform_indices = @transform_6, window_bounds = array<i64: 1, 128>}, {pipeline_mode = #tpu.pipeline_mode<synchronous>, transform_indices = @transform_7, window_bounds = array<i64: 1, 128>}, {pipeline_mode = #tpu.pipeline_mode<synchronous>, transform_indices = @transform_8, window_bounds = array<i64: 128, 384>}, {pipeline_mode = #tpu.pipeline_mode<synchronous>, transform_indices = @transform_9, window_bounds = array<i64: 1, 384>}, {pipeline_mode = #tpu.pipeline_mode<synchronous>, transform_indices = @transform_10, window_bounds = array<i64: 384, 128>}, {pipeline_mode = #tpu.pipeline_mode<synchronous>, transform_indices = @transform_11, window_bounds = array<i64: 1, 128>}, {transform_indices = @transform_12, window_bounds = array<i64: 1, 16, 128>}]} {
    %c0 = arith.constant 0 : index
    %c0_0 = arith.constant 0 : index
    %c0_1 = arith.constant 0 : index
    %0 = vector.load %arg1[%c0, %c0_0, %c0_1] : memref<1x16x128xf32, #tpu.memory_space<vmem>>, vector<1x16x128xf32>
    %1 = vector.shape_cast %0 : vector<1x16x128xf32> to vector<16x128xf32>
    %c0_2 = arith.constant 0 : index
    %c0_3 = arith.constant 0 : index
    %2 = vector.load %arg2[%c0_2, %c0_3] : memref<1x128xf32, #tpu.memory_space<vmem>>, vector<1x128xf32>
    %c0_4 = arith.constant 0 : index
    %c0_5 = arith.constant 0 : index
    %3 = vector.load %arg3[%c0_4, %c0_5] : memref<1x128xf32, #tpu.memory_space<vmem>>, vector<1x128xf32>
    %cst = arith.constant dense<0.000000e+00> : vector<16xf32>
    %4 = vector.multi_reduction <add>, %1, %cst [1] : vector<16x128xf32> to vector<16xf32>
    %5 = vector.shape_cast %4 : vector<16xf32> to vector<16x1xf32>
    %cst_6 = arith.constant 0.010416667 : f32
    %6 = vector.broadcast %cst_6 : f32 to vector<16x1xf32>
    %7 = arith.mulf %5, %6 : vector<16x1xf32>
    %8 = arith.mulf %1, %1 : vector<16x128xf32>
    %cst_7 = arith.constant dense<0.000000e+00> : vector<16xf32>
    %9 = vector.multi_reduction <add>, %8, %cst_7 [1] : vector<16x128xf32> to vector<16xf32>
    %10 = vector.shape_cast %9 : vector<16xf32> to vector<16x1xf32>
    %cst_8 = arith.constant 0.010416667 : f32
    %11 = vector.broadcast %cst_8 : f32 to vector<16x1xf32>
    %12 = arith.mulf %10, %11 : vector<16x1xf32>
    %13 = arith.mulf %7, %7 : vector<16x1xf32>
    %14 = arith.subf %12, %13 : vector<16x1xf32>
    %cst_9 = arith.constant 0.000000e+00 : f32
    %15 = vector.broadcast %cst_9 : f32 to vector<16x1xf32>
    %16 = arith.maximumf %14, %15 : vector<16x1xf32>
    %17 = vector.broadcast %7 : vector<16x1xf32> to vector<16x128xf32>
    %18 = arith.subf %1, %17 : vector<16x128xf32>
    %cst_10 = arith.constant 9.99999974E-6 : f32
    %19 = vector.broadcast %cst_10 : f32 to vector<16x1xf32>
    %20 = arith.addf %16, %19 : vector<16x1xf32>
    %21 = math.rsqrt %20 : vector<16x1xf32>
    %22 = vector.broadcast %21 : vector<16x1xf32> to vector<16x128xf32>
    %23 = arith.mulf %18, %22 : vector<16x128xf32>
    %24 = vector.broadcast %2 : vector<1x128xf32> to vector<16x128xf32>
    %25 = arith.mulf %23, %24 : vector<16x128xf32>
    %26 = vector.broadcast %3 : vector<1x128xf32> to vector<16x128xf32>
    %27 = arith.addf %25, %26 : vector<16x128xf32>
    %c0_11 = arith.constant 0 : index
    %c0_12 = arith.constant 0 : index
    %28 = vector.load %arg4[%c0_11, %c0_12] : memref<128x1536xf32, #tpu.memory_space<vmem>>, vector<128x1536xf32>
    %29 = arith.truncf %27 : vector<16x128xf32> to vector<16x128xbf16>
    %30 = arith.truncf %28 : vector<128x1536xf32> to vector<128x1536xbf16>
    %cst_13 = arith.constant dense<0.000000e+00> : vector<16x1536xf32>
    %31 = tpu.matmul %29, %30, %cst_13 {dimension_numbers = #tpu.dot_dimension_numbers<[1], [0], [0], [1], [0, 0, 1, 1], [], []>} : vector<16x128xbf16>, vector<128x1536xbf16>, vector<16x1536xf32> -> vector<16x1536xf32>
    %32 = vector.extract_strided_slice %31 {offsets = [0, 0], sizes = [16, 512], strides = [1, 1]} : vector<16x1536xf32> to vector<16x512xf32>
    %33 = vector.extract_strided_slice %31 {offsets = [0, 512], sizes = [16, 512], strides = [1, 1]} : vector<16x1536xf32> to vector<16x512xf32>
    %34 = vector.extract_strided_slice %31 {offsets = [0, 1024], sizes = [16, 512], strides = [1, 1]} : vector<16x1536xf32> to vector<16x512xf32>
    %c0_14 = arith.constant 0 : index
    %c0_15 = arith.constant 0 : index
    %35 = vector.load %arg5[%c0_14, %c0_15] : memref<512x128xf32, #tpu.memory_space<vmem>>, vector<512x128xf32>
    %36 = arith.truncf %35 : vector<512x128xf32> to vector<512x128xbf16>
    %cst_16 = arith.constant 0.000000e+00 : f32
    %37 = vector.broadcast %cst_16 : f32 to vector<16x128xf32>
    %38 = vector.extract_strided_slice %32 {offsets = [0, 0], sizes = [16, 64], strides = [1, 1]} : vector<16x512xf32> to vector<16x64xf32>
    %39 = arith.truncf %38 : vector<16x64xf32> to vector<16x64xbf16>
    %40 = vector.extract_strided_slice %33 {offsets = [0, 0], sizes = [16, 64], strides = [1, 1]} : vector<16x512xf32> to vector<16x64xf32>
    %41 = arith.truncf %40 : vector<16x64xf32> to vector<16x64xbf16>
    %42 = vector.extract_strided_slice %34 {offsets = [0, 0], sizes = [16, 64], strides = [1, 1]} : vector<16x512xf32> to vector<16x64xf32>
    %43 = arith.truncf %42 : vector<16x64xf32> to vector<16x64xbf16>
    %cst_17 = arith.constant dense<0.000000e+00> : vector<16x16xf32>
    %44 = tpu.matmul %39, %41, %cst_17 {dimension_numbers = #tpu.dot_dimension_numbers<[1], [1], [0], [0], [0, 0, 1, 0], [], []>} : vector<16x64xbf16>, vector<16x64xbf16>, vector<16x16xf32> -> vector<16x16xf32>
    %cst_18 = arith.constant 1.250000e-01 : f32
    %45 = vector.broadcast %cst_18 : f32 to vector<16x16xf32>
    %46 = arith.mulf %44, %45 : vector<16x16xf32>
    %cst_19 = arith.constant dense<0xFF800000> : vector<16xf32>
    %47 = vector.multi_reduction <maximumf>, %46, %cst_19 [1] : vector<16x16xf32> to vector<16xf32>
    %48 = vector.shape_cast %47 : vector<16xf32> to vector<16x1xf32>
    %49 = vector.broadcast %48 : vector<16x1xf32> to vector<16x16xf32>
    %50 = arith.subf %46, %49 : vector<16x16xf32>
    %51 = math.exp %50 : vector<16x16xf32>
    %cst_20 = arith.constant dense<0.000000e+00> : vector<16xf32>
    %52 = vector.multi_reduction <add>, %51, %cst_20 [1] : vector<16x16xf32> to vector<16xf32>
    %53 = vector.shape_cast %52 : vector<16xf32> to vector<16x1xf32>
    %54 = vector.broadcast %53 : vector<16x1xf32> to vector<16x16xf32>
    %55 = arith.divf %51, %54 : vector<16x16xf32>
    %56 = arith.truncf %55 : vector<16x16xf32> to vector<16x16xbf16>
    %cst_21 = arith.constant dense<0.000000e+00> : vector<16x64xf32>
    %57 = tpu.matmul %56, %43, %cst_21 {dimension_numbers = #tpu.dot_dimension_numbers<[1], [0], [0], [1], [0, 0, 1, 1], [], []>} : vector<16x16xbf16>, vector<16x64xbf16>, vector<16x64xf32> -> vector<16x64xf32>
    %58 = arith.truncf %57 : vector<16x64xf32> to vector<16x64xbf16>
    %59 = vector.extract_strided_slice %36 {offsets = [0, 0], sizes = [64, 128], strides = [1, 1]} : vector<512x128xbf16> to vector<64x128xbf16>
    %cst_22 = arith.constant dense<0.000000e+00> : vector<16x128xf32>
    %60 = tpu.matmul %58, %59, %cst_22 {dimension_numbers = #tpu.dot_dimension_numbers<[1], [0], [0], [1], [0, 0, 1, 1], [], []>} : vector<16x64xbf16>, vector<64x128xbf16>, vector<16x128xf32> -> vector<16x128xf32>
    %61 = arith.addf %37, %60 : vector<16x128xf32>
    %62 = vector.extract_strided_slice %32 {offsets = [0, 64], sizes = [16, 64], strides = [1, 1]} : vector<16x512xf32> to vector<16x64xf32>
    %63 = arith.truncf %62 : vector<16x64xf32> to vector<16x64xbf16>
    %64 = vector.extract_strided_slice %33 {offsets = [0, 64], sizes = [16, 64], strides = [1, 1]} : vector<16x512xf32> to vector<16x64xf32>
    %65 = arith.truncf %64 : vector<16x64xf32> to vector<16x64xbf16>
    %66 = vector.extract_strided_slice %34 {offsets = [0, 64], sizes = [16, 64], strides = [1, 1]} : vector<16x512xf32> to vector<16x64xf32>
    %67 = arith.truncf %66 : vector<16x64xf32> to vector<16x64xbf16>
    %cst_23 = arith.constant dense<0.000000e+00> : vector<16x16xf32>
    %68 = tpu.matmul %63, %65, %cst_23 {dimension_numbers = #tpu.dot_dimension_numbers<[1], [1], [0], [0], [0, 0, 1, 0], [], []>} : vector<16x64xbf16>, vector<16x64xbf16>, vector<16x16xf32> -> vector<16x16xf32>
    %cst_24 = arith.constant 1.250000e-01 : f32
    %69 = vector.broadcast %cst_24 : f32 to vector<16x16xf32>
    %70 = arith.mulf %68, %69 : vector<16x16xf32>
    %cst_25 = arith.constant dense<0xFF800000> : vector<16xf32>
    %71 = vector.multi_reduction <maximumf>, %70, %cst_25 [1] : vector<16x16xf32> to vector<16xf32>
    %72 = vector.shape_cast %71 : vector<16xf32> to vector<16x1xf32>
    %73 = vector.broadcast %72 : vector<16x1xf32> to vector<16x16xf32>
    %74 = arith.subf %70, %73 : vector<16x16xf32>
    %75 = math.exp %74 : vector<16x16xf32>
    %cst_26 = arith.constant dense<0.000000e+00> : vector<16xf32>
    %76 = vector.multi_reduction <add>, %75, %cst_26 [1] : vector<16x16xf32> to vector<16xf32>
    %77 = vector.shape_cast %76 : vector<16xf32> to vector<16x1xf32>
    %78 = vector.broadcast %77 : vector<16x1xf32> to vector<16x16xf32>
    %79 = arith.divf %75, %78 : vector<16x16xf32>
    %80 = arith.truncf %79 : vector<16x16xf32> to vector<16x16xbf16>
    %cst_27 = arith.constant dense<0.000000e+00> : vector<16x64xf32>
    %81 = tpu.matmul %80, %67, %cst_27 {dimension_numbers = #tpu.dot_dimension_numbers<[1], [0], [0], [1], [0, 0, 1, 1], [], []>} : vector<16x16xbf16>, vector<16x64xbf16>, vector<16x64xf32> -> vector<16x64xf32>
    %82 = arith.truncf %81 : vector<16x64xf32> to vector<16x64xbf16>
    %83 = vector.extract_strided_slice %36 {offsets = [64, 0], sizes = [64, 128], strides = [1, 1]} : vector<512x128xbf16> to vector<64x128xbf16>
    %cst_28 = arith.constant dense<0.000000e+00> : vector<16x128xf32>
    %84 = tpu.matmul %82, %83, %cst_28 {dimension_numbers = #tpu.dot_dimension_numbers<[1], [0], [0], [1], [0, 0, 1, 1], [], []>} : vector<16x64xbf16>, vector<64x128xbf16>, vector<16x128xf32> -> vector<16x128xf32>
    %85 = arith.addf %61, %84 : vector<16x128xf32>
    %86 = vector.extract_strided_slice %32 {offsets = [0, 128], sizes = [16, 64], strides = [1, 1]} : vector<16x512xf32> to vector<16x64xf32>
    %87 = arith.truncf %86 : vector<16x64xf32> to vector<16x64xbf16>
    %88 = vector.extract_strided_slice %33 {offsets = [0, 128], sizes = [16, 64], strides = [1, 1]} : vector<16x512xf32> to vector<16x64xf32>
    %89 = arith.truncf %88 : vector<16x64xf32> to vector<16x64xbf16>
    %90 = vector.extract_strided_slice %34 {offsets = [0, 128], sizes = [16, 64], strides = [1, 1]} : vector<16x512xf32> to vector<16x64xf32>
    %91 = arith.truncf %90 : vector<16x64xf32> to vector<16x64xbf16>
    %cst_29 = arith.constant dense<0.000000e+00> : vector<16x16xf32>
    %92 = tpu.matmul %87, %89, %cst_29 {dimension_numbers = #tpu.dot_dimension_numbers<[1], [1], [0], [0], [0, 0, 1, 0], [], []>} : vector<16x64xbf16>, vector<16x64xbf16>, vector<16x16xf32> -> vector<16x16xf32>
    %cst_30 = arith.constant 1.250000e-01 : f32
    %93 = vector.broadcast %cst_30 : f32 to vector<16x16xf32>
    %94 = arith.mulf %92, %93 : vector<16x16xf32>
    %cst_31 = arith.constant dense<0xFF800000> : vector<16xf32>
    %95 = vector.multi_reduction <maximumf>, %94, %cst_31 [1] : vector<16x16xf32> to vector<16xf32>
    %96 = vector.shape_cast %95 : vector<16xf32> to vector<16x1xf32>
    %97 = vector.broadcast %96 : vector<16x1xf32> to vector<16x16xf32>
    %98 = arith.subf %94, %97 : vector<16x16xf32>
    %99 = math.exp %98 : vector<16x16xf32>
    %cst_32 = arith.constant dense<0.000000e+00> : vector<16xf32>
    %100 = vector.multi_reduction <add>, %99, %cst_32 [1] : vector<16x16xf32> to vector<16xf32>
    %101 = vector.shape_cast %100 : vector<16xf32> to vector<16x1xf32>
    %102 = vector.broadcast %101 : vector<16x1xf32> to vector<16x16xf32>
    %103 = arith.divf %99, %102 : vector<16x16xf32>
    %104 = arith.truncf %103 : vector<16x16xf32> to vector<16x16xbf16>
    %cst_33 = arith.constant dense<0.000000e+00> : vector<16x64xf32>
    %105 = tpu.matmul %104, %91, %cst_33 {dimension_numbers = #tpu.dot_dimension_numbers<[1], [0], [0], [1], [0, 0, 1, 1], [], []>} : vector<16x16xbf16>, vector<16x64xbf16>, vector<16x64xf32> -> vector<16x64xf32>
    %106 = arith.truncf %105 : vector<16x64xf32> to vector<16x64xbf16>
    %107 = vector.extract_strided_slice %36 {offsets = [128, 0], sizes = [64, 128], strides = [1, 1]} : vector<512x128xbf16> to vector<64x128xbf16>
    %cst_34 = arith.constant dense<0.000000e+00> : vector<16x128xf32>
    %108 = tpu.matmul %106, %107, %cst_34 {dimension_numbers = #tpu.dot_dimension_numbers<[1], [0], [0], [1], [0, 0, 1, 1], [], []>} : vector<16x64xbf16>, vector<64x128xbf16>, vector<16x128xf32> -> vector<16x128xf32>
    %109 = arith.addf %85, %108 : vector<16x128xf32>
    %110 = vector.extract_strided_slice %32 {offsets = [0, 192], sizes = [16, 64], strides = [1, 1]} : vector<16x512xf32> to vector<16x64xf32>
    %111 = arith.truncf %110 : vector<16x64xf32> to vector<16x64xbf16>
    %112 = vector.extract_strided_slice %33 {offsets = [0, 192], sizes = [16, 64], strides = [1, 1]} : vector<16x512xf32> to vector<16x64xf32>
    %113 = arith.truncf %112 : vector<16x64xf32> to vector<16x64xbf16>
    %114 = vector.extract_strided_slice %34 {offsets = [0, 192], sizes = [16, 64], strides = [1, 1]} : vector<16x512xf32> to vector<16x64xf32>
    %115 = arith.truncf %114 : vector<16x64xf32> to vector<16x64xbf16>
    %cst_35 = arith.constant dense<0.000000e+00> : vector<16x16xf32>
    %116 = tpu.matmul %111, %113, %cst_35 {dimension_numbers = #tpu.dot_dimension_numbers<[1], [1], [0], [0], [0, 0, 1, 0], [], []>} : vector<16x64xbf16>, vector<16x64xbf16>, vector<16x16xf32> -> vector<16x16xf32>
    %cst_36 = arith.constant 1.250000e-01 : f32
    %117 = vector.broadcast %cst_36 : f32 to vector<16x16xf32>
    %118 = arith.mulf %116, %117 : vector<16x16xf32>
    %cst_37 = arith.constant dense<0xFF800000> : vector<16xf32>
    %119 = vector.multi_reduction <maximumf>, %118, %cst_37 [1] : vector<16x16xf32> to vector<16xf32>
    %120 = vector.shape_cast %119 : vector<16xf32> to vector<16x1xf32>
    %121 = vector.broadcast %120 : vector<16x1xf32> to vector<16x16xf32>
    %122 = arith.subf %118, %121 : vector<16x16xf32>
    %123 = math.exp %122 : vector<16x16xf32>
    %cst_38 = arith.constant dense<0.000000e+00> : vector<16xf32>
    %124 = vector.multi_reduction <add>, %123, %cst_38 [1] : vector<16x16xf32> to vector<16xf32>
    %125 = vector.shape_cast %124 : vector<16xf32> to vector<16x1xf32>
    %126 = vector.broadcast %125 : vector<16x1xf32> to vector<16x16xf32>
    %127 = arith.divf %123, %126 : vector<16x16xf32>
    %128 = arith.truncf %127 : vector<16x16xf32> to vector<16x16xbf16>
    %cst_39 = arith.constant dense<0.000000e+00> : vector<16x64xf32>
    %129 = tpu.matmul %128, %115, %cst_39 {dimension_numbers = #tpu.dot_dimension_numbers<[1], [0], [0], [1], [0, 0, 1, 1], [], []>} : vector<16x16xbf16>, vector<16x64xbf16>, vector<16x64xf32> -> vector<16x64xf32>
    %130 = arith.truncf %129 : vector<16x64xf32> to vector<16x64xbf16>
    %131 = vector.extract_strided_slice %36 {offsets = [192, 0], sizes = [64, 128], strides = [1, 1]} : vector<512x128xbf16> to vector<64x128xbf16>
    %cst_40 = arith.constant dense<0.000000e+00> : vector<16x128xf32>
    %132 = tpu.matmul %130, %131, %cst_40 {dimension_numbers = #tpu.dot_dimension_numbers<[1], [0], [0], [1], [0, 0, 1, 1], [], []>} : vector<16x64xbf16>, vector<64x128xbf16>, vector<16x128xf32> -> vector<16x128xf32>
    %133 = arith.addf %109, %132 : vector<16x128xf32>
    %134 = vector.extract_strided_slice %32 {offsets = [0, 256], sizes = [16, 64], strides = [1, 1]} : vector<16x512xf32> to vector<16x64xf32>
    %135 = arith.truncf %134 : vector<16x64xf32> to vector<16x64xbf16>
    %136 = vector.extract_strided_slice %33 {offsets = [0, 256], sizes = [16, 64], strides = [1, 1]} : vector<16x512xf32> to vector<16x64xf32>
    %137 = arith.truncf %136 : vector<16x64xf32> to vector<16x64xbf16>
    %138 = vector.extract_strided_slice %34 {offsets = [0, 256], sizes = [16, 64], strides = [1, 1]} : vector<16x512xf32> to vector<16x64xf32>
    %139 = arith.truncf %138 : vector<16x64xf32> to vector<16x64xbf16>
    %cst_41 = arith.constant dense<0.000000e+00> : vector<16x16xf32>
    %140 = tpu.matmul %135, %137, %cst_41 {dimension_numbers = #tpu.dot_dimension_numbers<[1], [1], [0], [0], [0, 0, 1, 0], [], []>} : vector<16x64xbf16>, vector<16x64xbf16>, vector<16x16xf32> -> vector<16x16xf32>
    %cst_42 = arith.constant 1.250000e-01 : f32
    %141 = vector.broadcast %cst_42 : f32 to vector<16x16xf32>
    %142 = arith.mulf %140, %141 : vector<16x16xf32>
    %cst_43 = arith.constant dense<0xFF800000> : vector<16xf32>
    %143 = vector.multi_reduction <maximumf>, %142, %cst_43 [1] : vector<16x16xf32> to vector<16xf32>
    %144 = vector.shape_cast %143 : vector<16xf32> to vector<16x1xf32>
    %145 = vector.broadcast %144 : vector<16x1xf32> to vector<16x16xf32>
    %146 = arith.subf %142, %145 : vector<16x16xf32>
    %147 = math.exp %146 : vector<16x16xf32>
    %cst_44 = arith.constant dense<0.000000e+00> : vector<16xf32>
    %148 = vector.multi_reduction <add>, %147, %cst_44 [1] : vector<16x16xf32> to vector<16xf32>
    %149 = vector.shape_cast %148 : vector<16xf32> to vector<16x1xf32>
    %150 = vector.broadcast %149 : vector<16x1xf32> to vector<16x16xf32>
    %151 = arith.divf %147, %150 : vector<16x16xf32>
    %152 = arith.truncf %151 : vector<16x16xf32> to vector<16x16xbf16>
    %cst_45 = arith.constant dense<0.000000e+00> : vector<16x64xf32>
    %153 = tpu.matmul %152, %139, %cst_45 {dimension_numbers = #tpu.dot_dimension_numbers<[1], [0], [0], [1], [0, 0, 1, 1], [], []>} : vector<16x16xbf16>, vector<16x64xbf16>, vector<16x64xf32> -> vector<16x64xf32>
    %154 = arith.truncf %153 : vector<16x64xf32> to vector<16x64xbf16>
    %155 = vector.extract_strided_slice %36 {offsets = [256, 0], sizes = [64, 128], strides = [1, 1]} : vector<512x128xbf16> to vector<64x128xbf16>
    %cst_46 = arith.constant dense<0.000000e+00> : vector<16x128xf32>
    %156 = tpu.matmul %154, %155, %cst_46 {dimension_numbers = #tpu.dot_dimension_numbers<[1], [0], [0], [1], [0, 0, 1, 1], [], []>} : vector<16x64xbf16>, vector<64x128xbf16>, vector<16x128xf32> -> vector<16x128xf32>
    %157 = arith.addf %133, %156 : vector<16x128xf32>
    %158 = vector.extract_strided_slice %32 {offsets = [0, 320], sizes = [16, 64], strides = [1, 1]} : vector<16x512xf32> to vector<16x64xf32>
    %159 = arith.truncf %158 : vector<16x64xf32> to vector<16x64xbf16>
    %160 = vector.extract_strided_slice %33 {offsets = [0, 320], sizes = [16, 64], strides = [1, 1]} : vector<16x512xf32> to vector<16x64xf32>
    %161 = arith.truncf %160 : vector<16x64xf32> to vector<16x64xbf16>
    %162 = vector.extract_strided_slice %34 {offsets = [0, 320], sizes = [16, 64], strides = [1, 1]} : vector<16x512xf32> to vector<16x64xf32>
    %163 = arith.truncf %162 : vector<16x64xf32> to vector<16x64xbf16>
    %cst_47 = arith.constant dense<0.000000e+00> : vector<16x16xf32>
    %164 = tpu.matmul %159, %161, %cst_47 {dimension_numbers = #tpu.dot_dimension_numbers<[1], [1], [0], [0], [0, 0, 1, 0], [], []>} : vector<16x64xbf16>, vector<16x64xbf16>, vector<16x16xf32> -> vector<16x16xf32>
    %cst_48 = arith.constant 1.250000e-01 : f32
    %165 = vector.broadcast %cst_48 : f32 to vector<16x16xf32>
    %166 = arith.mulf %164, %165 : vector<16x16xf32>
    %cst_49 = arith.constant dense<0xFF800000> : vector<16xf32>
    %167 = vector.multi_reduction <maximumf>, %166, %cst_49 [1] : vector<16x16xf32> to vector<16xf32>
    %168 = vector.shape_cast %167 : vector<16xf32> to vector<16x1xf32>
    %169 = vector.broadcast %168 : vector<16x1xf32> to vector<16x16xf32>
    %170 = arith.subf %166, %169 : vector<16x16xf32>
    %171 = math.exp %170 : vector<16x16xf32>
    %cst_50 = arith.constant dense<0.000000e+00> : vector<16xf32>
    %172 = vector.multi_reduction <add>, %171, %cst_50 [1] : vector<16x16xf32> to vector<16xf32>
    %173 = vector.shape_cast %172 : vector<16xf32> to vector<16x1xf32>
    %174 = vector.broadcast %173 : vector<16x1xf32> to vector<16x16xf32>
    %175 = arith.divf %171, %174 : vector<16x16xf32>
    %176 = arith.truncf %175 : vector<16x16xf32> to vector<16x16xbf16>
    %cst_51 = arith.constant dense<0.000000e+00> : vector<16x64xf32>
    %177 = tpu.matmul %176, %163, %cst_51 {dimension_numbers = #tpu.dot_dimension_numbers<[1], [0], [0], [1], [0, 0, 1, 1], [], []>} : vector<16x16xbf16>, vector<16x64xbf16>, vector<16x64xf32> -> vector<16x64xf32>
    %178 = arith.truncf %177 : vector<16x64xf32> to vector<16x64xbf16>
    %179 = vector.extract_strided_slice %36 {offsets = [320, 0], sizes = [64, 128], strides = [1, 1]} : vector<512x128xbf16> to vector<64x128xbf16>
    %cst_52 = arith.constant dense<0.000000e+00> : vector<16x128xf32>
    %180 = tpu.matmul %178, %179, %cst_52 {dimension_numbers = #tpu.dot_dimension_numbers<[1], [0], [0], [1], [0, 0, 1, 1], [], []>} : vector<16x64xbf16>, vector<64x128xbf16>, vector<16x128xf32> -> vector<16x128xf32>
    %181 = arith.addf %157, %180 : vector<16x128xf32>
    %182 = vector.extract_strided_slice %32 {offsets = [0, 384], sizes = [16, 64], strides = [1, 1]} : vector<16x512xf32> to vector<16x64xf32>
    %183 = arith.truncf %182 : vector<16x64xf32> to vector<16x64xbf16>
    %184 = vector.extract_strided_slice %33 {offsets = [0, 384], sizes = [16, 64], strides = [1, 1]} : vector<16x512xf32> to vector<16x64xf32>
    %185 = arith.truncf %184 : vector<16x64xf32> to vector<16x64xbf16>
    %186 = vector.extract_strided_slice %34 {offsets = [0, 384], sizes = [16, 64], strides = [1, 1]} : vector<16x512xf32> to vector<16x64xf32>
    %187 = arith.truncf %186 : vector<16x64xf32> to vector<16x64xbf16>
    %cst_53 = arith.constant dense<0.000000e+00> : vector<16x16xf32>
    %188 = tpu.matmul %183, %185, %cst_53 {dimension_numbers = #tpu.dot_dimension_numbers<[1], [1], [0], [0], [0, 0, 1, 0], [], []>} : vector<16x64xbf16>, vector<16x64xbf16>, vector<16x16xf32> -> vector<16x16xf32>
    %cst_54 = arith.constant 1.250000e-01 : f32
    %189 = vector.broadcast %cst_54 : f32 to vector<16x16xf32>
    %190 = arith.mulf %188, %189 : vector<16x16xf32>
    %cst_55 = arith.constant dense<0xFF800000> : vector<16xf32>
    %191 = vector.multi_reduction <maximumf>, %190, %cst_55 [1] : vector<16x16xf32> to vector<16xf32>
    %192 = vector.shape_cast %191 : vector<16xf32> to vector<16x1xf32>
    %193 = vector.broadcast %192 : vector<16x1xf32> to vector<16x16xf32>
    %194 = arith.subf %190, %193 : vector<16x16xf32>
    %195 = math.exp %194 : vector<16x16xf32>
    %cst_56 = arith.constant dense<0.000000e+00> : vector<16xf32>
    %196 = vector.multi_reduction <add>, %195, %cst_56 [1] : vector<16x16xf32> to vector<16xf32>
    %197 = vector.shape_cast %196 : vector<16xf32> to vector<16x1xf32>
    %198 = vector.broadcast %197 : vector<16x1xf32> to vector<16x16xf32>
    %199 = arith.divf %195, %198 : vector<16x16xf32>
    %200 = arith.truncf %199 : vector<16x16xf32> to vector<16x16xbf16>
    %cst_57 = arith.constant dense<0.000000e+00> : vector<16x64xf32>
    %201 = tpu.matmul %200, %187, %cst_57 {dimension_numbers = #tpu.dot_dimension_numbers<[1], [0], [0], [1], [0, 0, 1, 1], [], []>} : vector<16x16xbf16>, vector<16x64xbf16>, vector<16x64xf32> -> vector<16x64xf32>
    %202 = arith.truncf %201 : vector<16x64xf32> to vector<16x64xbf16>
    %203 = vector.extract_strided_slice %36 {offsets = [384, 0], sizes = [64, 128], strides = [1, 1]} : vector<512x128xbf16> to vector<64x128xbf16>
    %cst_58 = arith.constant dense<0.000000e+00> : vector<16x128xf32>
    %204 = tpu.matmul %202, %203, %cst_58 {dimension_numbers = #tpu.dot_dimension_numbers<[1], [0], [0], [1], [0, 0, 1, 1], [], []>} : vector<16x64xbf16>, vector<64x128xbf16>, vector<16x128xf32> -> vector<16x128xf32>
    %205 = arith.addf %181, %204 : vector<16x128xf32>
    %206 = vector.extract_strided_slice %32 {offsets = [0, 448], sizes = [16, 64], strides = [1, 1]} : vector<16x512xf32> to vector<16x64xf32>
    %207 = arith.truncf %206 : vector<16x64xf32> to vector<16x64xbf16>
    %208 = vector.extract_strided_slice %33 {offsets = [0, 448], sizes = [16, 64], strides = [1, 1]} : vector<16x512xf32> to vector<16x64xf32>
    %209 = arith.truncf %208 : vector<16x64xf32> to vector<16x64xbf16>
    %210 = vector.extract_strided_slice %34 {offsets = [0, 448], sizes = [16, 64], strides = [1, 1]} : vector<16x512xf32> to vector<16x64xf32>
    %211 = arith.truncf %210 : vector<16x64xf32> to vector<16x64xbf16>
    %cst_59 = arith.constant dense<0.000000e+00> : vector<16x16xf32>
    %212 = tpu.matmul %207, %209, %cst_59 {dimension_numbers = #tpu.dot_dimension_numbers<[1], [1], [0], [0], [0, 0, 1, 0], [], []>} : vector<16x64xbf16>, vector<16x64xbf16>, vector<16x16xf32> -> vector<16x16xf32>
    %cst_60 = arith.constant 1.250000e-01 : f32
    %213 = vector.broadcast %cst_60 : f32 to vector<16x16xf32>
    %214 = arith.mulf %212, %213 : vector<16x16xf32>
    %cst_61 = arith.constant dense<0xFF800000> : vector<16xf32>
    %215 = vector.multi_reduction <maximumf>, %214, %cst_61 [1] : vector<16x16xf32> to vector<16xf32>
    %216 = vector.shape_cast %215 : vector<16xf32> to vector<16x1xf32>
    %217 = vector.broadcast %216 : vector<16x1xf32> to vector<16x16xf32>
    %218 = arith.subf %214, %217 : vector<16x16xf32>
    %219 = math.exp %218 : vector<16x16xf32>
    %cst_62 = arith.constant dense<0.000000e+00> : vector<16xf32>
    %220 = vector.multi_reduction <add>, %219, %cst_62 [1] : vector<16x16xf32> to vector<16xf32>
    %221 = vector.shape_cast %220 : vector<16xf32> to vector<16x1xf32>
    %222 = vector.broadcast %221 : vector<16x1xf32> to vector<16x16xf32>
    %223 = arith.divf %219, %222 : vector<16x16xf32>
    %224 = arith.truncf %223 : vector<16x16xf32> to vector<16x16xbf16>
    %cst_63 = arith.constant dense<0.000000e+00> : vector<16x64xf32>
    %225 = tpu.matmul %224, %211, %cst_63 {dimension_numbers = #tpu.dot_dimension_numbers<[1], [0], [0], [1], [0, 0, 1, 1], [], []>} : vector<16x16xbf16>, vector<16x64xbf16>, vector<16x64xf32> -> vector<16x64xf32>
    %226 = arith.truncf %225 : vector<16x64xf32> to vector<16x64xbf16>
    %227 = vector.extract_strided_slice %36 {offsets = [448, 0], sizes = [64, 128], strides = [1, 1]} : vector<512x128xbf16> to vector<64x128xbf16>
    %cst_64 = arith.constant dense<0.000000e+00> : vector<16x128xf32>
    %228 = tpu.matmul %226, %227, %cst_64 {dimension_numbers = #tpu.dot_dimension_numbers<[1], [0], [0], [1], [0, 0, 1, 1], [], []>} : vector<16x64xbf16>, vector<64x128xbf16>, vector<16x128xf32> -> vector<16x128xf32>
    %229 = arith.addf %205, %228 : vector<16x128xf32>
    %c0_65 = arith.constant 0 : index
    %c0_66 = arith.constant 0 : index
    %230 = vector.load %arg6[%c0_65, %c0_66] : memref<1x128xf32, #tpu.memory_space<vmem>>, vector<1x128xf32>
    %231 = vector.broadcast %230 : vector<1x128xf32> to vector<16x128xf32>
    %232 = arith.addf %229, %231 : vector<16x128xf32>
    %233 = arith.addf %232, %1 : vector<16x128xf32>
    %c0_67 = arith.constant 0 : index
    %c0_68 = arith.constant 0 : index
    %234 = vector.load %arg7[%c0_67, %c0_68] : memref<1x128xf32, #tpu.memory_space<vmem>>, vector<1x128xf32>
    %c0_69 = arith.constant 0 : index
    %c0_70 = arith.constant 0 : index
    %235 = vector.load %arg8[%c0_69, %c0_70] : memref<1x128xf32, #tpu.memory_space<vmem>>, vector<1x128xf32>
    %cst_71 = arith.constant dense<0.000000e+00> : vector<16xf32>
    %236 = vector.multi_reduction <add>, %233, %cst_71 [1] : vector<16x128xf32> to vector<16xf32>
    %237 = vector.shape_cast %236 : vector<16xf32> to vector<16x1xf32>
    %cst_72 = arith.constant 0.010416667 : f32
    %238 = vector.broadcast %cst_72 : f32 to vector<16x1xf32>
    %239 = arith.mulf %237, %238 : vector<16x1xf32>
    %240 = arith.mulf %233, %233 : vector<16x128xf32>
    %cst_73 = arith.constant dense<0.000000e+00> : vector<16xf32>
    %241 = vector.multi_reduction <add>, %240, %cst_73 [1] : vector<16x128xf32> to vector<16xf32>
    %242 = vector.shape_cast %241 : vector<16xf32> to vector<16x1xf32>
    %cst_74 = arith.constant 0.010416667 : f32
    %243 = vector.broadcast %cst_74 : f32 to vector<16x1xf32>
    %244 = arith.mulf %242, %243 : vector<16x1xf32>
    %245 = arith.mulf %239, %239 : vector<16x1xf32>
    %246 = arith.subf %244, %245 : vector<16x1xf32>
    %cst_75 = arith.constant 0.000000e+00 : f32
    %247 = vector.broadcast %cst_75 : f32 to vector<16x1xf32>
    %248 = arith.maximumf %246, %247 : vector<16x1xf32>
    %249 = vector.broadcast %239 : vector<16x1xf32> to vector<16x128xf32>
    %250 = arith.subf %233, %249 : vector<16x128xf32>
    %cst_76 = arith.constant 9.99999974E-6 : f32
    %251 = vector.broadcast %cst_76 : f32 to vector<16x1xf32>
    %252 = arith.addf %248, %251 : vector<16x1xf32>
    %253 = math.rsqrt %252 : vector<16x1xf32>
    %254 = vector.broadcast %253 : vector<16x1xf32> to vector<16x128xf32>
    %255 = arith.mulf %250, %254 : vector<16x128xf32>
    %256 = vector.broadcast %234 : vector<1x128xf32> to vector<16x128xf32>
    %257 = arith.mulf %255, %256 : vector<16x128xf32>
    %258 = vector.broadcast %235 : vector<1x128xf32> to vector<16x128xf32>
    %259 = arith.addf %257, %258 : vector<16x128xf32>
    %c0_77 = arith.constant 0 : index
    %c0_78 = arith.constant 0 : index
    %260 = vector.load %arg9[%c0_77, %c0_78] : memref<128x384xf32, #tpu.memory_space<vmem>>, vector<128x384xf32>
    %261 = arith.truncf %259 : vector<16x128xf32> to vector<16x128xbf16>
    %262 = arith.truncf %260 : vector<128x384xf32> to vector<128x384xbf16>
    %cst_79 = arith.constant dense<0.000000e+00> : vector<16x384xf32>
    %263 = tpu.matmul %261, %262, %cst_79 {dimension_numbers = #tpu.dot_dimension_numbers<[1], [0], [0], [1], [0, 0, 1, 1], [], []>} : vector<16x128xbf16>, vector<128x384xbf16>, vector<16x384xf32> -> vector<16x384xf32>
    %c0_80 = arith.constant 0 : index
    %c0_81 = arith.constant 0 : index
    %264 = vector.load %arg10[%c0_80, %c0_81] : memref<1x384xf32, #tpu.memory_space<vmem>>, vector<1x384xf32>
    %265 = vector.broadcast %264 : vector<1x384xf32> to vector<16x384xf32>
    %266 = arith.addf %263, %265 : vector<16x384xf32>
    %cst_82 = arith.constant 5.000000e-01 : f32
    %267 = vector.broadcast %cst_82 : f32 to vector<16x384xf32>
    %268 = arith.mulf %267, %266 : vector<16x384xf32>
    %cst_83 = arith.constant 0.707106769 : f32
    %269 = vector.broadcast %cst_83 : f32 to vector<16x384xf32>
    %270 = arith.mulf %266, %269 : vector<16x384xf32>
    %271 = math.absf %270 : vector<16x384xf32>
    %cst_84 = arith.constant 0.327591091 : f32
    %272 = vector.broadcast %cst_84 : f32 to vector<16x384xf32>
    %273 = arith.mulf %272, %271 : vector<16x384xf32>
    %cst_85 = arith.constant 1.000000e+00 : f32
    %274 = vector.broadcast %cst_85 : f32 to vector<16x384xf32>
    %275 = arith.addf %274, %273 : vector<16x384xf32>
    %cst_86 = arith.constant 1.000000e+00 : f32
    %276 = vector.broadcast %cst_86 : f32 to vector<16x384xf32>
    %277 = arith.divf %276, %275 : vector<16x384xf32>
    %cst_87 = arith.constant 1.06140542 : f32
    %278 = vector.broadcast %cst_87 : f32 to vector<16x384xf32>
    %279 = arith.mulf %278, %277 : vector<16x384xf32>
    %cst_88 = arith.constant -1.45315206 : f32
    %280 = vector.broadcast %cst_88 : f32 to vector<16x384xf32>
    %281 = arith.addf %279, %280 : vector<16x384xf32>
    %282 = arith.mulf %281, %277 : vector<16x384xf32>
    %cst_89 = arith.constant 1.42141378 : f32
    %283 = vector.broadcast %cst_89 : f32 to vector<16x384xf32>
    %284 = arith.addf %282, %283 : vector<16x384xf32>
    %285 = arith.mulf %284, %277 : vector<16x384xf32>
    %cst_90 = arith.constant -0.284496725 : f32
    %286 = vector.broadcast %cst_90 : f32 to vector<16x384xf32>
    %287 = arith.addf %285, %286 : vector<16x384xf32>
    %288 = arith.mulf %287, %277 : vector<16x384xf32>
    %cst_91 = arith.constant 0.254829586 : f32
    %289 = vector.broadcast %cst_91 : f32 to vector<16x384xf32>
    %290 = arith.addf %288, %289 : vector<16x384xf32>
    %291 = arith.mulf %290, %277 : vector<16x384xf32>
    %cst_92 = arith.constant 0.000000e+00 : f32
    %292 = vector.broadcast %cst_92 : f32 to vector<16x384xf32>
    %293 = arith.subf %292, %271 : vector<16x384xf32>
    %294 = arith.mulf %293, %271 : vector<16x384xf32>
    %295 = math.exp %294 : vector<16x384xf32>
    %296 = arith.mulf %291, %295 : vector<16x384xf32>
    %cst_93 = arith.constant 1.000000e+00 : f32
    %297 = vector.broadcast %cst_93 : f32 to vector<16x384xf32>
    %298 = arith.subf %297, %296 : vector<16x384xf32>
    %cst_94 = arith.constant 0.000000e+00 : f32
    %299 = vector.broadcast %cst_94 : f32 to vector<16x384xf32>
    %300 = arith.cmpf oge, %270, %299 : vector<16x384xf32>
    %cst_95 = arith.constant 0.000000e+00 : f32
    %301 = vector.broadcast %cst_95 : f32 to vector<16x384xf32>
    %302 = arith.subf %301, %298 : vector<16x384xf32>
    %303 = arith.select %300, %298, %302 : vector<16x384xi1>, vector<16x384xf32>
    %cst_96 = arith.constant 1.000000e+00 : f32
    %304 = vector.broadcast %cst_96 : f32 to vector<16x384xf32>
    %305 = arith.addf %304, %303 : vector<16x384xf32>
    %306 = arith.mulf %268, %305 : vector<16x384xf32>
    %c0_97 = arith.constant 0 : index
    %c0_98 = arith.constant 0 : index
    %307 = vector.load %arg11[%c0_97, %c0_98] : memref<384x128xf32, #tpu.memory_space<vmem>>, vector<384x128xf32>
    %308 = arith.truncf %306 : vector<16x384xf32> to vector<16x384xbf16>
    %309 = arith.truncf %307 : vector<384x128xf32> to vector<384x128xbf16>
    %cst_99 = arith.constant dense<0.000000e+00> : vector<16x128xf32>
    %310 = tpu.matmul %308, %309, %cst_99 {dimension_numbers = #tpu.dot_dimension_numbers<[1], [0], [0], [1], [0, 0, 1, 1], [], []>} : vector<16x384xbf16>, vector<384x128xbf16>, vector<16x128xf32> -> vector<16x128xf32>
    %c0_100 = arith.constant 0 : index
    %c0_101 = arith.constant 0 : index
    %311 = vector.load %arg12[%c0_100, %c0_101] : memref<1x128xf32, #tpu.memory_space<vmem>>, vector<1x128xf32>
    %312 = vector.broadcast %311 : vector<1x128xf32> to vector<16x128xf32>
    %313 = arith.addf %310, %312 : vector<16x128xf32>
    %314 = arith.addf %313, %233 : vector<16x128xf32>
    %c0_102 = arith.constant 0 : index
    %c0_103 = arith.constant 0 : index
    %c0_104 = arith.constant 0 : index
    %315 = vector.load %arg13[%c0_102, %c0_103, %c0_104] : memref<1x16x128xf32, #tpu.memory_space<vmem>>, vector<1x16x128xf32>
    %316 = vector.shape_cast %315 : vector<1x16x128xf32> to vector<16x128xf32>
    %317 = vector.shape_cast %314 : vector<16x128xf32> to vector<1x16x128xf32>
    tpu.vector_store %arg13[%c0_102, %c0_103, %c0_104], %317 {strides = array<i32>} : memref<1x16x128xf32, #tpu.memory_space<vmem>>, vector<1x16x128xf32>,
    return
  }
  func.func @transform_0(%arg0: i32) -> (i32, i32, i32) {
    %c0_i32 = arith.constant 0 : i32
    %c0_i32_0 = arith.constant 0 : i32
    %c0_i32_1 = arith.constant 0 : i32
    return %arg0, %c0_i32, %c0_i32_0 : i32, i32, i32
  }
  func.func @transform_1(%arg0: i32) -> (i32, i32) {
    %c0_i32 = arith.constant 0 : i32
    %c0_i32_0 = arith.constant 0 : i32
    %c0_i32_1 = arith.constant 0 : i32
    return %c0_i32, %c0_i32_0 : i32, i32
  }
  func.func @transform_2(%arg0: i32) -> (i32, i32) {
    %c0_i32 = arith.constant 0 : i32
    %c0_i32_0 = arith.constant 0 : i32
    %c0_i32_1 = arith.constant 0 : i32
    return %c0_i32, %c0_i32_0 : i32, i32
  }
  func.func @transform_3(%arg0: i32) -> (i32, i32) {
    %c0_i32 = arith.constant 0 : i32
    %c0_i32_0 = arith.constant 0 : i32
    %c0_i32_1 = arith.constant 0 : i32
    return %c0_i32, %c0_i32_0 : i32, i32
  }
  func.func @transform_4(%arg0: i32) -> (i32, i32) {
    %c0_i32 = arith.constant 0 : i32
    %c0_i32_0 = arith.constant 0 : i32
    %c0_i32_1 = arith.constant 0 : i32
    return %c0_i32, %c0_i32_0 : i32, i32
  }
  func.func @transform_5(%arg0: i32) -> (i32, i32) {
    %c0_i32 = arith.constant 0 : i32
    %c0_i32_0 = arith.constant 0 : i32
    %c0_i32_1 = arith.constant 0 : i32
    return %c0_i32, %c0_i32_0 : i32, i32
  }
  func.func @transform_6(%arg0: i32) -> (i32, i32) {
    %c0_i32 = arith.constant 0 : i32
    %c0_i32_0 = arith.constant 0 : i32
    %c0_i32_1 = arith.constant 0 : i32
    return %c0_i32, %c0_i32_0 : i32, i32
  }
  func.func @transform_7(%arg0: i32) -> (i32, i32) {
    %c0_i32 = arith.constant 0 : i32
    %c0_i32_0 = arith.constant 0 : i32
    %c0_i32_1 = arith.constant 0 : i32
    return %c0_i32, %c0_i32_0 : i32, i32
  }
  func.func @transform_8(%arg0: i32) -> (i32, i32) {
    %c0_i32 = arith.constant 0 : i32
    %c0_i32_0 = arith.constant 0 : i32
    %c0_i32_1 = arith.constant 0 : i32
    return %c0_i32, %c0_i32_0 : i32, i32
  }
  func.func @transform_9(%arg0: i32) -> (i32, i32) {
    %c0_i32 = arith.constant 0 : i32
    %c0_i32_0 = arith.constant 0 : i32
    %c0_i32_1 = arith.constant 0 : i32
    return %c0_i32, %c0_i32_0 : i32, i32
  }
  func.func @transform_10(%arg0: i32) -> (i32, i32) {
    %c0_i32 = arith.constant 0 : i32
    %c0_i32_0 = arith.constant 0 : i32
    %c0_i32_1 = arith.constant 0 : i32
    return %c0_i32, %c0_i32_0 : i32, i32
  }
  func.func @transform_11(%arg0: i32) -> (i32, i32) {
    %c0_i32 = arith.constant 0 : i32
    %c0_i32_0 = arith.constant 0 : i32
    %c0_i32_1 = arith.constant 0 : i32
    return %c0_i32, %c0_i32_0 : i32, i32
  }
  func.func @transform_12(%arg0: i32) -> (i32, i32, i32) {
    %c0_i32 = arith.constant 0 : i32
    %c0_i32_0 = arith.constant 0 : i32
    %c0_i32_1 = arith.constant 0 : i32
    return %arg0, %c0_i32, %c0_i32_0 : i32, i32, i32
  }
}

module attributes {stable_mosaic.version = 11 : i64} {
  func.func @_rebuild_kernel(%arg0: i32, %arg1: memref<32x128xf32, #tpu.memory_space<vmem>>, %arg2: memref<1x128xf32, #tpu.memory_space<vmem>>, %arg3: memref<1x128xf32, #tpu.memory_space<vmem>>, %arg4: memref<1x128xf32, #tpu.memory_space<vmem>>, %arg5: memref<1x128xf32, #tpu.memory_space<vmem>>, %arg6: memref<128x128xf32, #tpu.memory_space<vmem>>, %arg7: memref<1x128xf32, #tpu.memory_space<vmem>>, %arg8: memref<32x128xf32, #tpu.memory_space<vmem>>) attributes {dimension_semantics = [#tpu.dimension_semantics<parallel>], iteration_bounds = array<i64: 1>, scalar_prefetch = 0 : i64, scratch_operands = 0 : i64, tpu.core_type = #tpu.core_type<tc>, window_params = [{transform_indices = @transform_0, window_bounds = array<i64: 32, 128>}, {pipeline_mode = #tpu.pipeline_mode<synchronous>, transform_indices = @transform_1, window_bounds = array<i64: 1, 128>}, {pipeline_mode = #tpu.pipeline_mode<synchronous>, transform_indices = @transform_2, window_bounds = array<i64: 1, 128>}, {pipeline_mode = #tpu.pipeline_mode<synchronous>, transform_indices = @transform_3, window_bounds = array<i64: 1, 128>}, {pipeline_mode = #tpu.pipeline_mode<synchronous>, transform_indices = @transform_4, window_bounds = array<i64: 1, 128>}, {pipeline_mode = #tpu.pipeline_mode<synchronous>, transform_indices = @transform_5, window_bounds = array<i64: 128, 128>}, {pipeline_mode = #tpu.pipeline_mode<synchronous>, transform_indices = @transform_6, window_bounds = array<i64: 1, 128>}, {transform_indices = @transform_7, window_bounds = array<i64: 32, 128>}]} {
    %c0 = arith.constant 0 : index
    %c0_0 = arith.constant 0 : index
    %0 = vector.load %arg1[%c0, %c0_0] : memref<32x128xf32, #tpu.memory_space<vmem>>, vector<32x128xf32>
    %c0_1 = arith.constant 0 : index
    %c0_2 = arith.constant 0 : index
    %1 = vector.load %arg2[%c0_1, %c0_2] : memref<1x128xf32, #tpu.memory_space<vmem>>, vector<1x128xf32>
    %c0_3 = arith.constant 0 : index
    %c0_4 = arith.constant 0 : index
    %2 = vector.load %arg3[%c0_3, %c0_4] : memref<1x128xf32, #tpu.memory_space<vmem>>, vector<1x128xf32>
    %cst = arith.constant dense<0.000000e+00> : vector<32xf32>
    %3 = vector.multi_reduction <add>, %0, %cst [1] : vector<32x128xf32> to vector<32xf32>
    %4 = vector.shape_cast %3 : vector<32xf32> to vector<32x1xf32>
    %cst_5 = arith.constant 0.010416667 : f32
    %5 = vector.broadcast %cst_5 : f32 to vector<32x1xf32>
    %6 = arith.mulf %4, %5 : vector<32x1xf32>
    %7 = arith.mulf %0, %0 : vector<32x128xf32>
    %cst_6 = arith.constant dense<0.000000e+00> : vector<32xf32>
    %8 = vector.multi_reduction <add>, %7, %cst_6 [1] : vector<32x128xf32> to vector<32xf32>
    %9 = vector.shape_cast %8 : vector<32xf32> to vector<32x1xf32>
    %cst_7 = arith.constant 0.010416667 : f32
    %10 = vector.broadcast %cst_7 : f32 to vector<32x1xf32>
    %11 = arith.mulf %9, %10 : vector<32x1xf32>
    %12 = arith.mulf %6, %6 : vector<32x1xf32>
    %13 = arith.subf %11, %12 : vector<32x1xf32>
    %cst_8 = arith.constant 0.000000e+00 : f32
    %14 = vector.broadcast %cst_8 : f32 to vector<32x1xf32>
    %15 = arith.maximumf %13, %14 : vector<32x1xf32>
    %16 = vector.broadcast %6 : vector<32x1xf32> to vector<32x128xf32>
    %17 = arith.subf %0, %16 : vector<32x128xf32>
    %cst_9 = arith.constant 9.99999974E-6 : f32
    %18 = vector.broadcast %cst_9 : f32 to vector<32x1xf32>
    %19 = arith.addf %15, %18 : vector<32x1xf32>
    %20 = math.rsqrt %19 : vector<32x1xf32>
    %21 = vector.broadcast %20 : vector<32x1xf32> to vector<32x128xf32>
    %22 = arith.mulf %17, %21 : vector<32x128xf32>
    %23 = vector.broadcast %1 : vector<1x128xf32> to vector<32x128xf32>
    %24 = arith.mulf %22, %23 : vector<32x128xf32>
    %25 = vector.broadcast %2 : vector<1x128xf32> to vector<32x128xf32>
    %26 = arith.addf %24, %25 : vector<32x128xf32>
    %c0_10 = arith.constant 0 : index
    %c0_11 = arith.constant 0 : index
    %27 = vector.load %arg4[%c0_10, %c0_11] : memref<1x128xf32, #tpu.memory_space<vmem>>, vector<1x128xf32>
    %c0_12 = arith.constant 0 : index
    %c0_13 = arith.constant 0 : index
    %28 = vector.load %arg5[%c0_12, %c0_13] : memref<1x128xf32, #tpu.memory_space<vmem>>, vector<1x128xf32>
    %cst_14 = arith.constant dense<0.000000e+00> : vector<32xf32>
    %29 = vector.multi_reduction <add>, %26, %cst_14 [1] : vector<32x128xf32> to vector<32xf32>
    %30 = vector.shape_cast %29 : vector<32xf32> to vector<32x1xf32>
    %cst_15 = arith.constant 0.010416667 : f32
    %31 = vector.broadcast %cst_15 : f32 to vector<32x1xf32>
    %32 = arith.mulf %30, %31 : vector<32x1xf32>
    %33 = arith.mulf %26, %26 : vector<32x128xf32>
    %cst_16 = arith.constant dense<0.000000e+00> : vector<32xf32>
    %34 = vector.multi_reduction <add>, %33, %cst_16 [1] : vector<32x128xf32> to vector<32xf32>
    %35 = vector.shape_cast %34 : vector<32xf32> to vector<32x1xf32>
    %cst_17 = arith.constant 0.010416667 : f32
    %36 = vector.broadcast %cst_17 : f32 to vector<32x1xf32>
    %37 = arith.mulf %35, %36 : vector<32x1xf32>
    %38 = arith.mulf %32, %32 : vector<32x1xf32>
    %39 = arith.subf %37, %38 : vector<32x1xf32>
    %cst_18 = arith.constant 0.000000e+00 : f32
    %40 = vector.broadcast %cst_18 : f32 to vector<32x1xf32>
    %41 = arith.maximumf %39, %40 : vector<32x1xf32>
    %42 = vector.broadcast %32 : vector<32x1xf32> to vector<32x128xf32>
    %43 = arith.subf %26, %42 : vector<32x128xf32>
    %cst_19 = arith.constant 9.99999974E-6 : f32
    %44 = vector.broadcast %cst_19 : f32 to vector<32x1xf32>
    %45 = arith.addf %41, %44 : vector<32x1xf32>
    %46 = math.rsqrt %45 : vector<32x1xf32>
    %47 = vector.broadcast %46 : vector<32x1xf32> to vector<32x128xf32>
    %48 = arith.mulf %43, %47 : vector<32x128xf32>
    %49 = vector.broadcast %27 : vector<1x128xf32> to vector<32x128xf32>
    %50 = arith.mulf %48, %49 : vector<32x128xf32>
    %51 = vector.broadcast %28 : vector<1x128xf32> to vector<32x128xf32>
    %52 = arith.addf %50, %51 : vector<32x128xf32>
    %c0_20 = arith.constant 0 : index
    %c0_21 = arith.constant 0 : index
    %53 = vector.load %arg6[%c0_20, %c0_21] : memref<128x128xf32, #tpu.memory_space<vmem>>, vector<128x128xf32>
    %54 = arith.truncf %52 : vector<32x128xf32> to vector<32x128xbf16>
    %55 = arith.truncf %53 : vector<128x128xf32> to vector<128x128xbf16>
    %cst_22 = arith.constant dense<0.000000e+00> : vector<32x128xf32>
    %56 = tpu.matmul %54, %55, %cst_22 {dimension_numbers = #tpu.dot_dimension_numbers<[1], [0], [0], [1], [0, 0, 1, 1], [], []>} : vector<32x128xbf16>, vector<128x128xbf16>, vector<32x128xf32> -> vector<32x128xf32>
    %c0_23 = arith.constant 0 : index
    %c0_24 = arith.constant 0 : index
    %57 = vector.load %arg7[%c0_23, %c0_24] : memref<1x128xf32, #tpu.memory_space<vmem>>, vector<1x128xf32>
    %58 = vector.broadcast %57 : vector<1x128xf32> to vector<32x128xf32>
    %59 = arith.addf %56, %58 : vector<32x128xf32>
    %c0_25 = arith.constant 0 : index
    %c0_26 = arith.constant 0 : index
    %60 = vector.load %arg8[%c0_25, %c0_26] : memref<32x128xf32, #tpu.memory_space<vmem>>, vector<32x128xf32>
    tpu.vector_store %arg8[%c0_25, %c0_26], %59 {strides = array<i32>} : memref<32x128xf32, #tpu.memory_space<vmem>>, vector<32x128xf32>,
    return
  }
  func.func @transform_0(%arg0: i32) -> (i32, i32) {
    %c0_i32 = arith.constant 0 : i32
    %c0_i32_0 = arith.constant 0 : i32
    return %arg0, %c0_i32 : i32, i32
  }
  func.func @transform_1(%arg0: i32) -> (i32, i32) {
    %c0_i32 = arith.constant 0 : i32
    %c0_i32_0 = arith.constant 0 : i32
    %c0_i32_1 = arith.constant 0 : i32
    return %c0_i32, %c0_i32_0 : i32, i32
  }
  func.func @transform_2(%arg0: i32) -> (i32, i32) {
    %c0_i32 = arith.constant 0 : i32
    %c0_i32_0 = arith.constant 0 : i32
    %c0_i32_1 = arith.constant 0 : i32
    return %c0_i32, %c0_i32_0 : i32, i32
  }
  func.func @transform_3(%arg0: i32) -> (i32, i32) {
    %c0_i32 = arith.constant 0 : i32
    %c0_i32_0 = arith.constant 0 : i32
    %c0_i32_1 = arith.constant 0 : i32
    return %c0_i32, %c0_i32_0 : i32, i32
  }
  func.func @transform_4(%arg0: i32) -> (i32, i32) {
    %c0_i32 = arith.constant 0 : i32
    %c0_i32_0 = arith.constant 0 : i32
    %c0_i32_1 = arith.constant 0 : i32
    return %c0_i32, %c0_i32_0 : i32, i32
  }
  func.func @transform_5(%arg0: i32) -> (i32, i32) {
    %c0_i32 = arith.constant 0 : i32
    %c0_i32_0 = arith.constant 0 : i32
    %c0_i32_1 = arith.constant 0 : i32
    return %c0_i32, %c0_i32_0 : i32, i32
  }
  func.func @transform_6(%arg0: i32) -> (i32, i32) {
    %c0_i32 = arith.constant 0 : i32
    %c0_i32_0 = arith.constant 0 : i32
    %c0_i32_1 = arith.constant 0 : i32
    return %c0_i32, %c0_i32_0 : i32, i32
  }
  func.func @transform_7(%arg0: i32) -> (i32, i32) {
    %c0_i32 = arith.constant 0 : i32
    %c0_i32_0 = arith.constant 0 : i32
    return %arg0, %c0_i32 : i32, i32
  }
}

</mosaic_0001>

<llo_original>
// kernel: transformer_layer_forward.4
$region0: #{transformer_layer_forward.4}
  #allocation0 [shape = 'u32[]', space=smem, size = 0x4, offset = 0x4, fixed_abs, tag = 'smem constant byte address 0x4 - core index']
  #allocation1 [shape = 'u32[144,128]{1,0:T(1,128)}', space=vmem, size = 0x12000, scoped, tag = 'internal scratch']
  %s0 = inlined_call_operand.hbm [shape: f32[2,16,64], index: 0, kind: input, shape index: {}]
  %s1 = inlined_call_operand.hbm [shape: f32[64,128], index: 1, kind: input, shape index: {}]
  %s2 = inlined_call_operand.hbm [shape: f32[1,128], index: 2, kind: input, shape index: {}]
  %s3 = inlined_call_operand.hbm [shape: f32[1,128], index: 3, kind: input, shape index: {}]
  %s4 = inlined_call_operand.hbm [shape: f32[1,128], index: 4, kind: input, shape index: {}]
  %s5 = inlined_call_operand.hbm [shape: f32[16,128], index: 5, kind: input, shape index: {}]
  %s6 = inlined_call_operand.hbm [shape: f32[2,16,128], index: 6, kind: output, shape index: {}]
  %s7 = sld [smem:[#allocation0]]
  $region81: #{transformer_layer_forward.4} parent=0
    _
  %s9 = ssub.s32 1, %s7
  %s10 = scalar_select 0, %s9, %s7
  $region1: #{transformer_layer_forward.4} parent=0
    #allocation2 [shape = 'u8[16384]{0}', space=vmem, size = 0x4000, scoped, tag = 'input window, operand 0']
    #allocation3 [shape = 's32[2]{0}', space=sflag, size = 0x8, scoped, tag = 'scoped memory for transformer_layer_forward.4']
    #allocation4 [shape = 's32[2]{0}', space=sflag, size = 0x8, scoped, tag = 'scoped memory for transformer_layer_forward.4']
    #allocation5 [shape = 'u8[32768]{0}', space=vmem, size = 0x8000, scoped, tag = 'input window, operand 1, single buffered']
    #allocation6 [shape = 's32[1]{0}', space=sflag, size = 0x4, scoped, tag = 'scoped memory for transformer_layer_forward.4']
    #allocation7 [shape = 'u8[512]{0}', space=vmem, size = 0x400, scoped, tag = 'input window, operand 2, single buffered']
    #allocation8 [shape = 'u8[512]{0}', space=vmem, size = 0x400, scoped, tag = 'input window, operand 3, single buffered']
    #allocation9 [shape = 's32[1]{0}', space=sflag, size = 0x4, scoped, tag = 'scoped memory for transformer_layer_forward.4']
    #allocation10 [shape = 'u8[512]{0}', space=vmem, size = 0x400, scoped, tag = 'input window, operand 4, single buffered']
    #allocation11 [shape = 'u8[8192]{0}', space=vmem, size = 0x2000, scoped, tag = 'input window, operand 5, single buffered']
    #allocation12 [shape = 's32[1]{0}', space=sflag, size = 0x4, scoped, tag = 'scoped memory for transformer_layer_forward.4']
    #allocation13 [shape = 'u8[16384]{0}', space=vmem, size = 0x4000, scoped, tag = 'output window, operand 0']
    %11 = vsyncpa [#allocation3], 0
    %s12 = scalar_lea.sflag [#allocation3], 1
    %13 = vsyncpa %s12, 0
    %14 = vsyncpa [#allocation6], 0
    %15 = vsyncpa [#allocation9], 0
    %16 = vsyncpa [#allocation12], 0
    %17 = vsyncpa [#allocation4], 0
    %s18 = scalar_lea.sflag [#allocation4], 1
    %19 = vsyncpa %s18, 0
    loop: start=0, step=1, limit=4
    $region2: #{transformer_layer_forward.4} parent=1 // loop_pre_header
      _
    $region3: #{transformer_layer_forward.4} parent=1 // loop_header
      %s21 = sphi 0, %s25
      %p22 = scmp.ge.s32.totalorder %s21, 4
      %s28 = sphi 0, %s40
      %s29 = sphi 0, %s36
      %s30 = sphi 0, %s28
      %s31 = sphi 0, %s29
      %s32 = sphi 0, %s30
      %s33 = sphi 0, %s31
      %s45 = sphi 0, %s47
      %s48 = sphi 0, %s45
      %s49 = sphi 0, %s48
      %s65 = sphi 0, %s49
      %s69 = sphi 0, %s69
      %s71 = sphi 0, %s69
      %s72 = sphi 0, %s71
      %s86 = sphi 0, %s72
      %s90 = sphi 0, %s90
      %s92 = sphi 0, %s90
      %s93 = sphi 0, %s92
      %s107 = sphi 0, %s93
      %s111 = sphi 0, %s111
      %s113 = sphi 0, %s111
      %s114 = sphi 0, %s113
      %s128 = sphi 0, %s114
      %s132 = sphi 0, %s132
      %s134 = sphi 0, %s132
      %s135 = sphi 0, %s134
      %s149 = sphi 0, %s135
      %s155 = sphi 0, %s157
      %s158 = sphi 0, %s155
      %s159 = sphi 0, %s158
      %s175 = sphi 0, %s159
      %s183 = sphi 0, %s185
      %s186 = sphi 0, %s183
      %s187 = sphi 0, %s186
      %s203 = sphi 0, %s187
    $region4: #{transformer_layer_forward.4} parent=1 // loop_header_branch
      %24 = sbr.rel (%p22) target = $region8
    $region5: #{transformer_layer_forward.4} parent=1 // loop_body
      %s26 = ssub.s32 %s21, 1
      %s27 = ssub.s32 %s21, 2
      %s34 = sadd.s32 1, %s29
      %p35 = scmp.ge.s32.totalorder %s34, 1
      %s36 = scalar_select %p35, 0, %s34
      %s37 = sadd.s32 1, %s28
      %s38 = scalar_select %p35, %s37, %s28
      %p39 = scmp.ge.s32.totalorder %s38, 2
      %s40 = scalar_select %p39, 0, %s38
      %s41 = ssub.s32 %s28, %s40
      %s42 = ssub.s32 %s29, %s36
      %s43 = sor.u32 %s41, %s42
      %p44 = scmp.eq.s32.totalorder %s43, 0
      %s46 = sadd.s32 %s45, 1
      %s47 = scalar_select %p44, %s45, %s46
      %p50 = pneg %p44
      %p51 = scmp.eq.s32.totalorder %s21, 1
      %p52 = por %p50, %p51
      %p53 = scmp.ne.s32.totalorder %s45, %s48
      %p54 = scmp.eq.s32.totalorder %s21, 0
      %p55 = por %p53, %p54
      %p56 = scmp.ne.s32.totalorder %s45, %s48
      %p57 = scmp.eq.s32.totalorder %s26, 1
      %p58 = por %p56, %p57
      %p59 = scmp.ne.s32.totalorder %s48, %s49
      %p60 = scmp.eq.s32.totalorder %s26, 0
      %p61 = por %p59, %p60
      %p62 = scmp.ne.s32.totalorder %s48, %s49
      %p63 = scmp.eq.s32.totalorder %s27, 1
      %p64 = por %p62, %p63
      %p66 = scmp.ne.s32.totalorder %s49, %s65
      %p67 = scmp.eq.s32.totalorder %s27, 0
      %p68 = por %p66, %p67
      %s70 = sadd.s32 %s69, 1
      %p73 = scmp.eq.s32.totalorder %s21, 1
      %p74 = scmp.ne.s32.totalorder %s69, %s71
      %p75 = scmp.eq.s32.totalorder %s21, 0
      %p76 = por %p74, %p75
      %p77 = scmp.ne.s32.totalorder %s69, %s71
      %p78 = scmp.eq.s32.totalorder %s26, 1
      %p79 = por %p77, %p78
      %p80 = scmp.ne.s32.totalorder %s71, %s72
      %p81 = scmp.eq.s32.totalorder %s26, 0
      %p82 = por %p80, %p81
      %p83 = scmp.ne.s32.totalorder %s71, %s72
      %p84 = scmp.eq.s32.totalorder %s27, 1
      %p85 = por %p83, %p84
      %p87 = scmp.ne.s32.totalorder %s72, %s86
      %p88 = scmp.eq.s32.totalorder %s27, 0
      %p89 = por %p87, %p88
      %s91 = sadd.s32 %s90, 1
      %p94 = scmp.eq.s32.totalorder %s21, 1
      %p95 = scmp.ne.s32.totalorder %s90, %s92
      %p96 = scmp.eq.s32.totalorder %s21, 0
      %p97 = por %p95, %p96
      %p98 = scmp.ne.s32.totalorder %s90, %s92
      %p99 = scmp.eq.s32.totalorder %s26, 1
      %p100 = por %p98, %p99
      %p101 = scmp.ne.s32.totalorder %s92, %s93
      %p102 = scmp.eq.s32.totalorder %s26, 0
      %p103 = por %p101, %p102
      %p104 = scmp.ne.s32.totalorder %s92, %s93
      %p105 = scmp.eq.s32.totalorder %s27, 1
      %p106 = por %p104, %p105
      %p108 = scmp.ne.s32.totalorder %s93, %s107
      %p109 = scmp.eq.s32.totalorder %s27, 0
      %p110 = por %p108, %p109
      %s112 = sadd.s32 %s111, 1
      %p115 = scmp.eq.s32.totalorder %s21, 1
      %p116 = scmp.ne.s32.totalorder %s111, %s113
      %p117 = scmp.eq.s32.totalorder %s21, 0
      %p118 = por %p116, %p117
      %p119 = scmp.ne.s32.totalorder %s111, %s113
      %p120 = scmp.eq.s32.totalorder %s26, 1
      %p121 = por %p119, %p120
      %p122 = scmp.ne.s32.totalorder %s113, %s114
      %p123 = scmp.eq.s32.totalorder %s26, 0
      %p124 = por %p122, %p123
      %p125 = scmp.ne.s32.totalorder %s113, %s114
      %p126 = scmp.eq.s32.totalorder %s27, 1
      %p127 = por %p125, %p126
      %p129 = scmp.ne.s32.totalorder %s114, %s128
      %p130 = scmp.eq.s32.totalorder %s27, 0
      %p131 = por %p129, %p130
      %s133 = sadd.s32 %s132, 1
      %p136 = scmp.eq.s32.totalorder %s21, 1
      %p137 = scmp.ne.s32.totalorder %s132, %s134
      %p138 = scmp.eq.s32.totalorder %s21, 0
      %p139 = por %p137, %p138
      %p140 = scmp.ne.s32.totalorder %s132, %s134
      %p141 = scmp.eq.s32.totalorder %s26, 1
      %p142 = por %p140, %p141
      %p143 = scmp.ne.s32.totalorder %s134, %s135
      %p144 = scmp.eq.s32.totalorder %s26, 0
      %p145 = por %p143, %p144
      %p146 = scmp.ne.s32.totalorder %s134, %s135
      %p147 = scmp.eq.s32.totalorder %s27, 1
      %p148 = por %p146, %p147
      %p150 = scmp.ne.s32.totalorder %s135, %s149
      %p151 = scmp.eq.s32.totalorder %s27, 0
      %p152 = por %p150, %p151
      %s153 = ssub.s32 %s29, %s36
      %p154 = scmp.eq.s32.totalorder %s153, 0
      %s156 = sadd.s32 %s155, 1
      %s157 = scalar_select %p154, %s155, %s156
      %p160 = pneg %p154
      %p161 = scmp.eq.s32.totalorder %s21, 1
      %p162 = por %p160, %p161
      %p163 = scmp.ne.s32.totalorder %s155, %s158
      %p164 = scmp.eq.s32.totalorder %s21, 0
      %p165 = por %p163, %p164
      %p166 = scmp.ne.s32.totalorder %s155, %s158
      %p167 = scmp.eq.s32.totalorder %s26, 1
      %p168 = por %p166, %p167
      %p169 = scmp.ne.s32.totalorder %s158, %s159
      %p170 = scmp.eq.s32.totalorder %s26, 0
      %p171 = por %p169, %p170
      %p172 = scmp.ne.s32.totalorder %s158, %s159
      %p173 = scmp.eq.s32.totalorder %s27, 1
      %p174 = por %p172, %p173
      %p176 = scmp.ne.s32.totalorder %s159, %s175
      %p177 = scmp.eq.s32.totalorder %s27, 0
      %p178 = por %p176, %p177
      %s179 = ssub.s32 %s28, %s40
      %s180 = ssub.s32 %s29, %s36
      %s181 = sor.u32 %s179, %s180
      %p182 = scmp.eq.s32.totalorder %s181, 0
      %s184 = sadd.s32 %s183, 1
      %s185 = scalar_select %p182, %s183, %s184
      %p188 = pneg %p182
      %p189 = scmp.eq.s32.totalorder %s21, 1
      %p190 = por %p188, %p189
      %p191 = scmp.ne.s32.totalorder %s183, %s186
      %p192 = scmp.eq.s32.totalorder %s21, 0
      %p193 = por %p191, %p192
      %p194 = scmp.ne.s32.totalorder %s183, %s186
      %p195 = scmp.eq.s32.totalorder %s26, 1
      %p196 = por %p194, %p195
      %p197 = scmp.ne.s32.totalorder %s186, %s187
      %p198 = scmp.eq.s32.totalorder %s26, 0
      %p199 = por %p197, %p198
      %p200 = scmp.ne.s32.totalorder %s186, %s187
      %p201 = scmp.eq.s32.totalorder %s27, 1
      %p202 = por %p200, %p201
      %p204 = scmp.ne.s32.totalorder %s187, %s203
      %p205 = scmp.eq.s32.totalorder %s27, 0
      %p206 = por %p204, %p205
      %p207 = scmp.le.s32.totalorder 1, %s21
      %p208 = scmp.lt.s32.totalorder %s21, 3
      %p209 = pnand %p207, %p208
      %p210 = pneg %p209
      // Predicated region
      $region9: #{transformer_layer_forward.4} parent=5 // pred_check
        _
      $region10: #{transformer_layer_forward.4} parent=5 // pred_check_branch
        %212 = sbr.rel (%p209) target = $region12
      $region11: #{transformer_layer_forward.4} parent=5 // pred_region
        %s213 = ssub.s32 %s21, 1
        // Predicated region
        $region13: #{transformer_layer_forward.4} parent=11 // pred_check
          %p214 = pneg %p82
        $region14: #{transformer_layer_forward.4} parent=11 // pred_check_branch
          %216 = sbr.rel (%p214) target = $region16
        $region15: #{transformer_layer_forward.4} parent=11 // pred_region
          %s218 = ssub.s32 1024, 1024
          %219 = vsyncadd [#allocation6], %s218
          %s220 = sshll.u32 [#allocation5], 4
          %s221 = int_to_ptr.vmem [resolvable:$true] %s220
          %226 = dma.hbm_to_vmem [thread:$0]  %s1, 1024, %s221, [#allocation6], 128, 128, 8
        $region16: #{transformer_layer_forward.4} parent=11 // pred_fallthru
          _
        // Predicated region
        $region17: #{transformer_layer_forward.4} parent=11 // pred_check
          %p227 = pneg %p103
        $region18: #{transformer_layer_forward.4} parent=11 // pred_check_branch
          %229 = sbr.rel (%p227) target = $region20
        $region19: #{transformer_layer_forward.4} parent=11 // pred_region
          %s231 = ssub.s32 16, 16
          %232 = vsyncadd [#allocation6], %s231
          %s234 = sshll.u32 [#allocation7], 4
          %s235 = int_to_ptr.vmem [resolvable:$true] %s234
          %237 = dma.hbm_to_vmem [thread:$0]  %s2, 16, %s235, [#allocation6]
        $region20: #{transformer_layer_forward.4} parent=11 // pred_fallthru
          _
        // Predicated region
        $region21: #{transformer_layer_forward.4} parent=11 // pred_check
          %p238 = pneg %p124
        $region22: #{transformer_layer_forward.4} parent=11 // pred_check_branch
          %240 = sbr.rel (%p238) target = $region24
        $region23: #{transformer_layer_forward.4} parent=11 // pred_region
          %s242 = ssub.s32 16, 16
          %243 = vsyncadd [#allocation9], %s242
          %s245 = sshll.u32 [#allocation8], 4
          %s246 = int_to_ptr.vmem [resolvable:$true] %s245
          %248 = dma.hbm_to_vmem [thread:$0]  %s3, 16, %s246, [#allocation9]
        $region24: #{transformer_layer_forward.4} parent=11 // pred_fallthru
          _
        // Predicated region
        $region25: #{transformer_layer_forward.4} parent=11 // pred_check
          %p249 = pneg %p145
        $region26: #{transformer_layer_forward.4} parent=11 // pred_check_branch
          %251 = sbr.rel (%p249) target = $region28
        $region27: #{transformer_layer_forward.4} parent=11 // pred_region
          %s253 = ssub.s32 16, 16
          %254 = vsyncadd [#allocation9], %s253
          %s256 = sshll.u32 [#allocation10], 4
          %s257 = int_to_ptr.vmem [resolvable:$true] %s256
          %259 = dma.hbm_to_vmem [thread:$0]  %s4, 16, %s257, [#allocation9]
        $region28: #{transformer_layer_forward.4} parent=11 // pred_fallthru
          _
        // Predicated region
        $region29: #{transformer_layer_forward.4} parent=11 // pred_check
          %p260 = pneg %p171
        $region30: #{transformer_layer_forward.4} parent=11 // pred_check_branch
          %262 = sbr.rel (%p260) target = $region32
        $region31: #{transformer_layer_forward.4} parent=11 // pred_region
          %s263 = smul.u32 2, %s31
          %s265 = ssub.s32 256, 256
          %266 = vsyncadd [#allocation12], %s265
          %s267 = smul.addr %s263, 128
          %s268 = scalar_lea.hbm %s5, %s267
          %s269 = sshll.u32 [#allocation11], 4
          %s270 = int_to_ptr.vmem [resolvable:$true] %s269
          %275 = dma.hbm_to_vmem [thread:$0]  %s268, 256, %s270, [#allocation12], 128, 128, 8
        $region32: #{transformer_layer_forward.4} parent=11 // pred_fallthru
          _
      $region12: #{transformer_layer_forward.4} parent=5 // pred_fallthru
        _
      %p276 = scmp.lt.s32.totalorder %s21, 2
      // Predicated region
      $region33: #{transformer_layer_forward.4} parent=5 // pred_check
        %p277 = pneg %p276
      $region34: #{transformer_layer_forward.4} parent=5 // pred_check_branch
        %279 = sbr.rel (%p277) target = $region36
      $region35: #{transformer_layer_forward.4} parent=5 // pred_region
        // Predicated region
        $region37: #{transformer_layer_forward.4} parent=35 // pred_check
          %p280 = pneg %p55
        $region38: #{transformer_layer_forward.4} parent=35 // pred_check_branch
          %282 = sbr.rel (%p280) target = $region40
        $region39: #{transformer_layer_forward.4} parent=35 // pred_region
          %s283 = sand.u32 %s45, 1
          %s284 = scalar_lea.sflag [#allocation3], %s283
          %s285 = sand.u32 %s45, 1
          %s286 = smul.addr %s285, 16
          %s287 = scalar_lea.vmem [#allocation2], %s286
          %s288 = smul.u32 2, %s29
          %s290 = ssub.s32 256, 256
          %291 = vsyncadd %s284, %s290
          %s292 = smul.addr %s28, 2
          %s293 = sadd.s32 %s288, %s292
          %s294 = smul.addr %s293, 128
          %s295 = scalar_lea.hbm %s0, %s294
          %s296 = sshll.u32 %s287, 4
          %s297 = int_to_ptr.vmem [resolvable:$true] %s296
          %302 = dma.hbm_to_vmem [thread:$0]  %s295, 256, %s297, %s284, 128, 128, 8
        $region40: #{transformer_layer_forward.4} parent=35 // pred_fallthru
          _
      $region36: #{transformer_layer_forward.4} parent=5 // pred_fallthru
        _
      %p303 = scmp.le.s32.totalorder 1, %s21
      %p304 = scmp.lt.s32.totalorder %s21, 3
      %p305 = pnand %p303, %p304
      %p306 = pneg %p305
      // Predicated region
      $region41: #{transformer_layer_forward.4} parent=5 // pred_check
        _
      $region42: #{transformer_layer_forward.4} parent=5 // pred_check_branch
        %308 = sbr.rel (%p305) target = $region44
      $region43: #{transformer_layer_forward.4} parent=5 // pred_region
        %s309 = ssub.s32 %s21, 1
        %s310 = sand.u32 %s48, 1
        %s311 = scalar_lea.sflag [#allocation3], %s310
        %s312 = sand.u32 %s48, 1
        %s313 = smul.addr %s312, 16
        %s314 = scalar_lea.vmem [#allocation2], %s313
        // Predicated region
        $region45: #{transformer_layer_forward.4} parent=43 // pred_check
          %p315 = pneg %p61
        $region46: #{transformer_layer_forward.4} parent=43 // pred_check_branch
          %317 = sbr.rel (%p315) target = $region48
        $region47: #{transformer_layer_forward.4} parent=43 // pred_region
          %318 = dma.done %s311, 256
        $region48: #{transformer_layer_forward.4} parent=43 // pred_fallthru
          _
        // Predicated region
        $region49: #{transformer_layer_forward.4} parent=43 // pred_check
          %p319 = pneg %p82
        $region50: #{transformer_layer_forward.4} parent=43 // pred_check_branch
          %321 = sbr.rel (%p319) target = $region52
        $region51: #{transformer_layer_forward.4} parent=43 // pred_region
          %322 = dma.done [#allocation6], 1024
        $region52: #{transformer_layer_forward.4} parent=43 // pred_fallthru
          _
        // Predicated region
        $region53: #{transformer_layer_forward.4} parent=43 // pred_check
          %p323 = pneg %p103
        $region54: #{transformer_layer_forward.4} parent=43 // pred_check_branch
          %325 = sbr.rel (%p323) target = $region56
        $region55: #{transformer_layer_forward.4} parent=43 // pred_region
          %326 = dma.done [#allocation6], 16
        $region56: #{transformer_layer_forward.4} parent=43 // pred_fallthru
          _
        // Predicated region
        $region57: #{transformer_layer_forward.4} parent=43 // pred_check
          %p327 = pneg %p124
        $region58: #{transformer_layer_forward.4} parent=43 // pred_check_branch
          %329 = sbr.rel (%p327) target = $region60
        $region59: #{transformer_layer_forward.4} parent=43 // pred_region
          %330 = dma.done [#allocation9], 16
        $region60: #{transformer_layer_forward.4} parent=43 // pred_fallthru
          _
        // Predicated region
        $region61: #{transformer_layer_forward.4} parent=43 // pred_check
          %p331 = pneg %p145
        $region62: #{transformer_layer_forward.4} parent=43 // pred_check_branch
          %333 = sbr.rel (%p331) target = $region64
        $region63: #{transformer_layer_forward.4} parent=43 // pred_region
          %334 = dma.done [#allocation9], 16
        $region64: #{transformer_layer_forward.4} parent=43 // pred_fallthru
          _
        // Predicated region
        $region65: #{transformer_layer_forward.4} parent=43 // pred_check
          %p335 = pneg %p171
        $region66: #{transformer_layer_forward.4} parent=43 // pred_check_branch
          %337 = sbr.rel (%p335) target = $region68
        $region67: #{transformer_layer_forward.4} parent=43 // pred_region
          %338 = dma.done [#allocation12], 256
        $region68: #{transformer_layer_forward.4} parent=43 // pred_fallthru
          _
        %s339 = sand.u32 %s48, 1
        %s340 = scalar_lea.sflag [#allocation3], %s339
        %s341 = sand.u32 %s48, 1
        %s342 = smul.addr %s341, 16
        %s343 = scalar_lea.vmem [#allocation2], %s342
        %p344 = pneg %p61
        %p345 = pneg %p58
        %p346 = pneg %p82
        %p347 = pneg %p79
        %p348 = pneg %p103
        %p349 = pneg %p100
        %p350 = pneg %p124
        %p351 = pneg %p121
        %p352 = pneg %p145
        %p353 = pneg %p142
        %p354 = pneg %p171
        %p355 = pneg %p168
        %p356 = pneg %p199
        %p357 = pneg %p196
        %s358 = sand.u32 %s186, 1
        %s359 = scalar_lea.sflag [#allocation4], %s358
        %s360 = sand.u32 %s186, 1
        %s361 = smul.addr %s360, 16
        %s362 = scalar_lea.vmem [#allocation13], %s361
        %s363 = smul.u32 2, %s31
        %s364 = smul.u32 2, %s31
        %s365 = smul.u32 2, %s31
        %v367 = vld [vmem:[%s314] sm:$0xff]
        %v368 = vld [vmem:[%s314 + $0x8] sm:$0xff]
        %v369 = vld [vmem:[#allocation5] sm:$0xff]
        %v370 = vld [vmem:[#allocation5 + $0x8] sm:$0xff]
        %v371 = vld [vmem:[#allocation5 + $0x10] sm:$0xff]
        %v372 = vld [vmem:[#allocation5 + $0x18] sm:$0xff]
        %v373 = vld [vmem:[#allocation5 + $0x20] sm:$0xff]
        %v374 = vld [vmem:[#allocation5 + $0x28] sm:$0xff]
        %v375 = vld [vmem:[#allocation5 + $0x30] sm:$0xff]
        %v376 = vld [vmem:[#allocation5 + $0x38] sm:$0xff]
        %v377 = vpack.c.bf16 %v368, %v367
        %v378 = vpack.c.bf16 %v370, %v369
        %v379 = vpack.c.bf16 %v372, %v371
        %v380 = vpack.c.bf16 %v374, %v373
        %v381 = vpack.c.bf16 %v376, %v375
        %v382 = vld [vmem:[#allocation7] sm:$0x1]
        %v384 = vlaneseq
        %v385 = vshrl.u32 %v384, 7
        %v386 = vsub.s32 0, %v385
        %v387 = vrot.slane %v382, %v386
        %vm389 = vcmask 523264
        %v391 = vsel %vm389, %v377, 0
        %393 = vmatprep.subr.bf16.mxu0 0
        %394 = vmatpush1.bf16.msra.mxu0 %v378
        %395 = vmatprep.subr.bf16.mxu0 0
        %396 = vmatpush1.bf16.msra.mxu0 %v379
        %397 = vmatprep.subr.bf16.mxu0 0
        %398 = vmatpush1.bf16.msra.mxu0 %v380
        %399 = vmatprep.subr.bf16.mxu0 0
        %400 = vmatpush1.bf16.msra.mxu0 %v381
        %401 = vmatprep.subr.bf16.mxu0 0
        %402 = vmatpush1.bf16.msra.mxu0 0
        %403 = vmatprep.subr.bf16.mxu0 0
        %404 = vmatpush1.bf16.msra.mxu0 0
        %405 = vmatprep.subr.bf16.mxu0 0
        %406 = vmatpush1.bf16.msra.mxu0 0
        %407 = vmatprep.subr.bf16.mxu0 0
        %408 = vmatpush1.bf16.msra.mxu0 0
        %409 = vmatprep.subr.bf16.mxu0 0
        %410 = vmatpush1.bf16.msra.mxu0 0
        %411 = vmatprep.subr.bf16.mxu0 0
        %412 = vmatpush1.bf16.msra.mxu0 0
        %413 = vmatprep.subr.bf16.mxu0 0
        %414 = vmatpush1.bf16.msra.mxu0 0
        %415 = vmatprep.subr.bf16.mxu0 0
        %416 = vmatpush1.bf16.msra.mxu0 0
        %417 = vmatprep.subr.bf16.mxu0 0
        %418 = vmatpush1.bf16.msra.mxu0 0
        %419 = vmatprep.subr.bf16.mxu0 0
        %420 = vmatpush1.bf16.msra.mxu0 0
        %421 = vmatprep.subr.bf16.mxu0 0
        %422 = vmatpush1.bf16.msra.mxu0 0
        %423 = vmatprep.subr.bf16.mxu0 0
        %424 = vmatpush1.bf16.msra.mxu0 0
        %425 = vmatprep.mubr.bf16.mxu0 0
        %426 = vmatmul.mubr.bf16.gmra.mrb[0].mxu0 %v391
        %v427 = vpop.f32.mrb[0].mxu0
        %v428 = vadd.f32 %v387, %v427
        %v429 = vpop.f32.mrb[0].mxu0
        %v430 = vpop.f32.mrb[0].mxu0
        %v431 = vadd.f32 %v387, %v430
        %v432 = vpop.f32.mrb[0].mxu0
        %433 = vdwg.mxu0
        %v434 = vld [vmem:[#allocation8] sm:$0x1]
        %v435 = vld [vmem:[#allocation10] sm:$0x1]
        %436 = vadd.xlane.f32.xlu0 %v428
        %v437 = vpop.xlane.xlu0 %436
        %438 = vadd.xlane.f32.xlu0 %v431
        %v439 = vpop.xlane.xlu0 %438
        %v440 = vmul.f32 %v437, 0.010416667
        %v441 = vmul.f32 %v439, 0.010416667
        %v442 = vmul.f32 %v428, %v428
        %v443 = vmul.f32 %v431, %v431
        %444 = vadd.xlane.f32.xlu0 %v442
        %v445 = vpop.xlane.xlu0 %444
        %446 = vadd.xlane.f32.xlu0 %v443
        %v447 = vpop.xlane.xlu0 %446
        %v448 = vmul.f32 %v445, 0.010416667
        %v449 = vmul.f32 %v447, 0.010416667
        %v450 = vmul.f32 %v440, %v440
        %v451 = vmul.f32 %v441, %v441
        %v452 = vsub.f32 %v448, %v450
        %v453 = vsub.f32 %v449, %v451
        %v454 = vmax.f32 %v452, 0.0
        %v455 = vmax.f32 %v453, 0.0
        %v456 = vsub.f32 %v428, %v440
        %v457 = vsub.f32 %v431, %v441
        %v458 = vadd.f32 %v454, 1e-05
        %v459 = vadd.f32 %v455, 1e-05
        %v460 = vrsqrt.pop %v458
        %v461 = vrsqrt.pop %v459
        %v462 = vmul.f32 %v456, %v460
        %v463 = vmul.f32 %v457, %v461
        %v465 = vlaneseq
        %v466 = vshrl.u32 %v465, 7
        %v467 = vsub.s32 0, %v466
        %v468 = vrot.slane %v434, %v467
        %v470 = vmul.f32 %v462, %v468
        %v471 = vmul.f32 %v463, %v468
        %v473 = vlaneseq
        %v474 = vshrl.u32 %v473, 7
        %v475 = vsub.s32 0, %v474
        %v476 = vrot.slane %v435, %v475
        %v478 = vadd.f32 %v470, %v476
        %v479 = vadd.f32 %v471, %v476
        %v480 = vld [vmem:[#allocation11] sm:$0xff]
        %v481 = vld [vmem:[#allocation11 + $0x8] sm:$0xff]
        %v482 = vadd.f32 %v478, %v480
        %v483 = vadd.f32 %v479, %v481
        %484 = vst [vmem:[%s362] sm:$0xff] %v482
        %485 = vst [vmem:[%s362 + $0x8] sm:$0xff] %v483
        %s486 = sand.u32 %s186, 1
        %s487 = scalar_lea.sflag [#allocation4], %s486
        %s488 = sand.u32 %s186, 1
        %s489 = smul.addr %s488, 16
        %s490 = scalar_lea.vmem [#allocation13], %s489
        // Predicated region
        $region69: #{transformer_layer_forward.4} parent=43 // pred_check
          %p491 = pneg %p196
        $region70: #{transformer_layer_forward.4} parent=43 // pred_check_branch
          %493 = sbr.rel (%p491) target = $region72
        $region71: #{transformer_layer_forward.4} parent=43 // pred_region
          %s494 = smul.u32 2, %s31
          %s496 = ssub.s32 256, 256
          %497 = vsyncadd %s487, %s496
          %s498 = smul.addr %s30, 2
          %s499 = sadd.s32 %s494, %s498
          %s500 = smul.addr %s499, 128
          %s501 = scalar_lea.hbm %s6, %s500
          %s502 = sshll.u32 %s490, 4
          %s503 = int_to_ptr.vmem [resolvable:$true] %s502
          %508 = dma.vmem_to_hbm [thread:$0]  %s503, 256, %s501, %s487, 128, 128, 8
        $region72: #{transformer_layer_forward.4} parent=43 // pred_fallthru
          _
      $region44: #{transformer_layer_forward.4} parent=5 // pred_fallthru
        _
      %p509 = scmp.le.s32.totalorder 2, %s21
      // Predicated region
      $region73: #{transformer_layer_forward.4} parent=5 // pred_check
        %p510 = pneg %p509
      $region74: #{transformer_layer_forward.4} parent=5 // pred_check_branch
        %512 = sbr.rel (%p510) target = $region76
      $region75: #{transformer_layer_forward.4} parent=5 // pred_region
        %s513 = ssub.s32 %s21, 2
        // Predicated region
        $region77: #{transformer_layer_forward.4} parent=75 // pred_check
          %p514 = pneg %p202
        $region78: #{transformer_layer_forward.4} parent=75 // pred_check_branch
          %516 = sbr.rel (%p514) target = $region80
        $region79: #{transformer_layer_forward.4} parent=75 // pred_region
          %s517 = sand.u32 %s187, 1
          %s518 = scalar_lea.sflag [#allocation4], %s517
          %s519 = sand.u32 %s187, 1
          %s520 = smul.addr %s519, 16
          %s521 = scalar_lea.vmem [#allocation13], %s520
          %522 = dma.done %s518, 256
        $region80: #{transformer_layer_forward.4} parent=75 // pred_fallthru
          _
      $region76: #{transformer_layer_forward.4} parent=5 // pred_fallthru
        _
    $region6: #{transformer_layer_forward.4} parent=1 // loop_footer
      %s25 = sadd.s32 1, %s21
    $region7: #{transformer_layer_forward.4} parent=1 // loop_footer_branch
      %20 = sbr.rel target = $region3
    $region8: #{transformer_layer_forward.4} parent=1 // loop_exit
      _
    %523 = vsyncpa [#allocation3], 1
    %s524 = scalar_lea.sflag [#allocation3], 1
    %525 = vsyncpa %s524, 1
    %526 = vsyncpa [#allocation6], 1
    %527 = vsyncpa [#allocation9], 1
    %528 = vsyncpa [#allocation12], 1
    %529 = vsyncpa [#allocation4], 1
    %s530 = scalar_lea.sflag [#allocation4], 1
    %531 = vsyncpa %s530, 1

// kernel: transformer_layer_forward.7
$region0: #{transformer_layer_forward.7}
  #allocation0 [shape = 'u32[]', space=smem, size = 0x4, offset = 0x4, fixed_abs, tag = 'smem constant byte address 0x4 - core index']
  #allocation1 [shape = 'u32[144,128]{1,0:T(1,128)}', space=vmem, size = 0x12000, scoped, tag = 'internal scratch']
  %s0 = inlined_call_operand.hbm [shape: f32[32,128], index: 0, kind: input, shape index: {}]
  %s1 = inlined_call_operand.hbm [shape: f32[1,128], index: 1, kind: input, shape index: {}]
  %s2 = inlined_call_operand.hbm [shape: f32[1,128], index: 2, kind: input, shape index: {}]
  %s3 = inlined_call_operand.hbm [shape: f32[1,128], index: 3, kind: input, shape index: {}]
  %s4 = inlined_call_operand.hbm [shape: f32[1,128], index: 4, kind: input, shape index: {}]
  %s5 = inlined_call_operand.hbm [shape: f32[128,128], index: 5, kind: input, shape index: {}]
  %s6 = inlined_call_operand.hbm [shape: f32[1,128], index: 6, kind: input, shape index: {}]
  %s7 = inlined_call_operand.hbm [shape: f32[32,128], index: 7, kind: output, shape index: {}]
  %s8 = sld [smem:[#allocation0]]
  $region66: #{transformer_layer_forward.7} parent=0
    _
  %s10 = ssub.s32 1, %s8
  %s11 = scalar_select 0, %s10, %s8
  $region1: #{transformer_layer_forward.7} parent=0
    #allocation2 [shape = 'u8[16384]{0}', space=vmem, size = 0x4000, scoped, tag = 'input window, operand 0, single buffered']
    #allocation3 [shape = 's32[1]{0}', space=sflag, size = 0x4, scoped, tag = 'scoped memory for transformer_layer_forward.7']
    #allocation4 [shape = 's32[1]{0}', space=sflag, size = 0x4, scoped, tag = 'scoped memory for transformer_layer_forward.7']
    #allocation5 [shape = 'u8[512]{0}', space=vmem, size = 0x400, scoped, tag = 'input window, operand 1, single buffered']
    #allocation6 [shape = 's32[1]{0}', space=sflag, size = 0x4, scoped, tag = 'scoped memory for transformer_layer_forward.7']
    #allocation7 [shape = 'u8[512]{0}', space=vmem, size = 0x400, scoped, tag = 'input window, operand 2, single buffered']
    #allocation8 [shape = 'u8[512]{0}', space=vmem, size = 0x400, scoped, tag = 'input window, operand 3, single buffered']
    #allocation9 [shape = 's32[1]{0}', space=sflag, size = 0x4, scoped, tag = 'scoped memory for transformer_layer_forward.7']
    #allocation10 [shape = 'u8[512]{0}', space=vmem, size = 0x400, scoped, tag = 'input window, operand 4, single buffered']
    #allocation11 [shape = 'u8[65536]{0}', space=vmem, size = 0x10000, scoped, tag = 'input window, operand 5, single buffered']
    #allocation12 [shape = 's32[1]{0}', space=sflag, size = 0x4, scoped, tag = 'scoped memory for transformer_layer_forward.7']
    #allocation13 [shape = 'u8[512]{0}', space=vmem, size = 0x400, scoped, tag = 'input window, operand 6, single buffered']
    #allocation14 [shape = 'u8[16384]{0}', space=vmem, size = 0x4000, scoped, tag = 'output window, operand 0, single buffered']
    %12 = vsyncpa [#allocation3], 0
    %13 = vsyncpa [#allocation6], 0
    %14 = vsyncpa [#allocation9], 0
    %15 = vsyncpa [#allocation12], 0
    %16 = vsyncpa [#allocation4], 0
    // Predicated region
    $region2: #{transformer_layer_forward.7} parent=1 // pred_check
      _
    $region3: #{transformer_layer_forward.7} parent=1 // pred_check_branch
      %18 = sbr.rel (0) target = $region5
    $region4: #{transformer_layer_forward.7} parent=1 // pred_region
      %s20 = ssub.s32 512, 512
      %21 = vsyncadd [#allocation3], %s20
      %s22 = sshll.u32 [#allocation2], 4
      %s23 = int_to_ptr.vmem [resolvable:$true] %s22
      %28 = dma.hbm_to_vmem [thread:$0]  %s0, 512, %s23, [#allocation3], 128, 128, 8
    $region5: #{transformer_layer_forward.7} parent=1 // pred_fallthru
      _
    // Predicated region
    $region6: #{transformer_layer_forward.7} parent=1 // pred_check
      _
    $region7: #{transformer_layer_forward.7} parent=1 // pred_check_branch
      %30 = sbr.rel (0) target = $region9
    $region8: #{transformer_layer_forward.7} parent=1 // pred_region
      %s32 = ssub.s32 16, 16
      %33 = vsyncadd [#allocation6], %s32
      %s35 = sshll.u32 [#allocation5], 4
      %s36 = int_to_ptr.vmem [resolvable:$true] %s35
      %38 = dma.hbm_to_vmem [thread:$0]  %s1, 16, %s36, [#allocation6]
    $region9: #{transformer_layer_forward.7} parent=1 // pred_fallthru
      _
    // Predicated region
    $region10: #{transformer_layer_forward.7} parent=1 // pred_check
      _
    $region11: #{transformer_layer_forward.7} parent=1 // pred_check_branch
      %40 = sbr.rel (0) target = $region13
    $region12: #{transformer_layer_forward.7} parent=1 // pred_region
      %s42 = ssub.s32 16, 16
      %43 = vsyncadd [#allocation6], %s42
      %s45 = sshll.u32 [#allocation7], 4
      %s46 = int_to_ptr.vmem [resolvable:$true] %s45
      %48 = dma.hbm_to_vmem [thread:$0]  %s2, 16, %s46, [#allocation6]
    $region13: #{transformer_layer_forward.7} parent=1 // pred_fallthru
      _
    // Predicated region
    $region14: #{transformer_layer_forward.7} parent=1 // pred_check
      _
    $region15: #{transformer_layer_forward.7} parent=1 // pred_check_branch
      %50 = sbr.rel (0) target = $region17
    $region16: #{transformer_layer_forward.7} parent=1 // pred_region
      %s52 = ssub.s32 16, 16
      %53 = vsyncadd [#allocation9], %s52
      %s55 = sshll.u32 [#allocation8], 4
      %s56 = int_to_ptr.vmem [resolvable:$true] %s55
      %58 = dma.hbm_to_vmem [thread:$0]  %s3, 16, %s56, [#allocation9]
    $region17: #{transformer_layer_forward.7} parent=1 // pred_fallthru
      _
    // Predicated region
    $region18: #{transformer_layer_forward.7} parent=1 // pred_check
      _
    $region19: #{transformer_layer_forward.7} parent=1 // pred_check_branch
      %60 = sbr.rel (0) target = $region21
    $region20: #{transformer_layer_forward.7} parent=1 // pred_region
      %s62 = ssub.s32 16, 16
      %63 = vsyncadd [#allocation9], %s62
      %s65 = sshll.u32 [#allocation10], 4
      %s66 = int_to_ptr.vmem [resolvable:$true] %s65
      %68 = dma.hbm_to_vmem [thread:$0]  %s4, 16, %s66, [#allocation9]
    $region21: #{transformer_layer_forward.7} parent=1 // pred_fallthru
      _
    // Predicated region
    $region22: #{transformer_layer_forward.7} parent=1 // pred_check
      _
    $region23: #{transformer_layer_forward.7} parent=1 // pred_check_branch
      %70 = sbr.rel (0) target = $region25
    $region24: #{transformer_layer_forward.7} parent=1 // pred_region
      %s72 = ssub.s32 2048, 2048
      %73 = vsyncadd [#allocation12], %s72
      %s74 = sshll.u32 [#allocation11], 4
      %s75 = int_to_ptr.vmem [resolvable:$true] %s74
      %80 = dma.hbm_to_vmem [thread:$0]  %s5, 2048, %s75, [#allocation12], 128, 128, 8
    $region25: #{transformer_layer_forward.7} parent=1 // pred_fallthru
      _
    // Predicated region
    $region26: #{transformer_layer_forward.7} parent=1 // pred_check
      _
    $region27: #{transformer_layer_forward.7} parent=1 // pred_check_branch
      %82 = sbr.rel (0) target = $region29
    $region28: #{transformer_layer_forward.7} parent=1 // pred_region
      %s84 = ssub.s32 16, 16
      %85 = vsyncadd [#allocation12], %s84
      %s87 = sshll.u32 [#allocation13], 4
      %s88 = int_to_ptr.vmem [resolvable:$true] %s87
      %90 = dma.hbm_to_vmem [thread:$0]  %s6, 16, %s88, [#allocation12]
    $region29: #{transformer_layer_forward.7} parent=1 // pred_fallthru
      _
    // Predicated region
    $region30: #{transformer_layer_forward.7} parent=1 // pred_check
      _
    $region31: #{transformer_layer_forward.7} parent=1 // pred_check_branch
      %92 = sbr.rel (0) target = $region33
    $region32: #{transformer_layer_forward.7} parent=1 // pred_region
      %93 = dma.done [#allocation3], 512
    $region33: #{transformer_layer_forward.7} parent=1 // pred_fallthru
      _
    // Predicated region
    $region34: #{transformer_layer_forward.7} parent=1 // pred_check
      _
    $region35: #{transformer_layer_forward.7} parent=1 // pred_check_branch
      %95 = sbr.rel (0) target = $region37
    $region36: #{transformer_layer_forward.7} parent=1 // pred_region
      %96 = dma.done [#allocation6], 16
    $region37: #{transformer_layer_forward.7} parent=1 // pred_fallthru
      _
    // Predicated region
    $region38: #{transformer_layer_forward.7} parent=1 // pred_check
      _
    $region39: #{transformer_layer_forward.7} parent=1 // pred_check_branch
      %98 = sbr.rel (0) target = $region41
    $region40: #{transformer_layer_forward.7} parent=1 // pred_region
      %99 = dma.done [#allocation6], 16
    $region41: #{transformer_layer_forward.7} parent=1 // pred_fallthru
      _
    // Predicated region
    $region42: #{transformer_layer_forward.7} parent=1 // pred_check
      _
    $region43: #{transformer_layer_forward.7} parent=1 // pred_check_branch
      %101 = sbr.rel (0) target = $region45
    $region44: #{transformer_layer_forward.7} parent=1 // pred_region
      %102 = dma.done [#allocation9], 16
    $region45: #{transformer_layer_forward.7} parent=1 // pred_fallthru
      _
    // Predicated region
    $region46: #{transformer_layer_forward.7} parent=1 // pred_check
      _
    $region47: #{transformer_layer_forward.7} parent=1 // pred_check_branch
      %104 = sbr.rel (0) target = $region49
    $region48: #{transformer_layer_forward.7} parent=1 // pred_region
      %105 = dma.done [#allocation9], 16
    $region49: #{transformer_layer_forward.7} parent=1 // pred_fallthru
      _
    // Predicated region
    $region50: #{transformer_layer_forward.7} parent=1 // pred_check
      _
    $region51: #{transformer_layer_forward.7} parent=1 // pred_check_branch
      %107 = sbr.rel (0) target = $region53
    $region52: #{transformer_layer_forward.7} parent=1 // pred_region
      %108 = dma.done [#allocation12], 2048
    $region53: #{transformer_layer_forward.7} parent=1 // pred_fallthru
      _
    // Predicated region
    $region54: #{transformer_layer_forward.7} parent=1 // pred_check
      _
    $region55: #{transformer_layer_forward.7} parent=1 // pred_check_branch
      %110 = sbr.rel (0) target = $region57
    $region56: #{transformer_layer_forward.7} parent=1 // pred_region
      %111 = dma.done [#allocation12], 16
    $region57: #{transformer_layer_forward.7} parent=1 // pred_fallthru
      _
    %v113 = vld [vmem:[#allocation2] sm:$0xff]
    %v114 = vld [vmem:[#allocation2 + $0x8] sm:$0xff]
    %v115 = vld [vmem:[#allocation2 + $0x10] sm:$0xff]
    %v116 = vld [vmem:[#allocation2 + $0x18] sm:$0xff]
    %v117 = vld [vmem:[#allocation5] sm:$0x1]
    %v118 = vld [vmem:[#allocation7] sm:$0x1]
    %119 = vadd.xlane.f32.xlu0 %v113
    %v120 = vpop.xlane.xlu0 %119
    %121 = vadd.xlane.f32.xlu0 %v114
    %v122 = vpop.xlane.xlu0 %121
    %123 = vadd.xlane.f32.xlu0 %v115
    %v124 = vpop.xlane.xlu0 %123
    %125 = vadd.xlane.f32.xlu0 %v116
    %v126 = vpop.xlane.xlu0 %125
    %v127 = vmul.f32 %v120, 0.010416667
    %v128 = vmul.f32 %v122, 0.010416667
    %v129 = vmul.f32 %v124, 0.010416667
    %v130 = vmul.f32 %v126, 0.010416667
    %v131 = vmul.f32 %v113, %v113
    %v132 = vmul.f32 %v114, %v114
    %v133 = vmul.f32 %v115, %v115
    %v134 = vmul.f32 %v116, %v116
    %135 = vadd.xlane.f32.xlu0 %v131
    %v136 = vpop.xlane.xlu0 %135
    %137 = vadd.xlane.f32.xlu0 %v132
    %v138 = vpop.xlane.xlu0 %137
    %139 = vadd.xlane.f32.xlu0 %v133
    %v140 = vpop.xlane.xlu0 %139
    %141 = vadd.xlane.f32.xlu0 %v134
    %v142 = vpop.xlane.xlu0 %141
    %v143 = vmul.f32 %v136, 0.010416667
    %v144 = vmul.f32 %v138, 0.010416667
    %v145 = vmul.f32 %v140, 0.010416667
    %v146 = vmul.f32 %v142, 0.010416667
    %v147 = vmul.f32 %v127, %v127
    %v148 = vmul.f32 %v128, %v128
    %v149 = vmul.f32 %v129, %v129
    %v150 = vmul.f32 %v130, %v130
    %v151 = vsub.f32 %v143, %v147
    %v152 = vsub.f32 %v144, %v148
    %v153 = vsub.f32 %v145, %v149
    %v154 = vsub.f32 %v146, %v150
    %v155 = vmax.f32 %v151, 0.0
    %v156 = vmax.f32 %v152, 0.0
    %v157 = vmax.f32 %v153, 0.0
    %v158 = vmax.f32 %v154, 0.0
    %v159 = vsub.f32 %v113, %v127
    %v160 = vsub.f32 %v114, %v128
    %v161 = vsub.f32 %v115, %v129
    %v162 = vsub.f32 %v116, %v130
    %v163 = vadd.f32 %v155, 1e-05
    %v164 = vadd.f32 %v156, 1e-05
    %v165 = vadd.f32 %v157, 1e-05
    %v166 = vadd.f32 %v158, 1e-05
    %v167 = vrsqrt.pop %v163
    %v168 = vrsqrt.pop %v164
    %v169 = vrsqrt.pop %v165
    %v170 = vrsqrt.pop %v166
    %v171 = vmul.f32 %v159, %v167
    %v172 = vmul.f32 %v160, %v168
    %v173 = vmul.f32 %v161, %v169
    %v174 = vmul.f32 %v162, %v170
    %v176 = vlaneseq
    %v177 = vshrl.u32 %v176, 7
    %v178 = vsub.s32 0, %v177
    %v179 = vrot.slane %v117, %v178
    %v181 = vmul.f32 %v171, %v179
    %v182 = vmul.f32 %v172, %v179
    %v183 = vmul.f32 %v173, %v179
    %v184 = vmul.f32 %v174, %v179
    %v186 = vlaneseq
    %v187 = vshrl.u32 %v186, 7
    %v188 = vsub.s32 0, %v187
    %v189 = vrot.slane %v118, %v188
    %v191 = vadd.f32 %v181, %v189
    %v192 = vadd.f32 %v182, %v189
    %v193 = vadd.f32 %v183, %v189
    %v194 = vadd.f32 %v184, %v189
    %v195 = vld [vmem:[#allocation8] sm:$0x1]
    %v196 = vld [vmem:[#allocation10] sm:$0x1]
    %197 = vadd.xlane.f32.xlu0 %v191
    %v198 = vpop.xlane.xlu0 %197
    %199 = vadd.xlane.f32.xlu0 %v192
    %v200 = vpop.xlane.xlu0 %199
    %201 = vadd.xlane.f32.xlu0 %v193
    %v202 = vpop.xlane.xlu0 %201
    %203 = vadd.xlane.f32.xlu0 %v194
    %v204 = vpop.xlane.xlu0 %203
    %v205 = vmul.f32 %v198, 0.010416667
    %v206 = vmul.f32 %v200, 0.010416667
    %v207 = vmul.f32 %v202, 0.010416667
    %v208 = vmul.f32 %v204, 0.010416667
    %v209 = vmul.f32 %v191, %v191
    %v210 = vmul.f32 %v192, %v192
    %v211 = vmul.f32 %v193, %v193
    %v212 = vmul.f32 %v194, %v194
    %213 = vadd.xlane.f32.xlu0 %v209
    %v214 = vpop.xlane.xlu0 %213
    %215 = vadd.xlane.f32.xlu0 %v210
    %v216 = vpop.xlane.xlu0 %215
    %217 = vadd.xlane.f32.xlu0 %v211
    %v218 = vpop.xlane.xlu0 %217
    %219 = vadd.xlane.f32.xlu0 %v212
    %v220 = vpop.xlane.xlu0 %219
    %v221 = vmul.f32 %v214, 0.010416667
    %v222 = vmul.f32 %v216, 0.010416667
    %v223 = vmul.f32 %v218, 0.010416667
    %v224 = vmul.f32 %v220, 0.010416667
    %v225 = vmul.f32 %v205, %v205
    %v226 = vmul.f32 %v206, %v206
    %v227 = vmul.f32 %v207, %v207
    %v228 = vmul.f32 %v208, %v208
    %v229 = vsub.f32 %v221, %v225
    %v230 = vsub.f32 %v222, %v226
    %v231 = vsub.f32 %v223, %v227
    %v232 = vsub.f32 %v224, %v228
    %v233 = vmax.f32 %v229, 0.0
    %v234 = vmax.f32 %v230, 0.0
    %v235 = vmax.f32 %v231, 0.0
    %v236 = vmax.f32 %v232, 0.0
    %v237 = vsub.f32 %v191, %v205
    %v238 = vsub.f32 %v192, %v206
    %v239 = vsub.f32 %v193, %v207
    %v240 = vsub.f32 %v194, %v208
    %v241 = vadd.f32 %v233, 1e-05
    %v242 = vadd.f32 %v234, 1e-05
    %v243 = vadd.f32 %v235, 1e-05
    %v244 = vadd.f32 %v236, 1e-05
    %v245 = vrsqrt.pop %v241
    %v246 = vrsqrt.pop %v242
    %v247 = vrsqrt.pop %v243
    %v248 = vrsqrt.pop %v244
    %v249 = vmul.f32 %v237, %v245
    %v250 = vmul.f32 %v238, %v246
    %v251 = vmul.f32 %v239, %v247
    %v252 = vmul.f32 %v240, %v248
    %v254 = vlaneseq
    %v255 = vshrl.u32 %v254, 7
    %v256 = vsub.s32 0, %v255
    %v257 = vrot.slane %v195, %v256
    %v259 = vmul.f32 %v249, %v257
    %v260 = vmul.f32 %v250, %v257
    %v261 = vmul.f32 %v251, %v257
    %v262 = vmul.f32 %v252, %v257
    %v264 = vlaneseq
    %v265 = vshrl.u32 %v264, 7
    %v266 = vsub.s32 0, %v265
    %v267 = vrot.slane %v196, %v266
    %v269 = vadd.f32 %v259, %v267
    %v270 = vadd.f32 %v260, %v267
    %v271 = vadd.f32 %v261, %v267
    %v272 = vadd.f32 %v262, %v267
    %v273 = vld [vmem:[#allocation11] sm:$0xff]
    %v274 = vld [vmem:[#allocation11 + $0x8] sm:$0xff]
    %v275 = vld [vmem:[#allocation11 + $0x10] sm:$0xff]
    %v276 = vld [vmem:[#allocation11 + $0x18] sm:$0xff]
    %v277 = vld [vmem:[#allocation11 + $0x20] sm:$0xff]
    %v278 = vld [vmem:[#allocation11 + $0x28] sm:$0xff]
    %v279 = vld [vmem:[#allocation11 + $0x30] sm:$0xff]
    %v280 = vld [vmem:[#allocation11 + $0x38] sm:$0xff]
    %v281 = vld [vmem:[#allocation11 + $0x40] sm:$0xff]
    %v282 = vld [vmem:[#allocation11 + $0x48] sm:$0xff]
    %v283 = vld [vmem:[#allocation11 + $0x50] sm:$0xff]
    %v284 = vld [vmem:[#allocation11 + $0x58] sm:$0xff]
    %v285 = vld [vmem:[#allocation11 + $0x60] sm:$0xff]
    %v286 = vld [vmem:[#allocation11 + $0x68] sm:$0xff]
    %v287 = vld [vmem:[#allocation11 + $0x70] sm:$0xff]
    %v288 = vld [vmem:[#allocation11 + $0x78] sm:$0xff]
    %v289 = vpack.c.bf16 %v270, %v269
    %v290 = vpack.c.bf16 %v272, %v271
    %v291 = vpack.c.bf16 %v274, %v273
    %v292 = vpack.c.bf16 %v276, %v275
    %v293 = vpack.c.bf16 %v278, %v277
    %v294 = vpack.c.bf16 %v280, %v279
    %v295 = vpack.c.bf16 %v282, %v281
    %v296 = vpack.c.bf16 %v284, %v283
    %v297 = vpack.c.bf16 %v286, %v285
    %v298 = vpack.c.bf16 %v288, %v287
    %v299 = vld [vmem:[#allocation13] sm:$0x1]
    %v301 = vlaneseq
    %v302 = vshrl.u32 %v301, 7
    %v303 = vsub.s32 0, %v302
    %v304 = vrot.slane %v299, %v303
    %306 = vmatprep.subr.bf16.mxu0 0
    %307 = vmatpush1.bf16.msra.mxu0 %v291
    %308 = vmatprep.subr.bf16.mxu0 0
    %309 = vmatpush1.bf16.msra.mxu0 %v292
    %310 = vmatprep.subr.bf16.mxu0 0
    %311 = vmatpush1.bf16.msra.mxu0 %v293
    %312 = vmatprep.subr.bf16.mxu0 0
    %313 = vmatpush1.bf16.msra.mxu0 %v294
    %314 = vmatprep.subr.bf16.mxu0 0
    %315 = vmatpush1.bf16.msra.mxu0 %v295
    %316 = vmatprep.subr.bf16.mxu0 0
    %317 = vmatpush1.bf16.msra.mxu0 %v296
    %318 = vmatprep.subr.bf16.mxu0 0
    %319 = vmatpush1.bf16.msra.mxu0 %v297
    %320 = vmatprep.subr.bf16.mxu0 0
    %321 = vmatpush1.bf16.msra.mxu0 %v298
    %322 = vmatprep.subr.bf16.mxu0 0
    %323 = vmatpush1.bf16.msra.mxu0 0
    %324 = vmatprep.subr.bf16.mxu0 0
    %325 = vmatpush1.bf16.msra.mxu0 0
    %326 = vmatprep.subr.bf16.mxu0 0
    %327 = vmatpush1.bf16.msra.mxu0 0
    %328 = vmatprep.subr.bf16.mxu0 0
    %329 = vmatpush1.bf16.msra.mxu0 0
    %330 = vmatprep.subr.bf16.mxu0 0
    %331 = vmatpush1.bf16.msra.mxu0 0
    %332 = vmatprep.subr.bf16.mxu0 0
    %333 = vmatpush1.bf16.msra.mxu0 0
    %334 = vmatprep.subr.bf16.mxu0 0
    %335 = vmatpush1.bf16.msra.mxu0 0
    %336 = vmatprep.subr.bf16.mxu0 0
    %337 = vmatpush1.bf16.msra.mxu0 0
    %338 = vmatprep.mubr.bf16.mxu0 0
    %339 = vmatmul.mubr.bf16.gmra.mrb[0].mxu0 %v289
    %v340 = vpop.f32.mrb[0].mxu0
    %v341 = vadd.f32 %v304, %v340
    %v342 = vpop.f32.mrb[0].mxu0
    %v343 = vpop.f32.mrb[0].mxu0
    %v344 = vadd.f32 %v304, %v343
    %v345 = vpop.f32.mrb[0].mxu0
    %346 = vmatprep.mubr.bf16.mxu0 0
    %347 = vmatmul.mubr.bf16.gmra.mrb[0].mxu0 %v290
    %v348 = vpop.f32.mrb[0].mxu0
    %v349 = vadd.f32 %v304, %v348
    %v350 = vpop.f32.mrb[0].mxu0
    %v351 = vpop.f32.mrb[0].mxu0
    %v352 = vadd.f32 %v304, %v351
    %v353 = vpop.f32.mrb[0].mxu0
    %354 = vdwg.mxu0
    %355 = vst [vmem:[#allocation14] sm:$0xff] %v341
    %356 = vst [vmem:[#allocation14 + $0x8] sm:$0xff] %v344
    %357 = vst [vmem:[#allocation14 + $0x10] sm:$0xff] %v349
    %358 = vst [vmem:[#allocation14 + $0x18] sm:$0xff] %v352
    // Predicated region
    $region58: #{transformer_layer_forward.7} parent=1 // pred_check
      _
    $region59: #{transformer_layer_forward.7} parent=1 // pred_check_branch
      %360 = sbr.rel (0) target = $region61
    $region60: #{transformer_layer_forward.7} parent=1 // pred_region
      %s362 = ssub.s32 512, 512
      %363 = vsyncadd [#allocation4], %s362
      %s364 = sshll.u32 [#allocation14], 4
      %s365 = int_to_ptr.vmem [resolvable:$true] %s364
      %370 = dma.vmem_to_hbm [thread:$0]  %s365, 512, %s7, [#allocation4], 128, 128, 8
    $region61: #{transformer_layer_forward.7} parent=1 // pred_fallthru
      _
    // Predicated region
    $region62: #{transformer_layer_forward.7} parent=1 // pred_check
      _
    $region63: #{transformer_layer_forward.7} parent=1 // pred_check_branch
      %372 = sbr.rel (0) target = $region65
    $region64: #{transformer_layer_forward.7} parent=1 // pred_region
      %373 = dma.done [#allocation4], 512
    $region65: #{transformer_layer_forward.7} parent=1 // pred_fallthru
      _
    %374 = vsyncpa [#allocation3], 1
    %375 = vsyncpa [#allocation6], 1
    %376 = vsyncpa [#allocation9], 1
    %377 = vsyncpa [#allocation12], 1
    %378 = vsyncpa [#allocation4], 1

// kernel: transformer_layer_forward.5
$region0: #{transformer_layer_forward.5}
  #allocation0 [shape = 'u32[]', space=smem, size = 0x4, offset = 0x4, fixed_abs, tag = 'smem constant byte address 0x4 - core index']
  #allocation1 [shape = 'u32[144,128]{1,0:T(1,128)}', space=vmem, size = 0x12000, scoped, tag = 'internal scratch']
  %s0 = inlined_call_operand.hbm [shape: f32[2,16,128], index: 0, kind: input, shape index: {}]
  %s1 = inlined_call_operand.hbm [shape: f32[1,128], index: 1, kind: input, shape index: {}]
  %s2 = inlined_call_operand.hbm [shape: f32[1,128], index: 2, kind: input, shape index: {}]
  %s3 = inlined_call_operand.hbm [shape: f32[128,1536], index: 3, kind: input, shape index: {}]
  %s4 = inlined_call_operand.hbm [shape: f32[512,128], index: 4, kind: input, shape index: {}]
  %s5 = inlined_call_operand.hbm [shape: f32[1,128], index: 5, kind: input, shape index: {}]
  %s6 = inlined_call_operand.hbm [shape: f32[1,128], index: 6, kind: input, shape index: {}]
  %s7 = inlined_call_operand.hbm [shape: f32[1,128], index: 7, kind: input, shape index: {}]
  %s8 = inlined_call_operand.hbm [shape: f32[128,384], index: 8, kind: input, shape index: {}]
  %s9 = inlined_call_operand.hbm [shape: f32[1,384], index: 9, kind: input, shape index: {}]
  %s10 = inlined_call_operand.hbm [shape: f32[384,128], index: 10, kind: input, shape index: {}]
  %s11 = inlined_call_operand.hbm [shape: f32[1,128], index: 11, kind: input, shape index: {}]
  %s12 = inlined_call_operand.hbm [shape: f32[2,16,128], index: 12, kind: output, shape index: {}]
  %s13 = sld [smem:[#allocation0]]
  $region129: #{transformer_layer_forward.5} parent=0
    _
  %s15 = ssub.s32 1, %s13
  %s16 = scalar_select 0, %s15, %s13
  $region1: #{transformer_layer_forward.5} parent=0
    #allocation2 [shape = 'u8[16384]{0}', space=vmem, size = 0x4000, scoped, tag = 'input window, operand 0']
    #allocation3 [shape = 's32[2]{0}', space=sflag, size = 0x8, scoped, tag = 'scoped memory for transformer_layer_forward.5']
    #allocation4 [shape = 's32[2]{0}', space=sflag, size = 0x8, scoped, tag = 'scoped memory for transformer_layer_forward.5']
    #allocation5 [shape = 'u8[512]{0}', space=vmem, size = 0x400, scoped, tag = 'input window, operand 1, single buffered']
    #allocation6 [shape = 's32[1]{0}', space=sflag, size = 0x4, scoped, tag = 'scoped memory for transformer_layer_forward.5']
    #allocation7 [shape = 'u8[512]{0}', space=vmem, size = 0x400, scoped, tag = 'input window, operand 2, single buffered']
    #allocation8 [shape = 'u8[786432]{0}', space=vmem, size = 0xc0000, scoped, tag = 'input window, operand 3, single buffered']
    #allocation9 [shape = 's32[1]{0}', space=sflag, size = 0x4, scoped, tag = 'scoped memory for transformer_layer_forward.5']
    #allocation10 [shape = 'u8[262144]{0}', space=vmem, size = 0x40000, scoped, tag = 'input window, operand 4, single buffered']
    #allocation11 [shape = 'u8[512]{0}', space=vmem, size = 0x400, scoped, tag = 'input window, operand 5, single buffered']
    #allocation12 [shape = 's32[1]{0}', space=sflag, size = 0x4, scoped, tag = 'scoped memory for transformer_layer_forward.5']
    #allocation13 [shape = 'u8[512]{0}', space=vmem, size = 0x400, scoped, tag = 'input window, operand 6, single buffered']
    #allocation14 [shape = 'u8[512]{0}', space=vmem, size = 0x400, scoped, tag = 'input window, operand 7, single buffered']
    #allocation15 [shape = 's32[1]{0}', space=sflag, size = 0x4, scoped, tag = 'scoped memory for transformer_layer_forward.5']
    #allocation16 [shape = 'u8[196608]{0}', space=vmem, size = 0x30000, scoped, tag = 'input window, operand 8, single buffered']
    #allocation17 [shape = 'u8[1536]{0}', space=vmem, size = 0x800, scoped, tag = 'input window, operand 9, single buffered']
    #allocation18 [shape = 's32[1]{0}', space=sflag, size = 0x4, scoped, tag = 'scoped memory for transformer_layer_forward.5']
    #allocation19 [shape = 'u8[196608]{0}', space=vmem, size = 0x30000, scoped, tag = 'input window, operand 10, single buffered']
    #allocation20 [shape = 'u8[512]{0}', space=vmem, size = 0x400, scoped, tag = 'input window, operand 11, single buffered']
    #allocation21 [shape = 's32[1]{0}', space=sflag, size = 0x4, scoped, tag = 'scoped memory for transformer_layer_forward.5']
    #allocation22 [shape = 'u8[16384]{0}', space=vmem, size = 0x4000, scoped, tag = 'output window, operand 0']
    %17 = vsyncpa [#allocation3], 0
    %s18 = scalar_lea.sflag [#allocation3], 1
    %19 = vsyncpa %s18, 0
    %20 = vsyncpa [#allocation6], 0
    %21 = vsyncpa [#allocation9], 0
    %22 = vsyncpa [#allocation12], 0
    %23 = vsyncpa [#allocation15], 0
    %24 = vsyncpa [#allocation18], 0
    %25 = vsyncpa [#allocation21], 0
    %26 = vsyncpa [#allocation4], 0
    %s27 = scalar_lea.sflag [#allocation4], 1
    %28 = vsyncpa %s27, 0
    loop: start=0, step=1, limit=4
    $region2: #{transformer_layer_forward.5} parent=1 // loop_pre_header
      _
    $region3: #{transformer_layer_forward.5} parent=1 // loop_header
      %s30 = sphi 0, %s34
      %p31 = scmp.ge.s32.totalorder %s30, 4
      %s40 = sphi 0, %s42
      %s43 = sphi 0, %s40
      %s44 = sphi 0, %s43
      %s60 = sphi 0, %s44
      %s64 = sphi 0, %s64
      %s66 = sphi 0, %s64
      %s67 = sphi 0, %s66
      %s81 = sphi 0, %s67
      %s85 = sphi 0, %s85
      %s87 = sphi 0, %s85
      %s88 = sphi 0, %s87
      %s102 = sphi 0, %s88
      %s106 = sphi 0, %s106
      %s108 = sphi 0, %s106
      %s109 = sphi 0, %s108
      %s123 = sphi 0, %s109
      %s127 = sphi 0, %s127
      %s129 = sphi 0, %s127
      %s130 = sphi 0, %s129
      %s144 = sphi 0, %s130
      %s148 = sphi 0, %s148
      %s150 = sphi 0, %s148
      %s151 = sphi 0, %s150
      %s165 = sphi 0, %s151
      %s169 = sphi 0, %s169
      %s171 = sphi 0, %s169
      %s172 = sphi 0, %s171
      %s186 = sphi 0, %s172
      %s190 = sphi 0, %s190
      %s192 = sphi 0, %s190
      %s193 = sphi 0, %s192
      %s207 = sphi 0, %s193
      %s211 = sphi 0, %s211
      %s213 = sphi 0, %s211
      %s214 = sphi 0, %s213
      %s228 = sphi 0, %s214
      %s232 = sphi 0, %s232
      %s234 = sphi 0, %s232
      %s235 = sphi 0, %s234
      %s249 = sphi 0, %s235
      %s253 = sphi 0, %s253
      %s255 = sphi 0, %s253
      %s256 = sphi 0, %s255
      %s270 = sphi 0, %s256
      %s274 = sphi 0, %s274
      %s276 = sphi 0, %s274
      %s277 = sphi 0, %s276
      %s291 = sphi 0, %s277
      %s297 = sphi 0, %s299
      %s300 = sphi 0, %s297
      %s301 = sphi 0, %s300
      %s317 = sphi 0, %s301
    $region4: #{transformer_layer_forward.5} parent=1 // loop_header_branch
      %33 = sbr.rel (%p31) target = $region8
    $region5: #{transformer_layer_forward.5} parent=1 // loop_body
      %s35 = ssub.s32 %s30, 1
      %s36 = ssub.s32 %s30, 2
      %s37 = sadd.s32 %s30, 1
      %s38 = ssub.s32 %s30, %s37
      %p39 = scmp.eq.s32.totalorder %s38, 0
      %s41 = sadd.s32 %s40, 1
      %s42 = scalar_select %p39, %s40, %s41
      %p45 = pneg %p39
      %p46 = scmp.eq.s32.totalorder %s30, 1
      %p47 = por %p45, %p46
      %p48 = scmp.ne.s32.totalorder %s40, %s43
      %p49 = scmp.eq.s32.totalorder %s30, 0
      %p50 = por %p48, %p49
      %p51 = scmp.ne.s32.totalorder %s40, %s43
      %p52 = scmp.eq.s32.totalorder %s35, 1
      %p53 = por %p51, %p52
      %p54 = scmp.ne.s32.totalorder %s43, %s44
      %p55 = scmp.eq.s32.totalorder %s35, 0
      %p56 = por %p54, %p55
      %p57 = scmp.ne.s32.totalorder %s43, %s44
      %p58 = scmp.eq.s32.totalorder %s36, 1
      %p59 = por %p57, %p58
      %p61 = scmp.ne.s32.totalorder %s44, %s60
      %p62 = scmp.eq.s32.totalorder %s36, 0
      %p63 = por %p61, %p62
      %s65 = sadd.s32 %s64, 1
      %p68 = scmp.eq.s32.totalorder %s30, 1
      %p69 = scmp.ne.s32.totalorder %s64, %s66
      %p70 = scmp.eq.s32.totalorder %s30, 0
      %p71 = por %p69, %p70
      %p72 = scmp.ne.s32.totalorder %s64, %s66
      %p73 = scmp.eq.s32.totalorder %s35, 1
      %p74 = por %p72, %p73
      %p75 = scmp.ne.s32.totalorder %s66, %s67
      %p76 = scmp.eq.s32.totalorder %s35, 0
      %p77 = por %p75, %p76
      %p78 = scmp.ne.s32.totalorder %s66, %s67
      %p79 = scmp.eq.s32.totalorder %s36, 1
      %p80 = por %p78, %p79
      %p82 = scmp.ne.s32.totalorder %s67, %s81
      %p83 = scmp.eq.s32.totalorder %s36, 0
      %p84 = por %p82, %p83
      %s86 = sadd.s32 %s85, 1
      %p89 = scmp.eq.s32.totalorder %s30, 1
      %p90 = scmp.ne.s32.totalorder %s85, %s87
      %p91 = scmp.eq.s32.totalorder %s30, 0
      %p92 = por %p90, %p91
      %p93 = scmp.ne.s32.totalorder %s85, %s87
      %p94 = scmp.eq.s32.totalorder %s35, 1
      %p95 = por %p93, %p94
      %p96 = scmp.ne.s32.totalorder %s87, %s88
      %p97 = scmp.eq.s32.totalorder %s35, 0
      %p98 = por %p96, %p97
      %p99 = scmp.ne.s32.totalorder %s87, %s88
      %p100 = scmp.eq.s32.totalorder %s36, 1
      %p101 = por %p99, %p100
      %p103 = scmp.ne.s32.totalorder %s88, %s102
      %p104 = scmp.eq.s32.totalorder %s36, 0
      %p105 = por %p103, %p104
      %s107 = sadd.s32 %s106, 1
      %p110 = scmp.eq.s32.totalorder %s30, 1
      %p111 = scmp.ne.s32.totalorder %s106, %s108
      %p112 = scmp.eq.s32.totalorder %s30, 0
      %p113 = por %p111, %p112
      %p114 = scmp.ne.s32.totalorder %s106, %s108
      %p115 = scmp.eq.s32.totalorder %s35, 1
      %p116 = por %p114, %p115
      %p117 = scmp.ne.s32.totalorder %s108, %s109
      %p118 = scmp.eq.s32.totalorder %s35, 0
      %p119 = por %p117, %p118
      %p120 = scmp.ne.s32.totalorder %s108, %s109
      %p121 = scmp.eq.s32.totalorder %s36, 1
      %p122 = por %p120, %p121
      %p124 = scmp.ne.s32.totalorder %s109, %s123
      %p125 = scmp.eq.s32.totalorder %s36, 0
      %p126 = por %p124, %p125
      %s128 = sadd.s32 %s127, 1
      %p131 = scmp.eq.s32.totalorder %s30, 1
      %p132 = scmp.ne.s32.totalorder %s127, %s129
      %p133 = scmp.eq.s32.totalorder %s30, 0
      %p134 = por %p132, %p133
      %p135 = scmp.ne.s32.totalorder %s127, %s129
      %p136 = scmp.eq.s32.totalorder %s35, 1
      %p137 = por %p135, %p136
      %p138 = scmp.ne.s32.totalorder %s129, %s130
      %p139 = scmp.eq.s32.totalorder %s35, 0
      %p140 = por %p138, %p139
      %p141 = scmp.ne.s32.totalorder %s129, %s130
      %p142 = scmp.eq.s32.totalorder %s36, 1
      %p143 = por %p141, %p142
      %p145 = scmp.ne.s32.totalorder %s130, %s144
      %p146 = scmp.eq.s32.totalorder %s36, 0
      %p147 = por %p145, %p146
      %s149 = sadd.s32 %s148, 1
      %p152 = scmp.eq.s32.totalorder %s30, 1
      %p153 = scmp.ne.s32.totalorder %s148, %s150
      %p154 = scmp.eq.s32.totalorder %s30, 0
      %p155 = por %p153, %p154
      %p156 = scmp.ne.s32.totalorder %s148, %s150
      %p157 = scmp.eq.s32.totalorder %s35, 1
      %p158 = por %p156, %p157
      %p159 = scmp.ne.s32.totalorder %s150, %s151
      %p160 = scmp.eq.s32.totalorder %s35, 0
      %p161 = por %p159, %p160
      %p162 = scmp.ne.s32.totalorder %s150, %s151
      %p163 = scmp.eq.s32.totalorder %s36, 1
      %p164 = por %p162, %p163
      %p166 = scmp.ne.s32.totalorder %s151, %s165
      %p167 = scmp.eq.s32.totalorder %s36, 0
      %p168 = por %p166, %p167
      %s170 = sadd.s32 %s169, 1
      %p173 = scmp.eq.s32.totalorder %s30, 1
      %p174 = scmp.ne.s32.totalorder %s169, %s171
      %p175 = scmp.eq.s32.totalorder %s30, 0
      %p176 = por %p174, %p175
      %p177 = scmp.ne.s32.totalorder %s169, %s171
      %p178 = scmp.eq.s32.totalorder %s35, 1
      %p179 = por %p177, %p178
      %p180 = scmp.ne.s32.totalorder %s171, %s172
      %p181 = scmp.eq.s32.totalorder %s35, 0
      %p182 = por %p180, %p181
      %p183 = scmp.ne.s32.totalorder %s171, %s172
      %p184 = scmp.eq.s32.totalorder %s36, 1
      %p185 = por %p183, %p184
      %p187 = scmp.ne.s32.totalorder %s172, %s186
      %p188 = scmp.eq.s32.totalorder %s36, 0
      %p189 = por %p187, %p188
      %s191 = sadd.s32 %s190, 1
      %p194 = scmp.eq.s32.totalorder %s30, 1
      %p195 = scmp.ne.s32.totalorder %s190, %s192
      %p196 = scmp.eq.s32.totalorder %s30, 0
      %p197 = por %p195, %p196
      %p198 = scmp.ne.s32.totalorder %s190, %s192
      %p199 = scmp.eq.s32.totalorder %s35, 1
      %p200 = por %p198, %p199
      %p201 = scmp.ne.s32.totalorder %s192, %s193
      %p202 = scmp.eq.s32.totalorder %s35, 0
      %p203 = por %p201, %p202
      %p204 = scmp.ne.s32.totalorder %s192, %s193
      %p205 = scmp.eq.s32.totalorder %s36, 1
      %p206 = por %p204, %p205
      %p208 = scmp.ne.s32.totalorder %s193, %s207
      %p209 = scmp.eq.s32.totalorder %s36, 0
      %p210 = por %p208, %p209
      %s212 = sadd.s32 %s211, 1
      %p215 = scmp.eq.s32.totalorder %s30, 1
      %p216 = scmp.ne.s32.totalorder %s211, %s213
      %p217 = scmp.eq.s32.totalorder %s30, 0
      %p218 = por %p216, %p217
      %p219 = scmp.ne.s32.totalorder %s211, %s213
      %p220 = scmp.eq.s32.totalorder %s35, 1
      %p221 = por %p219, %p220
      %p222 = scmp.ne.s32.totalorder %s213, %s214
      %p223 = scmp.eq.s32.totalorder %s35, 0
      %p224 = por %p222, %p223
      %p225 = scmp.ne.s32.totalorder %s213, %s214
      %p226 = scmp.eq.s32.totalorder %s36, 1
      %p227 = por %p225, %p226
      %p229 = scmp.ne.s32.totalorder %s214, %s228
      %p230 = scmp.eq.s32.totalorder %s36, 0
      %p231 = por %p229, %p230
      %s233 = sadd.s32 %s232, 1
      %p236 = scmp.eq.s32.totalorder %s30, 1
      %p237 = scmp.ne.s32.totalorder %s232, %s234
      %p238 = scmp.eq.s32.totalorder %s30, 0
      %p239 = por %p237, %p238
      %p240 = scmp.ne.s32.totalorder %s232, %s234
      %p241 = scmp.eq.s32.totalorder %s35, 1
      %p242 = por %p240, %p241
      %p243 = scmp.ne.s32.totalorder %s234, %s235
      %p244 = scmp.eq.s32.totalorder %s35, 0
      %p245 = por %p243, %p244
      %p246 = scmp.ne.s32.totalorder %s234, %s235
      %p247 = scmp.eq.s32.totalorder %s36, 1
      %p248 = por %p246, %p247
      %p250 = scmp.ne.s32.totalorder %s235, %s249
      %p251 = scmp.eq.s32.totalorder %s36, 0
      %p252 = por %p250, %p251
      %s254 = sadd.s32 %s253, 1
      %p257 = scmp.eq.s32.totalorder %s30, 1
      %p258 = scmp.ne.s32.totalorder %s253, %s255
      %p259 = scmp.eq.s32.totalorder %s30, 0
      %p260 = por %p258, %p259
      %p261 = scmp.ne.s32.totalorder %s253, %s255
      %p262 = scmp.eq.s32.totalorder %s35, 1
      %p263 = por %p261, %p262
      %p264 = scmp.ne.s32.totalorder %s255, %s256
      %p265 = scmp.eq.s32.totalorder %s35, 0
      %p266 = por %p264, %p265
      %p267 = scmp.ne.s32.totalorder %s255, %s256
      %p268 = scmp.eq.s32.totalorder %s36, 1
      %p269 = por %p267, %p268
      %p271 = scmp.ne.s32.totalorder %s256, %s270
      %p272 = scmp.eq.s32.totalorder %s36, 0
      %p273 = por %p271, %p272
      %s275 = sadd.s32 %s274, 1
      %p278 = scmp.eq.s32.totalorder %s30, 1
      %p279 = scmp.ne.s32.totalorder %s274, %s276
      %p280 = scmp.eq.s32.totalorder %s30, 0
      %p281 = por %p279, %p280
      %p282 = scmp.ne.s32.totalorder %s274, %s276
      %p283 = scmp.eq.s32.totalorder %s35, 1
      %p284 = por %p282, %p283
      %p285 = scmp.ne.s32.totalorder %s276, %s277
      %p286 = scmp.eq.s32.totalorder %s35, 0
      %p287 = por %p285, %p286
      %p288 = scmp.ne.s32.totalorder %s276, %s277
      %p289 = scmp.eq.s32.totalorder %s36, 1
      %p290 = por %p288, %p289
      %p292 = scmp.ne.s32.totalorder %s277, %s291
      %p293 = scmp.eq.s32.totalorder %s36, 0
      %p294 = por %p292, %p293
      %s295 = ssub.s32 %s30, %s37
      %p296 = scmp.eq.s32.totalorder %s295, 0
      %s298 = sadd.s32 %s297, 1
      %s299 = scalar_select %p296, %s297, %s298
      %p302 = pneg %p296
      %p303 = scmp.eq.s32.totalorder %s30, 1
      %p304 = por %p302, %p303
      %p305 = scmp.ne.s32.totalorder %s297, %s300
      %p306 = scmp.eq.s32.totalorder %s30, 0
      %p307 = por %p305, %p306
      %p308 = scmp.ne.s32.totalorder %s297, %s300
      %p309 = scmp.eq.s32.totalorder %s35, 1
      %p310 = por %p308, %p309
      %p311 = scmp.ne.s32.totalorder %s300, %s301
      %p312 = scmp.eq.s32.totalorder %s35, 0
      %p313 = por %p311, %p312
      %p314 = scmp.ne.s32.totalorder %s300, %s301
      %p315 = scmp.eq.s32.totalorder %s36, 1
      %p316 = por %p314, %p315
      %p318 = scmp.ne.s32.totalorder %s301, %s317
      %p319 = scmp.eq.s32.totalorder %s36, 0
      %p320 = por %p318, %p319
      %p321 = scmp.le.s32.totalorder 1, %s30
      %p322 = scmp.lt.s32.totalorder %s30, 3
      %p323 = pnand %p321, %p322
      %p324 = pneg %p323
      // Predicated region
      $region9: #{transformer_layer_forward.5} parent=5 // pred_check
        _
      $region10: #{transformer_layer_forward.5} parent=5 // pred_check_branch
        %326 = sbr.rel (%p323) target = $region12
      $region11: #{transformer_layer_forward.5} parent=5 // pred_region
        %s327 = ssub.s32 %s30, 1
        // Predicated region
        $region13: #{transformer_layer_forward.5} parent=11 // pred_check
          %p328 = pneg %p77
        $region14: #{transformer_layer_forward.5} parent=11 // pred_check_branch
          %330 = sbr.rel (%p328) target = $region16
        $region15: #{transformer_layer_forward.5} parent=11 // pred_region
          %s332 = ssub.s32 16, 16
          %333 = vsyncadd [#allocation6], %s332
          %s335 = sshll.u32 [#allocation5], 4
          %s336 = int_to_ptr.vmem [resolvable:$true] %s335
          %338 = dma.hbm_to_vmem [thread:$0]  %s1, 16, %s336, [#allocation6]
        $region16: #{transformer_layer_forward.5} parent=11 // pred_fallthru
          _
        // Predicated region
        $region17: #{transformer_layer_forward.5} parent=11 // pred_check
          %p339 = pneg %p98
        $region18: #{transformer_layer_forward.5} parent=11 // pred_check_branch
          %341 = sbr.rel (%p339) target = $region20
        $region19: #{transformer_layer_forward.5} parent=11 // pred_region
          %s343 = ssub.s32 16, 16
          %344 = vsyncadd [#allocation6], %s343
          %s346 = sshll.u32 [#allocation7], 4
          %s347 = int_to_ptr.vmem [resolvable:$true] %s346
          %349 = dma.hbm_to_vmem [thread:$0]  %s2, 16, %s347, [#allocation6]
        $region20: #{transformer_layer_forward.5} parent=11 // pred_fallthru
          _
        // Predicated region
        $region21: #{transformer_layer_forward.5} parent=11 // pred_check
          %p350 = pneg %p119
        $region22: #{transformer_layer_forward.5} parent=11 // pred_check_branch
          %352 = sbr.rel (%p350) target = $region24
        $region23: #{transformer_layer_forward.5} parent=11 // pred_region
          %s354 = ssub.s32 24576, 24576
          %355 = vsyncadd [#allocation9], %s354
          %s356 = sshll.u32 [#allocation8], 4
          %s357 = int_to_ptr.vmem [resolvable:$true] %s356
          %362 = dma.hbm_to_vmem [thread:$0]  %s3, 24576, %s357, [#allocation9], 1536, 1536, 96
        $region24: #{transformer_layer_forward.5} parent=11 // pred_fallthru
          _
        // Predicated region
        $region25: #{transformer_layer_forward.5} parent=11 // pred_check
          %p363 = pneg %p140
        $region26: #{transformer_layer_forward.5} parent=11 // pred_check_branch
          %365 = sbr.rel (%p363) target = $region28
        $region27: #{transformer_layer_forward.5} parent=11 // pred_region
          %s367 = ssub.s32 8192, 8192
          %368 = vsyncadd [#allocation9], %s367
          %s369 = sshll.u32 [#allocation10], 4
          %s370 = int_to_ptr.vmem [resolvable:$true] %s369
          %375 = dma.hbm_to_vmem [thread:$0]  %s4, 8192, %s370, [#allocation9], 128, 128, 8
        $region28: #{transformer_layer_forward.5} parent=11 // pred_fallthru
          _
        // Predicated region
        $region29: #{transformer_layer_forward.5} parent=11 // pred_check
          %p376 = pneg %p161
        $region30: #{transformer_layer_forward.5} parent=11 // pred_check_branch
          %378 = sbr.rel (%p376) target = $region32
        $region31: #{transformer_layer_forward.5} parent=11 // pred_region
          %s380 = ssub.s32 16, 16
          %381 = vsyncadd [#allocation12], %s380
          %s383 = sshll.u32 [#allocation11], 4
          %s384 = int_to_ptr.vmem [resolvable:$true] %s383
          %386 = dma.hbm_to_vmem [thread:$0]  %s5, 16, %s384, [#allocation12]
        $region32: #{transformer_layer_forward.5} parent=11 // pred_fallthru
          _
        // Predicated region
        $region33: #{transformer_layer_forward.5} parent=11 // pred_check
          %p387 = pneg %p182
        $region34: #{transformer_layer_forward.5} parent=11 // pred_check_branch
          %389 = sbr.rel (%p387) target = $region36
        $region35: #{transformer_layer_forward.5} parent=11 // pred_region
          %s391 = ssub.s32 16, 16
          %392 = vsyncadd [#allocation12], %s391
          %s394 = sshll.u32 [#allocation13], 4
          %s395 = int_to_ptr.vmem [resolvable:$true] %s394
          %397 = dma.hbm_to_vmem [thread:$0]  %s6, 16, %s395, [#allocation12]
        $region36: #{transformer_layer_forward.5} parent=11 // pred_fallthru
          _
        // Predicated region
        $region37: #{transformer_layer_forward.5} parent=11 // pred_check
          %p398 = pneg %p203
        $region38: #{transformer_layer_forward.5} parent=11 // pred_check_branch
          %400 = sbr.rel (%p398) target = $region40
        $region39: #{transformer_layer_forward.5} parent=11 // pred_region
          %s402 = ssub.s32 16, 16
          %403 = vsyncadd [#allocation15], %s402
          %s405 = sshll.u32 [#allocation14], 4
          %s406 = int_to_ptr.vmem [resolvable:$true] %s405
          %408 = dma.hbm_to_vmem [thread:$0]  %s7, 16, %s406, [#allocation15]
        $region40: #{transformer_layer_forward.5} parent=11 // pred_fallthru
          _
        // Predicated region
        $region41: #{transformer_layer_forward.5} parent=11 // pred_check
          %p409 = pneg %p224
        $region42: #{transformer_layer_forward.5} parent=11 // pred_check_branch
          %411 = sbr.rel (%p409) target = $region44
        $region43: #{transformer_layer_forward.5} parent=11 // pred_region
          %s413 = ssub.s32 6144, 6144
          %414 = vsyncadd [#allocation15], %s413
          %s415 = sshll.u32 [#allocation16], 4
          %s416 = int_to_ptr.vmem [resolvable:$true] %s415
          %421 = dma.hbm_to_vmem [thread:$0]  %s8, 6144, %s416, [#allocation15], 384, 384, 24
        $region44: #{transformer_layer_forward.5} parent=11 // pred_fallthru
          _
        // Predicated region
        $region45: #{transformer_layer_forward.5} parent=11 // pred_check
          %p422 = pneg %p245
        $region46: #{transformer_layer_forward.5} parent=11 // pred_check_branch
          %424 = sbr.rel (%p422) target = $region48
        $region47: #{transformer_layer_forward.5} parent=11 // pred_region
          %s426 = ssub.s32 48, 48
          %427 = vsyncadd [#allocation18], %s426
          %s429 = sshll.u32 [#allocation17], 4
          %s430 = int_to_ptr.vmem [resolvable:$true] %s429
          %432 = dma.hbm_to_vmem [thread:$0]  %s9, 48, %s430, [#allocation18]
        $region48: #{transformer_layer_forward.5} parent=11 // pred_fallthru
          _
        // Predicated region
        $region49: #{transformer_layer_forward.5} parent=11 // pred_check
          %p433 = pneg %p266
        $region50: #{transformer_layer_forward.5} parent=11 // pred_check_branch
          %435 = sbr.rel (%p433) target = $region52
        $region51: #{transformer_layer_forward.5} parent=11 // pred_region
          %s437 = ssub.s32 6144, 6144
          %438 = vsyncadd [#allocation18], %s437
          %s439 = sshll.u32 [#allocation19], 4
          %s440 = int_to_ptr.vmem [resolvable:$true] %s439
          %445 = dma.hbm_to_vmem [thread:$0]  %s10, 6144, %s440, [#allocation18], 128, 128, 8
        $region52: #{transformer_layer_forward.5} parent=11 // pred_fallthru
          _
        // Predicated region
        $region53: #{transformer_layer_forward.5} parent=11 // pred_check
          %p446 = pneg %p287
        $region54: #{transformer_layer_forward.5} parent=11 // pred_check_branch
          %448 = sbr.rel (%p446) target = $region56
        $region55: #{transformer_layer_forward.5} parent=11 // pred_region
          %s450 = ssub.s32 16, 16
          %451 = vsyncadd [#allocation21], %s450
          %s453 = sshll.u32 [#allocation20], 4
          %s454 = int_to_ptr.vmem [resolvable:$true] %s453
          %456 = dma.hbm_to_vmem [thread:$0]  %s11, 16, %s454, [#allocation21]
        $region56: #{transformer_layer_forward.5} parent=11 // pred_fallthru
          _
      $region12: #{transformer_layer_forward.5} parent=5 // pred_fallthru
        _
      %p457 = scmp.lt.s32.totalorder %s30, 2
      // Predicated region
      $region57: #{transformer_layer_forward.5} parent=5 // pred_check
        %p458 = pneg %p457
      $region58: #{transformer_layer_forward.5} parent=5 // pred_check_branch
        %460 = sbr.rel (%p458) target = $region60
      $region59: #{transformer_layer_forward.5} parent=5 // pred_region
        // Predicated region
        $region61: #{transformer_layer_forward.5} parent=59 // pred_check
          %p461 = pneg %p50
        $region62: #{transformer_layer_forward.5} parent=59 // pred_check_branch
          %463 = sbr.rel (%p461) target = $region64
        $region63: #{transformer_layer_forward.5} parent=59 // pred_region
          %s464 = sand.u32 %s40, 1
          %s465 = scalar_lea.sflag [#allocation3], %s464
          %s466 = sand.u32 %s40, 1
          %s467 = smul.addr %s466, 16
          %s468 = scalar_lea.vmem [#allocation2], %s467
          %s470 = ssub.s32 256, 256
          %471 = vsyncadd %s465, %s470
          %s472 = smul.addr %s30, 2
          %s473 = smul.addr %s472, 128
          %s474 = scalar_lea.hbm %s0, %s473
          %s475 = sshll.u32 %s468, 4
          %s476 = int_to_ptr.vmem [resolvable:$true] %s475
          %481 = dma.hbm_to_vmem [thread:$0]  %s474, 256, %s476, %s465, 128, 128, 8
        $region64: #{transformer_layer_forward.5} parent=59 // pred_fallthru
          _
      $region60: #{transformer_layer_forward.5} parent=5 // pred_fallthru
        _
      %p482 = scmp.le.s32.totalorder 1, %s30
      %p483 = scmp.lt.s32.totalorder %s30, 3
      %p484 = pnand %p482, %p483
      %p485 = pneg %p484
      // Predicated region
      $region65: #{transformer_layer_forward.5} parent=5 // pred_check
        _
      $region66: #{transformer_layer_forward.5} parent=5 // pred_check_branch
        %487 = sbr.rel (%p484) target = $region68
      $region67: #{transformer_layer_forward.5} parent=5 // pred_region
        %s488 = ssub.s32 %s30, 1
        %s489 = sand.u32 %s43, 1
        %s490 = scalar_lea.sflag [#allocation3], %s489
        %s491 = sand.u32 %s43, 1
        %s492 = smul.addr %s491, 16
        %s493 = scalar_lea.vmem [#allocation2], %s492
        // Predicated region
        $region69: #{transformer_layer_forward.5} parent=67 // pred_check
          %p494 = pneg %p56
        $region70: #{transformer_layer_forward.5} parent=67 // pred_check_branch
          %496 = sbr.rel (%p494) target = $region72
        $region71: #{transformer_layer_forward.5} parent=67 // pred_region
          %497 = dma.done %s490, 256
        $region72: #{transformer_layer_forward.5} parent=67 // pred_fallthru
          _
        // Predicated region
        $region73: #{transformer_layer_forward.5} parent=67 // pred_check
          %p498 = pneg %p77
        $region74: #{transformer_layer_forward.5} parent=67 // pred_check_branch
          %500 = sbr.rel (%p498) target = $region76
        $region75: #{transformer_layer_forward.5} parent=67 // pred_region
          %501 = dma.done [#allocation6], 16
        $region76: #{transformer_layer_forward.5} parent=67 // pred_fallthru
          _
        // Predicated region
        $region77: #{transformer_layer_forward.5} parent=67 // pred_check
          %p502 = pneg %p98
        $region78: #{transformer_layer_forward.5} parent=67 // pred_check_branch
          %504 = sbr.rel (%p502) target = $region80
        $region79: #{transformer_layer_forward.5} parent=67 // pred_region
          %505 = dma.done [#allocation6], 16
        $region80: #{transformer_layer_forward.5} parent=67 // pred_fallthru
          _
        // Predicated region
        $region81: #{transformer_layer_forward.5} parent=67 // pred_check
          %p506 = pneg %p119
        $region82: #{transformer_layer_forward.5} parent=67 // pred_check_branch
          %508 = sbr.rel (%p506) target = $region84
        $region83: #{transformer_layer_forward.5} parent=67 // pred_region
          %509 = dma.done [#allocation9], 24576
        $region84: #{transformer_layer_forward.5} parent=67 // pred_fallthru
          _
        // Predicated region
        $region85: #{transformer_layer_forward.5} parent=67 // pred_check
          %p510 = pneg %p140
        $region86: #{transformer_layer_forward.5} parent=67 // pred_check_branch
          %512 = sbr.rel (%p510) target = $region88
        $region87: #{transformer_layer_forward.5} parent=67 // pred_region
          %513 = dma.done [#allocation9], 8192
        $region88: #{transformer_layer_forward.5} parent=67 // pred_fallthru
          _
        // Predicated region
        $region89: #{transformer_layer_forward.5} parent=67 // pred_check
          %p514 = pneg %p161
        $region90: #{transformer_layer_forward.5} parent=67 // pred_check_branch
          %516 = sbr.rel (%p514) target = $region92
        $region91: #{transformer_layer_forward.5} parent=67 // pred_region
          %517 = dma.done [#allocation12], 16
        $region92: #{transformer_layer_forward.5} parent=67 // pred_fallthru
          _
        // Predicated region
        $region93: #{transformer_layer_forward.5} parent=67 // pred_check
          %p518 = pneg %p182
        $region94: #{transformer_layer_forward.5} parent=67 // pred_check_branch
          %520 = sbr.rel (%p518) target = $region96
        $region95: #{transformer_layer_forward.5} parent=67 // pred_region
          %521 = dma.done [#allocation12], 16
        $region96: #{transformer_layer_forward.5} parent=67 // pred_fallthru
          _
        // Predicated region
        $region97: #{transformer_layer_forward.5} parent=67 // pred_check
          %p522 = pneg %p203
        $region98: #{transformer_layer_forward.5} parent=67 // pred_check_branch
          %524 = sbr.rel (%p522) target = $region100
        $region99: #{transformer_layer_forward.5} parent=67 // pred_region
          %525 = dma.done [#allocation15], 16
        $region100: #{transformer_layer_forward.5} parent=67 // pred_fallthru
          _
        // Predicated region
        $region101: #{transformer_layer_forward.5} parent=67 // pred_check
          %p526 = pneg %p224
        $region102: #{transformer_layer_forward.5} parent=67 // pred_check_branch
          %528 = sbr.rel (%p526) target = $region104
        $region103: #{transformer_layer_forward.5} parent=67 // pred_region
          %529 = dma.done [#allocation15], 6144
        $region104: #{transformer_layer_forward.5} parent=67 // pred_fallthru
          _
        // Predicated region
        $region105: #{transformer_layer_forward.5} parent=67 // pred_check
          %p530 = pneg %p245
        $region106: #{transformer_layer_forward.5} parent=67 // pred_check_branch
          %532 = sbr.rel (%p530) target = $region108
        $region107: #{transformer_layer_forward.5} parent=67 // pred_region
          %533 = dma.done [#allocation18], 48
        $region108: #{transformer_layer_forward.5} parent=67 // pred_fallthru
          _
        // Predicated region
        $region109: #{transformer_layer_forward.5} parent=67 // pred_check
          %p534 = pneg %p266
        $region110: #{transformer_layer_forward.5} parent=67 // pred_check_branch
          %536 = sbr.rel (%p534) target = $region112
        $region111: #{transformer_layer_forward.5} parent=67 // pred_region
          %537 = dma.done [#allocation18], 6144
        $region112: #{transformer_layer_forward.5} parent=67 // pred_fallthru
          _
        // Predicated region
        $region113: #{transformer_layer_forward.5} parent=67 // pred_check
          %p538 = pneg %p287
        $region114: #{transformer_layer_forward.5} parent=67 // pred_check_branch
          %540 = sbr.rel (%p538) target = $region116
        $region115: #{transformer_layer_forward.5} parent=67 // pred_region
          %541 = dma.done [#allocation21], 16
        $region116: #{transformer_layer_forward.5} parent=67 // pred_fallthru
          _
        %s542 = sand.u32 %s43, 1
        %s543 = scalar_lea.sflag [#allocation3], %s542
        %s544 = sand.u32 %s43, 1
        %s545 = smul.addr %s544, 16
        %s546 = scalar_lea.vmem [#allocation2], %s545
        %p547 = pneg %p56
        %p548 = pneg %p53
        %p549 = pneg %p77
        %p550 = pneg %p74
        %p551 = pneg %p98
        %p552 = pneg %p95
        %p553 = pneg %p119
        %p554 = pneg %p116
        %p555 = pneg %p140
        %p556 = pneg %p137
        %p557 = pneg %p161
        %p558 = pneg %p158
        %p559 = pneg %p182
        %p560 = pneg %p179
        %p561 = pneg %p203
        %p562 = pneg %p200
        %p563 = pneg %p224
        %p564 = pneg %p221
        %p565 = pneg %p245
        %p566 = pneg %p242
        %p567 = pneg %p266
        %p568 = pneg %p263
        %p569 = pneg %p287
        %p570 = pneg %p284
        %p571 = pneg %p313
        %p572 = pneg %p310
        %s573 = sand.u32 %s300, 1
        %s574 = scalar_lea.sflag [#allocation4], %s573
        %s575 = sand.u32 %s300, 1
        %s576 = smul.addr %s575, 16
        %s577 = scalar_lea.vmem [#allocation22], %s576
        %v579 = vld [vmem:[%s493] sm:$0xff]
        %v580 = vld [vmem:[%s493 + $0x8] sm:$0xff]
        %v581 = vld [vmem:[#allocation5] sm:$0x1]
        %v582 = vld [vmem:[#allocation7] sm:$0x1]
        %583 = vadd.xlane.f32.xlu0 %v579
        %v584 = vpop.xlane.xlu0 %583
        %585 = vadd.xlane.f32.xlu0 %v580
        %v586 = vpop.xlane.xlu0 %585
        %v587 = vmul.f32 %v584, 0.010416667
        %v588 = vmul.f32 %v586, 0.010416667
        %v589 = vmul.f32 %v579, %v579
        %v590 = vmul.f32 %v580, %v580
        %591 = vadd.xlane.f32.xlu0 %v589
        %v592 = vpop.xlane.xlu0 %591
        %593 = vadd.xlane.f32.xlu0 %v590
        %v594 = vpop.xlane.xlu0 %593
        %v595 = vmul.f32 %v592, 0.010416667
        %v596 = vmul.f32 %v594, 0.010416667
        %v597 = vmul.f32 %v587, %v587
        %v598 = vmul.f32 %v588, %v588
        %v599 = vsub.f32 %v595, %v597
        %v600 = vsub.f32 %v596, %v598
        %v601 = vmax.f32 %v599, 0.0
        %v602 = vmax.f32 %v600, 0.0
        %v603 = vsub.f32 %v579, %v587
        %v604 = vsub.f32 %v580, %v588
        %v605 = vadd.f32 %v601, 1e-05
        %v606 = vadd.f32 %v602, 1e-05
        %v607 = vrsqrt.pop %v605
        %v608 = vrsqrt.pop %v606
        %v609 = vmul.f32 %v603, %v607
        %v610 = vmul.f32 %v604, %v608
        %v612 = vlaneseq
        %v613 = vshrl.u32 %v612, 7
        %v614 = vsub.s32 0, %v613
        %v615 = vrot.slane %v581, %v614
        %v617 = vmul.f32 %v609, %v615
        %v618 = vmul.f32 %v610, %v615
        %v620 = vlaneseq
        %v621 = vshrl.u32 %v620, 7
        %v622 = vsub.s32 0, %v621
        %v623 = vrot.slane %v582, %v622
        %v625 = vadd.f32 %v617, %v623
        %v626 = vadd.f32 %v618, %v623
        %v627 = vld [vmem:[#allocation8] sm:$0xff]
        %v628 = vld [vmem:[#allocation8 + $0x8] sm:$0xff]
        %v629 = vld [vmem:[#allocation8 + $0x10] sm:$0xff]
        %v630 = vld [vmem:[#allocation8 + $0x18] sm:$0xff]
        %v631 = vld [vmem:[#allocation8 + $0x20] sm:$0xff]
        %v632 = vld [vmem:[#allocation8 + $0x28] sm:$0xff]
        %v633 = vld [vmem:[#allocation8 + $0x30] sm:$0xff]
        %v634 = vld [vmem:[#allocation8 + $0x38] sm:$0xff]
        %v635 = vld [vmem:[#allocation8 + $0x40] sm:$0xff]
        %v636 = vld [vmem:[#allocation8 + $0x48] sm:$0xff]
        %v637 = vld [vmem:[#allocation8 + $0x50] sm:$0xff]
        %v638 = vld [vmem:[#allocation8 + $0x58] sm:$0xff]
        %v639 = vld [vmem:[#allocation8 + $0x60] sm:$0xff]
        %v640 = vld [vmem:[#allocation8 + $0x68] sm:$0xff]
        %v641 = vld [vmem:[#allocation8 + $0x70] sm:$0xff]
        %v642 = vld [vmem:[#allocation8 + $0x78] sm:$0xff]
        %v643 = vld [vmem:[#allocation8 + $0x80] sm:$0xff]
        %v644 = vld [vmem:[#allocation8 + $0x88] sm:$0xff]
        %v645 = vld [vmem:[#allocation8 + $0x90] sm:$0xff]
        %v646 = vld [vmem:[#allocation8 + $0x98] sm:$0xff]
        %v647 = vld [vmem:[#allocation8 + $0xa0] sm:$0xff]
        %v648 = vld [vmem:[#allocation8 + $0xa8] sm:$0xff]
        %v649 = vld [vmem:[#allocation8 + $0xb0] sm:$0xff]
        %v650 = vld [vmem:[#allocation8 + $0xb8] sm:$0xff]
        %v651 = vld [vmem:[#allocation8 + $0xc0] sm:$0xff]
        %v652 = vld [vmem:[#allocation8 + $0xc8] sm:$0xff]
        %v653 = vld [vmem:[#allocation8 + $0xd0] sm:$0xff]
        %v654 = vld [vmem:[#allocation8 + $0xd8] sm:$0xff]
        %v655 = vld [vmem:[#allocation8 + $0xe0] sm:$0xff]
        %v656 = vld [vmem:[#allocation8 + $0xe8] sm:$0xff]
        %v657 = vld [vmem:[#allocation8 + $0xf0] sm:$0xff]
        %v658 = vld [vmem:[#allocation8 + $0xf8] sm:$0xff]
        %v659 = vld [vmem:[#allocation8 + $0x100] sm:$0xff]
        %v660 = vld [vmem:[#allocation8 + $0x108] sm:$0xff]
        %v661 = vld [vmem:[#allocation8 + $0x110] sm:$0xff]
        %v662 = vld [vmem:[#allocation8 + $0x118] sm:$0xff]
        %v663 = vld [vmem:[#allocation8 + $0x120] sm:$0xff]
        %v664 = vld [vmem:[#allocation8 + $0x128] sm:$0xff]
        %v665 = vld [vmem:[#allocation8 + $0x130] sm:$0xff]
        %v666 = vld [vmem:[#allocation8 + $0x138] sm:$0xff]
        %v667 = vld [vmem:[#allocation8 + $0x140] sm:$0xff]
        %v668 = vld [vmem:[#allocation8 + $0x148] sm:$0xff]
        %v669 = vld [vmem:[#allocation8 + $0x150] sm:$0xff]
        %v670 = vld [vmem:[#allocation8 + $0x158] sm:$0xff]
        %v671 = vld [vmem:[#allocation8 + $0x160] sm:$0xff]
        %v672 = vld [vmem:[#allocation8 + $0x168] sm:$0xff]
        %v673 = vld [vmem:[#allocation8 + $0x170] sm:$0xff]
        %v674 = vld [vmem:[#allocation8 + $0x178] sm:$0xff]
        %v675 = vld [vmem:[#allocation8 + $0x180] sm:$0xff]
        %v676 = vld [vmem:[#allocation8 + $0x188] sm:$0xff]
        %v677 = vld [vmem:[#allocation8 + $0x190] sm:$0xff]
        %v678 = vld [vmem:[#allocation8 + $0x198] sm:$0xff]
        %v679 = vld [vmem:[#allocation8 + $0x1a0] sm:$0xff]
        %v680 = vld [vmem:[#allocation8 + $0x1a8] sm:$0xff]
        %v681 = vld [vmem:[#allocation8 + $0x1b0] sm:$0xff]
        %v682 = vld [vmem:[#allocation8 + $0x1b8] sm:$0xff]
        %v683 = vld [vmem:[#allocation8 + $0x1c0] sm:$0xff]
        %v684 = vld [vmem:[#allocation8 + $0x1c8] sm:$0xff]
        %v685 = vld [vmem:[#allocation8 + $0x1d0] sm:$0xff]
        %v686 = vld [vmem:[#allocation8 + $0x1d8] sm:$0xff]
        %v687 = vld [vmem:[#allocation8 + $0x1e0] sm:$0xff]
        %v688 = vld [vmem:[#allocation8 + $0x1e8] sm:$0xff]
        %v689 = vld [vmem:[#allocation8 + $0x1f0] sm:$0xff]
        %v690 = vld [vmem:[#allocation8 + $0x1f8] sm:$0xff]
        %v691 = vld [vmem:[#allocation8 + $0x200] sm:$0xff]
        %v692 = vld [vmem:[#allocation8 + $0x208] sm:$0xff]
        %v693 = vld [vmem:[#allocation8 + $0x210] sm:$0xff]
        %v694 = vld [vmem:[#allocation8 + $0x218] sm:$0xff]
        %v695 = vld [vmem:[#allocation8 + $0x220] sm:$0xff]
        %v696 = vld [vmem:[#allocation8 + $0x228] sm:$0xff]
        %v697 = vld [vmem:[#allocation8 + $0x230] sm:$0xff]
        %v698 = vld [vmem:[#allocation8 + $0x238] sm:$0xff]
        %v699 = vld [vmem:[#allocation8 + $0x240] sm:$0xff]
        %v700 = vld [vmem:[#allocation8 + $0x248] sm:$0xff]
        %v701 = vld [vmem:[#allocation8 + $0x250] sm:$0xff]
        %v702 = vld [vmem:[#allocation8 + $0x258] sm:$0xff]
        %v703 = vld [vmem:[#allocation8 + $0x260] sm:$0xff]
        %v704 = vld [vmem:[#allocation8 + $0x268] sm:$0xff]
        %v705 = vld [vmem:[#allocation8 + $0x270] sm:$0xff]
        %v706 = vld [vmem:[#allocation8 + $0x278] sm:$0xff]
        %v707 = vld [vmem:[#allocation8 + $0x280] sm:$0xff]
        %v708 = vld [vmem:[#allocation8 + $0x288] sm:$0xff]
        %v709 = vld [vmem:[#allocation8 + $0x290] sm:$0xff]
        %v710 = vld [vmem:[#allocation8 + $0x298] sm:$0xff]
        %v711 = vld [vmem:[#allocation8 + $0x2a0] sm:$0xff]
        %v712 = vld [vmem:[#allocation8 + $0x2a8] sm:$0xff]
        %v713 = vld [vmem:[#allocation8 + $0x2b0] sm:$0xff]
        %v714 = vld [vmem:[#allocation8 + $0x2b8] sm:$0xff]
        %v715 = vld [vmem:[#allocation8 + $0x2c0] sm:$0xff]
        %v716 = vld [vmem:[#allocation8 + $0x2c8] sm:$0xff]
        %v717 = vld [vmem:[#allocation8 + $0x2d0] sm:$0xff]
        %v718 = vld [vmem:[#allocation8 + $0x2d8] sm:$0xff]
        %v719 = vld [vmem:[#allocation8 + $0x2e0] sm:$0xff]
        %v720 = vld [vmem:[#allocation8 + $0x2e8] sm:$0xff]
        %v721 = vld [vmem:[#allocation8 + $0x2f0] sm:$0xff]
        %v722 = vld [vmem:[#allocation8 + $0x2f8] sm:$0xff]
        %v723 = vld [vmem:[#allocation8 + $0x300] sm:$0xff]
        %v724 = vld [vmem:[#allocation8 + $0x308] sm:$0xff]
        %v725 = vld [vmem:[#allocation8 + $0x310] sm:$0xff]
        %v726 = vld [vmem:[#allocation8 + $0x318] sm:$0xff]
        %v727 = vld [vmem:[#allocation8 + $0x320] sm:$0xff]
        %v728 = vld [vmem:[#allocation8 + $0x328] sm:$0xff]
        %v729 = vld [vmem:[#allocation8 + $0x330] sm:$0xff]
        %v730 = vld [vmem:[#allocation8 + $0x338] sm:$0xff]
        %v731 = vld [vmem:[#allocation8 + $0x340] sm:$0xff]
        %v732 = vld [vmem:[#allocation8 + $0x348] sm:$0xff]
        %v733 = vld [vmem:[#allocation8 + $0x350] sm:$0xff]
        %v734 = vld [vmem:[#allocation8 + $0x358] sm:$0xff]
        %v735 = vld [vmem:[#allocation8 + $0x360] sm:$0xff]
        %v736 = vld [vmem:[#allocation8 + $0x368] sm:$0xff]
        %v737 = vld [vmem:[#allocation8 + $0x370] sm:$0xff]
        %v738 = vld [vmem:[#allocation8 + $0x378] sm:$0xff]
        %v739 = vld [vmem:[#allocation8 + $0x380] sm:$0xff]
        %v740 = vld [vmem:[#allocation8 + $0x388] sm:$0xff]
        %v741 = vld [vmem:[#allocation8 + $0x390] sm:$0xff]
        %v742 = vld [vmem:[#allocation8 + $0x398] sm:$0xff]
        %v743 = vld [vmem:[#allocation8 + $0x3a0] sm:$0xff]
        %v744 = vld [vmem:[#allocation8 + $0x3a8] sm:$0xff]
        %v745 = vld [vmem:[#allocation8 + $0x3b0] sm:$0xff]
        %v746 = vld [vmem:[#allocation8 + $0x3b8] sm:$0xff]
        %v747 = vld [vmem:[#allocation8 + $0x3c0] sm:$0xff]
        %v748 = vld [vmem:[#allocation8 + $0x3c8] sm:$0xff]
        %v749 = vld [vmem:[#allocation8 + $0x3d0] sm:$0xff]
        %v750 = vld [vmem:[#allocation8 + $0x3d8] sm:$0xff]
        %v751 = vld [vmem:[#allocation8 + $0x3e0] sm:$0xff]
        %v752 = vld [vmem:[#allocation8 + $0x3e8] sm:$0xff]
        %v753 = vld [vmem:[#allocation8 + $0x3f0] sm:$0xff]
        %v754 = vld [vmem:[#allocation8 + $0x3f8] sm:$0xff]
        %v755 = vld [vmem:[#allocation8 + $0x400] sm:$0xff]
        %v756 = vld [vmem:[#allocation8 + $0x408] sm:$0xff]
        %v757 = vld [vmem:[#allocation8 + $0x410] sm:$0xff]
        %v758 = vld [vmem:[#allocation8 + $0x418] sm:$0xff]
        %v759 = vld [vmem:[#allocation8 + $0x420] sm:$0xff]
        %v760 = vld [vmem:[#allocation8 + $0x428] sm:$0xff]
        %v761 = vld [vmem:[#allocation8 + $0x430] sm:$0xff]
        %v762 = vld [vmem:[#allocation8 + $0x438] sm:$0xff]
        %v763 = vld [vmem:[#allocation8 + $0x440] sm:$0xff]
        %v764 = vld [vmem:[#allocation8 + $0x448] sm:$0xff]
        %v765 = vld [vmem:[#allocation8 + $0x450] sm:$0xff]
        %v766 = vld [vmem:[#allocation8 + $0x458] sm:$0xff]
        %v767 = vld [vmem:[#allocation8 + $0x460] sm:$0xff]
        %v768 = vld [vmem:[#allocation8 + $0x468] sm:$0xff]
        %v769 = vld [vmem:[#allocation8 + $0x470] sm:$0xff]
        %v770 = vld [vmem:[#allocation8 + $0x478] sm:$0xff]
        %v771 = vld [vmem:[#allocation8 + $0x480] sm:$0xff]
        %v772 = vld [vmem:[#allocation8 + $0x488] sm:$0xff]
        %v773 = vld [vmem:[#allocation8 + $0x490] sm:$0xff]
        %v774 = vld [vmem:[#allocation8 + $0x498] sm:$0xff]
        %v775 = vld [vmem:[#allocation8 + $0x4a0] sm:$0xff]
        %v776 = vld [vmem:[#allocation8 + $0x4a8] sm:$0xff]
        %v777 = vld [vmem:[#allocation8 + $0x4b0] sm:$0xff]
        %v778 = vld [vmem:[#allocation8 + $0x4b8] sm:$0xff]
        %v779 = vld [vmem:[#allocation8 + $0x4c0] sm:$0xff]
        %v780 = vld [vmem:[#allocation8 + $0x4c8] sm:$0xff]
        %v781 = vld [vmem:[#allocation8 + $0x4d0] sm:$0xff]
        %v782 = vld [vmem:[#allocation8 + $0x4d8] sm:$0xff]
        %v783 = vld [vmem:[#allocation8 + $0x4e0] sm:$0xff]
        %v784 = vld [vmem:[#allocation8 + $0x4e8] sm:$0xff]
        %v785 = vld [vmem:[#allocation8 + $0x4f0] sm:$0xff]
        %v786 = vld [vmem:[#allocation8 + $0x4f8] sm:$0xff]
        %v787 = vld [vmem:[#allocation8 + $0x500] sm:$0xff]
        %v788 = vld [vmem:[#allocation8 + $0x508] sm:$0xff]
        %v789 = vld [vmem:[#allocation8 + $0x510] sm:$0xff]
        %v790 = vld [vmem:[#allocation8 + $0x518] sm:$0xff]
        %v791 = vld [vmem:[#allocation8 + $0x520] sm:$0xff]
        %v792 = vld [vmem:[#allocation8 + $0x528] sm:$0xff]
        %v793 = vld [vmem:[#allocation8 + $0x530] sm:$0xff]
        %v794 = vld [vmem:[#allocation8 + $0x538] sm:$0xff]
        %v795 = vld [vmem:[#allocation8 + $0x540] sm:$0xff]
        %v796 = vld [vmem:[#allocation8 + $0x548] sm:$0xff]
        %v797 = vld [vmem:[#allocation8 + $0x550] sm:$0xff]
        %v798 = vld [vmem:[#allocation8 + $0x558] sm:$0xff]
        %v799 = vld [vmem:[#allocation8 + $0x560] sm:$0xff]
        %v800 = vld [vmem:[#allocation8 + $0x568] sm:$0xff]
        %v801 = vld [vmem:[#allocation8 + $0x570] sm:$0xff]
        %v802 = vld [vmem:[#allocation8 + $0x578] sm:$0xff]
        %v803 = vld [vmem:[#allocation8 + $0x580] sm:$0xff]
        %v804 = vld [vmem:[#allocation8 + $0x588] sm:$0xff]
        %v805 = vld [vmem:[#allocation8 + $0x590] sm:$0xff]
        %v806 = vld [vmem:[#allocation8 + $0x598] sm:$0xff]
        %v807 = vld [vmem:[#allocation8 + $0x5a0] sm:$0xff]
        %v808 = vld [vmem:[#allocation8 + $0x5a8] sm:$0xff]
        %v809 = vld [vmem:[#allocation8 + $0x5b0] sm:$0xff]
        %v810 = vld [vmem:[#allocation8 + $0x5b8] sm:$0xff]
        %v811 = vld [vmem:[#allocation8 + $0x5c0] sm:$0xff]
        %v812 = vld [vmem:[#allocation8 + $0x5c8] sm:$0xff]
        %v813 = vld [vmem:[#allocation8 + $0x5d0] sm:$0xff]
        %v814 = vld [vmem:[#allocation8 + $0x5d8] sm:$0xff]
        %v815 = vld [vmem:[#allocation8 + $0x5e0] sm:$0xff]
        %v816 = vld [vmem:[#allocation8 + $0x5e8] sm:$0xff]
        %v817 = vld [vmem:[#allocation8 + $0x5f0] sm:$0xff]
        %v818 = vld [vmem:[#allocation8 + $0x5f8] sm:$0xff]
        %v819 = vpack.c.bf16 %v626, %v625
        %v820 = vpack.c.bf16 %v639, %v627
        %v821 = vpack.c.bf16 %v640, %v628
        %v822 = vpack.c.bf16 %v641, %v629
        %v823 = vpack.c.bf16 %v642, %v630
        %v824 = vpack.c.bf16 %v643, %v631
        %v825 = vpack.c.bf16 %v644, %v632
        %v826 = vpack.c.bf16 %v645, %v633
        %v827 = vpack.c.bf16 %v646, %v634
        %v828 = vpack.c.bf16 %v647, %v635
        %v829 = vpack.c.bf16 %v648, %v636
        %v830 = vpack.c.bf16 %v649, %v637
        %v831 = vpack.c.bf16 %v650, %v638
        %v832 = vpack.c.bf16 %v663, %v651
        %v833 = vpack.c.bf16 %v664, %v652
        %v834 = vpack.c.bf16 %v665, %v653
        %v835 = vpack.c.bf16 %v666, %v654
        %v836 = vpack.c.bf16 %v667, %v655
        %v837 = vpack.c.bf16 %v668, %v656
        %v838 = vpack.c.bf16 %v669, %v657
        %v839 = vpack.c.bf16 %v670, %v658
        %v840 = vpack.c.bf16 %v671, %v659
        %v841 = vpack.c.bf16 %v672, %v660
        %v842 = vpack.c.bf16 %v673, %v661
        %v843 = vpack.c.bf16 %v674, %v662
        %v844 = vpack.c.bf16 %v687, %v675
        %v845 = vpack.c.bf16 %v688, %v676
        %v846 = vpack.c.bf16 %v689, %v677
        %v847 = vpack.c.bf16 %v690, %v678
        %v848 = vpack.c.bf16 %v691, %v679
        %v849 = vpack.c.bf16 %v692, %v680
        %v850 = vpack.c.bf16 %v693, %v681
        %v851 = vpack.c.bf16 %v694, %v682
        %v852 = vpack.c.bf16 %v695, %v683
        %v853 = vpack.c.bf16 %v696, %v684
        %v854 = vpack.c.bf16 %v697, %v685
        %v855 = vpack.c.bf16 %v698, %v686
        %v856 = vpack.c.bf16 %v711, %v699
        %v857 = vpack.c.bf16 %v712, %v700
        %v858 = vpack.c.bf16 %v713, %v701
        %v859 = vpack.c.bf16 %v714, %v702
        %v860 = vpack.c.bf16 %v715, %v703
        %v861 = vpack.c.bf16 %v716, %v704
        %v862 = vpack.c.bf16 %v717, %v705
        %v863 = vpack.c.bf16 %v718, %v706
        %v864 = vpack.c.bf16 %v719, %v707
        %v865 = vpack.c.bf16 %v720, %v708
        %v866 = vpack.c.bf16 %v721, %v709
        %v867 = vpack.c.bf16 %v722, %v710
        %v868 = vpack.c.bf16 %v735, %v723
        %v869 = vpack.c.bf16 %v736, %v724
        %v870 = vpack.c.bf16 %v737, %v725
        %v871 = vpack.c.bf16 %v738, %v726
        %v872 = vpack.c.bf16 %v739, %v727
        %v873 = vpack.c.bf16 %v740, %v728
        %v874 = vpack.c.bf16 %v741, %v729
        %v875 = vpack.c.bf16 %v742, %v730
        %v876 = vpack.c.bf16 %v743, %v731
        %v877 = vpack.c.bf16 %v744, %v732
        %v878 = vpack.c.bf16 %v745, %v733
        %v879 = vpack.c.bf16 %v746, %v734
        %v880 = vpack.c.bf16 %v759, %v747
        %v881 = vpack.c.bf16 %v760, %v748
        %v882 = vpack.c.bf16 %v761, %v749
        %v883 = vpack.c.bf16 %v762, %v750
        %v884 = vpack.c.bf16 %v763, %v751
        %v885 = vpack.c.bf16 %v764, %v752
        %v886 = vpack.c.bf16 %v765, %v753
        %v887 = vpack.c.bf16 %v766, %v754
        %v888 = vpack.c.bf16 %v767, %v755
        %v889 = vpack.c.bf16 %v768, %v756
        %v890 = vpack.c.bf16 %v769, %v757
        %v891 = vpack.c.bf16 %v770, %v758
        %v892 = vpack.c.bf16 %v783, %v771
        %v893 = vpack.c.bf16 %v784, %v772
        %v894 = vpack.c.bf16 %v785, %v773
        %v895 = vpack.c.bf16 %v786, %v774
        %v896 = vpack.c.bf16 %v787, %v775
        %v897 = vpack.c.bf16 %v788, %v776
        %v898 = vpack.c.bf16 %v789, %v777
        %v899 = vpack.c.bf16 %v790, %v778
        %v900 = vpack.c.bf16 %v791, %v779
        %v901 = vpack.c.bf16 %v792, %v780
        %v902 = vpack.c.bf16 %v793, %v781
        %v903 = vpack.c.bf16 %v794, %v782
        %v904 = vpack.c.bf16 %v807, %v795
        %v905 = vpack.c.bf16 %v808, %v796
        %v906 = vpack.c.bf16 %v809, %v797
        %v907 = vpack.c.bf16 %v810, %v798
        %v908 = vpack.c.bf16 %v811, %v799
        %v909 = vpack.c.bf16 %v812, %v800
        %v910 = vpack.c.bf16 %v813, %v801
        %v911 = vpack.c.bf16 %v814, %v802
        %v912 = vpack.c.bf16 %v815, %v803
        %v913 = vpack.c.bf16 %v816, %v804
        %v914 = vpack.c.bf16 %v817, %v805
        %v915 = vpack.c.bf16 %v818, %v806
        %916 = vmatprep.subr.bf16.mxu0 %v821
        %917 = vmatpush1.bf16.msra.mxu0 %v820
        %918 = vmatprep.subr.bf16.mxu0 %v833
        %919 = vmatpush1.bf16.msra.mxu0 %v832
        %920 = vmatprep.subr.bf16.mxu0 %v845
        %921 = vmatpush1.bf16.msra.mxu0 %v844
        %922 = vmatprep.subr.bf16.mxu0 %v857
        %923 = vmatpush1.bf16.msra.mxu0 %v856
        %924 = vmatprep.subr.bf16.mxu0 %v869
        %925 = vmatpush1.bf16.msra.mxu0 %v868
        %926 = vmatprep.subr.bf16.mxu0 %v881
        %927 = vmatpush1.bf16.msra.mxu0 %v880
        %928 = vmatprep.subr.bf16.mxu0 %v893
        %929 = vmatpush1.bf16.msra.mxu0 %v892
        %930 = vmatprep.subr.bf16.mxu0 %v905
        %931 = vmatpush1.bf16.msra.mxu0 %v904
        %932 = vmatprep.subr.bf16.mxu0 0
        %933 = vmatpush1.bf16.msra.mxu0 0
        %934 = vmatprep.subr.bf16.mxu0 0
        %935 = vmatpush1.bf16.msra.mxu0 0
        %936 = vmatprep.subr.bf16.mxu0 0
        %937 = vmatpush1.bf16.msra.mxu0 0
        %938 = vmatprep.subr.bf16.mxu0 0
        %939 = vmatpush1.bf16.msra.mxu0 0
        %940 = vmatprep.subr.bf16.mxu0 0
        %941 = vmatpush1.bf16.msra.mxu0 0
        %942 = vmatprep.subr.bf16.mxu0 0
        %943 = vmatpush1.bf16.msra.mxu0 0
        %944 = vmatprep.subr.bf16.mxu0 0
        %945 = vmatpush1.bf16.msra.mxu0 0
        %946 = vmatprep.subr.bf16.mxu0 0
        %947 = vmatpush1.bf16.msra.mxu0 0
        %948 = vmatprep.mubr.bf16.mxu0 0
        %949 = vmatmul.mubr.bf16.gmra.mrb[0].mxu0 %v819
        %v950 = vpop.f32.mrb[0].mxu0
        %v951 = vadd.f32 0.0, %v950
        %v952 = vpop.f32.mrb[0].mxu0
        %v953 = vadd.f32 0.0, %v952
        %v954 = vpop.f32.mrb[0].mxu0
        %v955 = vadd.f32 0.0, %v954
        %v956 = vpop.f32.mrb[0].mxu0
        %v957 = vadd.f32 0.0, %v956
        %958 = vdwg.mxu0
        %959 = vmatprep.subr.bf16.mxu0 %v823
        %960 = vmatpush1.bf16.msra.mxu0 %v822
        %961 = vmatprep.subr.bf16.mxu0 %v835
        %962 = vmatpush1.bf16.msra.mxu0 %v834
        %963 = vmatprep.subr.bf16.mxu0 %v847
        %964 = vmatpush1.bf16.msra.mxu0 %v846
        %965 = vmatprep.subr.bf16.mxu0 %v859
        %966 = vmatpush1.bf16.msra.mxu0 %v858
        %967 = vmatprep.subr.bf16.mxu0 %v871
        %968 = vmatpush1.bf16.msra.mxu0 %v870
        %969 = vmatprep.subr.bf16.mxu0 %v883
        %970 = vmatpush1.bf16.msra.mxu0 %v882
        %971 = vmatprep.subr.bf16.mxu0 %v895
        %972 = vmatpush1.bf16.msra.mxu0 %v894
        %973 = vmatprep.subr.bf16.mxu0 %v907
        %974 = vmatpush1.bf16.msra.mxu0 %v906
        %975 = vmatprep.subr.bf16.mxu0 0
        %976 = vmatpush1.bf16.msra.mxu0 0
        %977 = vmatprep.subr.bf16.mxu0 0
        %978 = vmatpush1.bf16.msra.mxu0 0
        %979 = vmatprep.subr.bf16.mxu0 0
        %980 = vmatpush1.bf16.msra.mxu0 0
        %981 = vmatprep.subr.bf16.mxu0 0
        %982 = vmatpush1.bf16.msra.mxu0 0
        %983 = vmatprep.subr.bf16.mxu0 0
        %984 = vmatpush1.bf16.msra.mxu0 0
        %985 = vmatprep.subr.bf16.mxu0 0
        %986 = vmatpush1.bf16.msra.mxu0 0
        %987 = vmatprep.subr.bf16.mxu0 0
        %988 = vmatpush1.bf16.msra.mxu0 0
        %989 = vmatprep.subr.bf16.mxu0 0
        %990 = vmatpush1.bf16.msra.mxu0 0
        %991 = vmatprep.mubr.bf16.mxu0 0
        %992 = vmatmul.mubr.bf16.gmra.mrb[0].mxu0 %v819
        %v993 = vpop.f32.mrb[0].mxu0
        %v994 = vadd.f32 0.0, %v993
        %v995 = vpop.f32.mrb[0].mxu0
        %v996 = vadd.f32 0.0, %v995
        %v997 = vpop.f32.mrb[0].mxu0
        %v998 = vadd.f32 0.0, %v997
        %v999 = vpop.f32.mrb[0].mxu0
        %v1000 = vadd.f32 0.0, %v999
        %1001 = vdwg.mxu0
        %1002 = vmatprep.subr.bf16.mxu0 %v825
        %1003 = vmatpush1.bf16.msra.mxu0 %v824
        %1004 = vmatprep.subr.bf16.mxu0 %v837
        %1005 = vmatpush1.bf16.msra.mxu0 %v836
        %1006 = vmatprep.subr.bf16.mxu0 %v849
        %1007 = vmatpush1.bf16.msra.mxu0 %v848
        %1008 = vmatprep.subr.bf16.mxu0 %v861
        %1009 = vmatpush1.bf16.msra.mxu0 %v860
        %1010 = vmatprep.subr.bf16.mxu0 %v873
        %1011 = vmatpush1.bf16.msra.mxu0 %v872
        %1012 = vmatprep.subr.bf16.mxu0 %v885
        %1013 = vmatpush1.bf16.msra.mxu0 %v884
        %1014 = vmatprep.subr.bf16.mxu0 %v897
        %1015 = vmatpush1.bf16.msra.mxu0 %v896
        %1016 = vmatprep.subr.bf16.mxu0 %v909
        %1017 = vmatpush1.bf16.msra.mxu0 %v908
        %1018 = vmatprep.subr.bf16.mxu0 0
        %1019 = vmatpush1.bf16.msra.mxu0 0
        %1020 = vmatprep.subr.bf16.mxu0 0
        %1021 = vmatpush1.bf16.msra.mxu0 0
        %1022 = vmatprep.subr.bf16.mxu0 0
        %1023 = vmatpush1.bf16.msra.mxu0 0
        %1024 = vmatprep.subr.bf16.mxu0 0
        %1025 = vmatpush1.bf16.msra.mxu0 0
        %1026 = vmatprep.subr.bf16.mxu0 0
        %1027 = vmatpush1.bf16.msra.mxu0 0
        %1028 = vmatprep.subr.bf16.mxu0 0
        %1029 = vmatpush1.bf16.msra.mxu0 0
        %1030 = vmatprep.subr.bf16.mxu0 0
        %1031 = vmatpush1.bf16.msra.mxu0 0
        %1032 = vmatprep.subr.bf16.mxu0 0
        %1033 = vmatpush1.bf16.msra.mxu0 0
        %1034 = vmatprep.mubr.bf16.mxu0 0
        %1035 = vmatmul.mubr.bf16.gmra.mrb[0].mxu0 %v819
        %v1036 = vpop.f32.mrb[0].mxu0
        %v1037 = vadd.f32 0.0, %v1036
        %v1038 = vpop.f32.mrb[0].mxu0
        %v1039 = vadd.f32 0.0, %v1038
        %v1040 = vpop.f32.mrb[0].mxu0
        %v1041 = vadd.f32 0.0, %v1040
        %v1042 = vpop.f32.mrb[0].mxu0
        %v1043 = vadd.f32 0.0, %v1042
        %1044 = vdwg.mxu0
        %1045 = vmatprep.subr.bf16.mxu0 %v827
        %1046 = vmatpush1.bf16.msra.mxu0 %v826
        %1047 = vmatprep.subr.bf16.mxu0 %v839
        %1048 = vmatpush1.bf16.msra.mxu0 %v838
        %1049 = vmatprep.subr.bf16.mxu0 %v851
        %1050 = vmatpush1.bf16.msra.mxu0 %v850
        %1051 = vmatprep.subr.bf16.mxu0 %v863
        %1052 = vmatpush1.bf16.msra.mxu0 %v862
        %1053 = vmatprep.subr.bf16.mxu0 %v875
        %1054 = vmatpush1.bf16.msra.mxu0 %v874
        %1055 = vmatprep.subr.bf16.mxu0 %v887
        %1056 = vmatpush1.bf16.msra.mxu0 %v886
        %1057 = vmatprep.subr.bf16.mxu0 %v899
        %1058 = vmatpush1.bf16.msra.mxu0 %v898
        %1059 = vmatprep.subr.bf16.mxu0 %v911
        %1060 = vmatpush1.bf16.msra.mxu0 %v910
        %1061 = vmatprep.subr.bf16.mxu0 0
        %1062 = vmatpush1.bf16.msra.mxu0 0
        %1063 = vmatprep.subr.bf16.mxu0 0
        %1064 = vmatpush1.bf16.msra.mxu0 0
        %1065 = vmatprep.subr.bf16.mxu0 0
        %1066 = vmatpush1.bf16.msra.mxu0 0
        %1067 = vmatprep.subr.bf16.mxu0 0
        %1068 = vmatpush1.bf16.msra.mxu0 0
        %1069 = vmatprep.subr.bf16.mxu0 0
        %1070 = vmatpush1.bf16.msra.mxu0 0
        %1071 = vmatprep.subr.bf16.mxu0 0
        %1072 = vmatpush1.bf16.msra.mxu0 0
        %1073 = vmatprep.subr.bf16.mxu0 0
        %1074 = vmatpush1.bf16.msra.mxu0 0
        %1075 = vmatprep.subr.bf16.mxu0 0
        %1076 = vmatpush1.bf16.msra.mxu0 0
        %1077 = vmatprep.mubr.bf16.mxu0 0
        %1078 = vmatmul.mubr.bf16.gmra.mrb[0].mxu0 %v819
        %v1079 = vpop.f32.mrb[0].mxu0
        %v1080 = vadd.f32 0.0, %v1079
        %v1081 = vpop.f32.mrb[0].mxu0
        %v1082 = vadd.f32 0.0, %v1081
        %v1083 = vpop.f32.mrb[0].mxu0
        %v1084 = vadd.f32 0.0, %v1083
        %v1085 = vpop.f32.mrb[0].mxu0
        %v1086 = vadd.f32 0.0, %v1085
        %1087 = vdwg.mxu0
        %1088 = vmatprep.subr.bf16.mxu0 %v829
        %1089 = vmatpush1.bf16.msra.mxu0 %v828
        %1090 = vmatprep.subr.bf16.mxu0 %v841
        %1091 = vmatpush1.bf16.msra.mxu0 %v840
        %1092 = vmatprep.subr.bf16.mxu0 %v853
        %1093 = vmatpush1.bf16.msra.mxu0 %v852
        %1094 = vmatprep.subr.bf16.mxu0 %v865
        %1095 = vmatpush1.bf16.msra.mxu0 %v864
        %1096 = vmatprep.subr.bf16.mxu0 %v877
        %1097 = vmatpush1.bf16.msra.mxu0 %v876
        %1098 = vmatprep.subr.bf16.mxu0 %v889
        %1099 = vmatpush1.bf16.msra.mxu0 %v888
        %1100 = vmatprep.subr.bf16.mxu0 %v901
        %1101 = vmatpush1.bf16.msra.mxu0 %v900
        %1102 = vmatprep.subr.bf16.mxu0 %v913
        %1103 = vmatpush1.bf16.msra.mxu0 %v912
        %1104 = vmatprep.subr.bf16.mxu0 0
        %1105 = vmatpush1.bf16.msra.mxu0 0
        %1106 = vmatprep.subr.bf16.mxu0 0
        %1107 = vmatpush1.bf16.msra.mxu0 0
        %1108 = vmatprep.subr.bf16.mxu0 0
        %1109 = vmatpush1.bf16.msra.mxu0 0
        %1110 = vmatprep.subr.bf16.mxu0 0
        %1111 = vmatpush1.bf16.msra.mxu0 0
        %1112 = vmatprep.subr.bf16.mxu0 0
        %1113 = vmatpush1.bf16.msra.mxu0 0
        %1114 = vmatprep.subr.bf16.mxu0 0
        %1115 = vmatpush1.bf16.msra.mxu0 0
        %1116 = vmatprep.subr.bf16.mxu0 0
        %1117 = vmatpush1.bf16.msra.mxu0 0
        %1118 = vmatprep.subr.bf16.mxu0 0
        %1119 = vmatpush1.bf16.msra.mxu0 0
        %1120 = vmatprep.mubr.bf16.mxu0 0
        %1121 = vmatmul.mubr.bf16.gmra.mrb[0].mxu0 %v819
        %v1122 = vpop.f32.mrb[0].mxu0
        %v1123 = vadd.f32 0.0, %v1122
        %v1124 = vpop.f32.mrb[0].mxu0
        %v1125 = vadd.f32 0.0, %v1124
        %v1126 = vpop.f32.mrb[0].mxu0
        %v1127 = vadd.f32 0.0, %v1126
        %v1128 = vpop.f32.mrb[0].mxu0
        %v1129 = vadd.f32 0.0, %v1128
        %1130 = vdwg.mxu0
        %1131 = vmatprep.subr.bf16.mxu0 %v831
        %1132 = vmatpush1.bf16.msra.mxu0 %v830
        %1133 = vmatprep.subr.bf16.mxu0 %v843
        %1134 = vmatpush1.bf16.msra.mxu0 %v842
        %1135 = vmatprep.subr.bf16.mxu0 %v855
        %1136 = vmatpush1.bf16.msra.mxu0 %v854
        %1137 = vmatprep.subr.bf16.mxu0 %v867
        %1138 = vmatpush1.bf16.msra.mxu0 %v866
        %1139 = vmatprep.subr.bf16.mxu0 %v879
        %1140 = vmatpush1.bf16.msra.mxu0 %v878
        %1141 = vmatprep.subr.bf16.mxu0 %v891
        %1142 = vmatpush1.bf16.msra.mxu0 %v890
        %1143 = vmatprep.subr.bf16.mxu0 %v903
        %1144 = vmatpush1.bf16.msra.mxu0 %v902
        %1145 = vmatprep.subr.bf16.mxu0 %v915
        %1146 = vmatpush1.bf16.msra.mxu0 %v914
        %1147 = vmatprep.subr.bf16.mxu0 0
        %1148 = vmatpush1.bf16.msra.mxu0 0
        %1149 = vmatprep.subr.bf16.mxu0 0
        %1150 = vmatpush1.bf16.msra.mxu0 0
        %1151 = vmatprep.subr.bf16.mxu0 0
        %1152 = vmatpush1.bf16.msra.mxu0 0
        %1153 = vmatprep.subr.bf16.mxu0 0
        %1154 = vmatpush1.bf16.msra.mxu0 0
        %1155 = vmatprep.subr.bf16.mxu0 0
        %1156 = vmatpush1.bf16.msra.mxu0 0
        %1157 = vmatprep.subr.bf16.mxu0 0
        %1158 = vmatpush1.bf16.msra.mxu0 0
        %1159 = vmatprep.subr.bf16.mxu0 0
        %1160 = vmatpush1.bf16.msra.mxu0 0
        %1161 = vmatprep.subr.bf16.mxu0 0
        %1162 = vmatpush1.bf16.msra.mxu0 0
        %1163 = vmatprep.mubr.bf16.mxu0 0
        %1164 = vmatmul.mubr.bf16.gmra.mrb[0].mxu0 %v819
        %v1165 = vpop.f32.mrb[0].mxu0
        %v1166 = vadd.f32 0.0, %v1165
        %v1167 = vpop.f32.mrb[0].mxu0
        %v1168 = vadd.f32 0.0, %v1167
        %v1169 = vpop.f32.mrb[0].mxu0
        %v1170 = vadd.f32 0.0, %v1169
        %v1171 = vpop.f32.mrb[0].mxu0
        %v1172 = vadd.f32 0.0, %v1171
        %1173 = vdwg.mxu0
        %v1174 = vld [vmem:[#allocation10] sm:$0xff]
        %v1175 = vld [vmem:[#allocation10 + $0x8] sm:$0xff]
        %v1176 = vld [vmem:[#allocation10 + $0x10] sm:$0xff]
        %v1177 = vld [vmem:[#allocation10 + $0x18] sm:$0xff]
        %v1178 = vld [vmem:[#allocation10 + $0x20] sm:$0xff]
        %v1179 = vld [vmem:[#allocation10 + $0x28] sm:$0xff]
        %v1180 = vld [vmem:[#allocation10 + $0x30] sm:$0xff]
        %v1181 = vld [vmem:[#allocation10 + $0x38] sm:$0xff]
        %v1182 = vld [vmem:[#allocation10 + $0x40] sm:$0xff]
        %v1183 = vld [vmem:[#allocation10 + $0x48] sm:$0xff]
        %v1184 = vld [vmem:[#allocation10 + $0x50] sm:$0xff]
        %v1185 = vld [vmem:[#allocation10 + $0x58] sm:$0xff]
        %v1186 = vld [vmem:[#allocation10 + $0x60] sm:$0xff]
        %v1187 = vld [vmem:[#allocation10 + $0x68] sm:$0xff]
        %v1188 = vld [vmem:[#allocation10 + $0x70] sm:$0xff]
        %v1189 = vld [vmem:[#allocation10 + $0x78] sm:$0xff]
        %v1190 = vld [vmem:[#allocation10 + $0x80] sm:$0xff]
        %v1191 = vld [vmem:[#allocation10 + $0x88] sm:$0xff]
        %v1192 = vld [vmem:[#allocation10 + $0x90] sm:$0xff]
        %v1193 = vld [vmem:[#allocation10 + $0x98] sm:$0xff]
        %v1194 = vld [vmem:[#allocation10 + $0xa0] sm:$0xff]
        %v1195 = vld [vmem:[#allocation10 + $0xa8] sm:$0xff]
        %v1196 = vld [vmem:[#allocation10 + $0xb0] sm:$0xff]
        %v1197 = vld [vmem:[#allocation10 + $0xb8] sm:$0xff]
        %v1198 = vld [vmem:[#allocation10 + $0xc0] sm:$0xff]
        %v1199 = vld [vmem:[#allocation10 + $0xc8] sm:$0xff]
        %v1200 = vld [vmem:[#allocation10 + $0xd0] sm:$0xff]
        %v1201 = vld [vmem:[#allocation10 + $0xd8] sm:$0xff]
        %v1202 = vld [vmem:[#allocation10 + $0xe0] sm:$0xff]
        %v1203 = vld [vmem:[#allocation10 + $0xe8] sm:$0xff]
        %v1204 = vld [vmem:[#allocation10 + $0xf0] sm:$0xff]
        %v1205 = vld [vmem:[#allocation10 + $0xf8] sm:$0xff]
        %v1206 = vld [vmem:[#allocation10 + $0x100] sm:$0xff]
        %v1207 = vld [vmem:[#allocation10 + $0x108] sm:$0xff]
        %v1208 = vld [vmem:[#allocation10 + $0x110] sm:$0xff]
        %v1209 = vld [vmem:[#allocation10 + $0x118] sm:$0xff]
        %v1210 = vld [vmem:[#allocation10 + $0x120] sm:$0xff]
        %v1211 = vld [vmem:[#allocation10 + $0x128] sm:$0xff]
        %v1212 = vld [vmem:[#allocation10 + $0x130] sm:$0xff]
        %v1213 = vld [vmem:[#allocation10 + $0x138] sm:$0xff]
        %v1214 = vld [vmem:[#allocation10 + $0x140] sm:$0xff]
        %v1215 = vld [vmem:[#allocation10 + $0x148] sm:$0xff]
        %v1216 = vld [vmem:[#allocation10 + $0x150] sm:$0xff]
        %v1217 = vld [vmem:[#allocation10 + $0x158] sm:$0xff]
        %v1218 = vld [vmem:[#allocation10 + $0x160] sm:$0xff]
        %v1219 = vld [vmem:[#allocation10 + $0x168] sm:$0xff]
        %v1220 = vld [vmem:[#allocation10 + $0x170] sm:$0xff]
        %v1221 = vld [vmem:[#allocation10 + $0x178] sm:$0xff]
        %v1222 = vld [vmem:[#allocation10 + $0x180] sm:$0xff]
        %v1223 = vld [vmem:[#allocation10 + $0x188] sm:$0xff]
        %v1224 = vld [vmem:[#allocation10 + $0x190] sm:$0xff]
        %v1225 = vld [vmem:[#allocation10 + $0x198] sm:$0xff]
        %v1226 = vld [vmem:[#allocation10 + $0x1a0] sm:$0xff]
        %v1227 = vld [vmem:[#allocation10 + $0x1a8] sm:$0xff]
        %v1228 = vld [vmem:[#allocation10 + $0x1b0] sm:$0xff]
        %v1229 = vld [vmem:[#allocation10 + $0x1b8] sm:$0xff]
        %v1230 = vld [vmem:[#allocation10 + $0x1c0] sm:$0xff]
        %v1231 = vld [vmem:[#allocation10 + $0x1c8] sm:$0xff]
        %v1232 = vld [vmem:[#allocation10 + $0x1d0] sm:$0xff]
        %v1233 = vld [vmem:[#allocation10 + $0x1d8] sm:$0xff]
        %v1234 = vld [vmem:[#allocation10 + $0x1e0] sm:$0xff]
        %v1235 = vld [vmem:[#allocation10 + $0x1e8] sm:$0xff]
        %v1236 = vld [vmem:[#allocation10 + $0x1f0] sm:$0xff]
        %v1237 = vld [vmem:[#allocation10 + $0x1f8] sm:$0xff]
        %v1238 = vpack.c.bf16 %v1175, %v1174
        %v1239 = vpack.c.bf16 %v1177, %v1176
        %v1240 = vpack.c.bf16 %v1179, %v1178
        %v1241 = vpack.c.bf16 %v1181, %v1180
        %v1242 = vpack.c.bf16 %v1183, %v1182
        %v1243 = vpack.c.bf16 %v1185, %v1184
        %v1244 = vpack.c.bf16 %v1187, %v1186
        %v1245 = vpack.c.bf16 %v1189, %v1188
        %v1246 = vpack.c.bf16 %v1191, %v1190
        %v1247 = vpack.c.bf16 %v1193, %v1192
        %v1248 = vpack.c.bf16 %v1195, %v1194
        %v1249 = vpack.c.bf16 %v1197, %v1196
        %v1250 = vpack.c.bf16 %v1199, %v1198
        %v1251 = vpack.c.bf16 %v1201, %v1200
        %v1252 = vpack.c.bf16 %v1203, %v1202
        %v1253 = vpack.c.bf16 %v1205, %v1204
        %v1254 = vpack.c.bf16 %v1207, %v1206
        %v1255 = vpack.c.bf16 %v1209, %v1208
        %v1256 = vpack.c.bf16 %v1211, %v1210
        %v1257 = vpack.c.bf16 %v1213, %v1212
        %v1258 = vpack.c.bf16 %v1215, %v1214
        %v1259 = vpack.c.bf16 %v1217, %v1216
        %v1260 = vpack.c.bf16 %v1219, %v1218
        %v1261 = vpack.c.bf16 %v1221, %v1220
        %v1262 = vpack.c.bf16 %v1223, %v1222
        %v1263 = vpack.c.bf16 %v1225, %v1224
        %v1264 = vpack.c.bf16 %v1227, %v1226
        %v1265 = vpack.c.bf16 %v1229, %v1228
        %v1266 = vpack.c.bf16 %v1231, %v1230
        %v1267 = vpack.c.bf16 %v1233, %v1232
        %v1268 = vpack.c.bf16 %v1235, %v1234
        %v1269 = vpack.c.bf16 %v1237, %v1236
        %v1270 = vpack.c.bf16 %v955, %v951
        %v1271 = vpack.c.bf16 %v1041, %v1037
        %v1272 = vpack.c.bf16 %v1127, %v1123
        %vm1273 = vcmask 523264
        %v1275 = vsel %vm1273, %v1270, 0
        %v1278 = vsel %vm1273, %v1271, 0
        %1280 = vmatprep.subr.bf16.mxu0 0
        %1281 = vmatpush1.bf16.xpose.msra.mxu0 %v1278
        %1282 = vmatprep.subr.bf16.mxu0 0
        %1283 = vmatpush1.bf16.xpose.msra.mxu0 0
        %1284 = vmatprep.subr.bf16.mxu0 0
        %1285 = vmatpush1.bf16.xpose.msra.mxu0 0
        %1286 = vmatprep.subr.bf16.mxu0 0
        %1287 = vmatpush1.bf16.xpose.msra.mxu0 0
        %1288 = vmatprep.subr.bf16.mxu0 0
        %1289 = vmatpush1.bf16.xpose.msra.mxu0 0
        %1290 = vmatprep.subr.bf16.mxu0 0
        %1291 = vmatpush1.bf16.xpose.msra.mxu0 0
        %1292 = vmatprep.subr.bf16.mxu0 0
        %1293 = vmatpush1.bf16.xpose.msra.mxu0 0
        %1294 = vmatprep.subr.bf16.mxu0 0
        %1295 = vmatpush1.bf16.xpose.msra.mxu0 0
        %1296 = vmatprep.subr.bf16.mxu0 0
        %1297 = vmatpush1.bf16.xpose.msra.mxu0 0
        %1298 = vmatprep.subr.bf16.mxu0 0
        %1299 = vmatpush1.bf16.xpose.msra.mxu0 0
        %1300 = vmatprep.subr.bf16.mxu0 0
        %1301 = vmatpush1.bf16.xpose.msra.mxu0 0
        %1302 = vmatprep.subr.bf16.mxu0 0
        %1303 = vmatpush1.bf16.xpose.msra.mxu0 0
        %1304 = vmatprep.subr.bf16.mxu0 0
        %1305 = vmatpush1.bf16.xpose.msra.mxu0 0
        %1306 = vmatprep.subr.bf16.mxu0 0
        %1307 = vmatpush1.bf16.xpose.msra.mxu0 0
        %1308 = vmatprep.subr.bf16.mxu0 0
        %1309 = vmatpush1.bf16.xpose.msra.mxu0 0
        %1310 = vmatprep.subr.bf16.mxu0 0
        %1311 = vmatpush1.bf16.xpose.msra.mxu0 0
        %1312 = vmatprep.mubr.bf16.mxu0 0
        %1313 = vmatmul.mubr.bf16.gmra.mrb[0].mxu0 %v1275
        %v1314 = vpop.f32.mrb[0].mxu0
        %v1315 = vadd.f32 0.0, %v1314
        %v1316 = vpop.f32.mrb[0].mxu0
        %v1317 = vpop.f32.mrb[0].mxu0
        %v1318 = vadd.f32 0.0, %v1317
        %v1319 = vpop.f32.mrb[0].mxu0
        %1320 = vdwg.mxu0
        %v1321 = vmul.f32 %v1315, 0.125
        %v1322 = vmul.f32 %v1318, 0.125
        %vm1323 = vcmask 130048
        %v1324 = vsel %vm1323, %v1321, -inf
        %1325 = vmax.xlane.f32.xlu0 %v1324
        %v1326 = vpop.xlane.xlu0 %1325
        %v1327 = vsel %vm1323, %v1322, -inf
        %1328 = vmax.xlane.f32.xlu0 %v1327
        %v1329 = vpop.xlane.xlu0 %1328
        %v1330 = vsub.f32 %v1321, %v1326
        %v1331 = vsub.f32 %v1322, %v1329
        %v1332 = vmul.f32 %v1330, 1.442695
        %v1333 = vpow.pop %v1332
        %v1334 = vmul.f32 %v1331, 1.442695
        %v1335 = vpow.pop %v1334
        %v1336 = vsel %vm1323, %v1333, 0.0
        %1337 = vadd.xlane.f32.xlu0 %v1336
        %v1338 = vpop.xlane.xlu0 %1337
        %v1339 = vsel %vm1323, %v1335, 0.0
        %1340 = vadd.xlane.f32.xlu0 %v1339
        %v1341 = vpop.xlane.xlu0 %1340
        %v1342 = vrcp.pop %v1338
        %v1343 = vmul.f32 %v1333, %v1342
        %v1344 = vrcp.pop %v1341
        %v1345 = vmul.f32 %v1335, %v1344
        %v1346 = vpack.c.bf16 %v1345, %v1343
        %v1348 = vsel %vm1323, %v1346, 0
        %1350 = vmatprep.subr.bf16.mxu0 0
        %1351 = vmatpush1.bf16.msra.mxu0 %v1272
        %1352 = vmatprep.subr.bf16.mxu0 0
        %1353 = vmatpush1.bf16.msra.mxu0 0
        %1354 = vmatprep.subr.bf16.mxu0 0
        %1355 = vmatpush1.bf16.msra.mxu0 0
        %1356 = vmatprep.subr.bf16.mxu0 0
        %1357 = vmatpush1.bf16.msra.mxu0 0
        %1358 = vmatprep.subr.bf16.mxu0 0
        %1359 = vmatpush1.bf16.msra.mxu0 0
        %1360 = vmatprep.subr.bf16.mxu0 0
        %1361 = vmatpush1.bf16.msra.mxu0 0
        %1362 = vmatprep.subr.bf16.mxu0 0
        %1363 = vmatpush1.bf16.msra.mxu0 0
        %1364 = vmatprep.subr.bf16.mxu0 0
        %1365 = vmatpush1.bf16.msra.mxu0 0
        %1366 = vmatprep.subr.bf16.mxu0 0
        %1367 = vmatpush1.bf16.msra.mxu0 0
        %1368 = vmatprep.subr.bf16.mxu0 0
        %1369 = vmatpush1.bf16.msra.mxu0 0
        %1370 = vmatprep.subr.bf16.mxu0 0
        %1371 = vmatpush1.bf16.msra.mxu0 0
        %1372 = vmatprep.subr.bf16.mxu0 0
        %1373 = vmatpush1.bf16.msra.mxu0 0
        %1374 = vmatprep.subr.bf16.mxu0 0
        %1375 = vmatpush1.bf16.msra.mxu0 0
        %1376 = vmatprep.subr.bf16.mxu0 0
        %1377 = vmatpush1.bf16.msra.mxu0 0
        %1378 = vmatprep.subr.bf16.mxu0 0
        %1379 = vmatpush1.bf16.msra.mxu0 0
        %1380 = vmatprep.subr.bf16.mxu0 0
        %1381 = vmatpush1.bf16.msra.mxu0 0
        %1382 = vmatprep.mubr.bf16.mxu0 0
        %1383 = vmatmul.mubr.bf16.gmra.mrb[0].mxu0 %v1348
        %v1384 = vpop.f32.mrb[0].mxu0
        %v1385 = vadd.f32 0.0, %v1384
        %v1386 = vpop.f32.mrb[0].mxu0
        %v1387 = vpop.f32.mrb[0].mxu0
        %v1388 = vadd.f32 0.0, %v1387
        %v1389 = vpop.f32.mrb[0].mxu0
        %1390 = vdwg.mxu0
        %v1391 = vpack.c.bf16 %v1388, %v1385
        %1393 = vrot.lane.b32.xlu0 %v1270, 64
        %v1394 = vpop.permute.xlu0 %1393
        %1396 = vrot.lane.b32.xlu0 %v1271, 64
        %v1397 = vpop.permute.xlu0 %1396
        %v1399 = vsel %vm1273, %v1394, 0
        %v1402 = vsel %vm1273, %v1397, 0
        %1404 = vmatprep.subr.bf16.mxu0 0
        %1405 = vmatpush1.bf16.xpose.msra.mxu0 %v1402
        %1406 = vmatprep.subr.bf16.mxu0 0
        %1407 = vmatpush1.bf16.xpose.msra.mxu0 0
        %1408 = vmatprep.subr.bf16.mxu0 0
        %1409 = vmatpush1.bf16.xpose.msra.mxu0 0
        %1410 = vmatprep.subr.bf16.mxu0 0
        %1411 = vmatpush1.bf16.xpose.msra.mxu0 0
        %1412 = vmatprep.subr.bf16.mxu0 0
        %1413 = vmatpush1.bf16.xpose.msra.mxu0 0
        %1414 = vmatprep.subr.bf16.mxu0 0
        %1415 = vmatpush1.bf16.xpose.msra.mxu0 0
        %1416 = vmatprep.subr.bf16.mxu0 0
        %1417 = vmatpush1.bf16.xpose.msra.mxu0 0
        %1418 = vmatprep.subr.bf16.mxu0 0
        %1419 = vmatpush1.bf16.xpose.msra.mxu0 0
        %1420 = vmatprep.subr.bf16.mxu0 0
        %1421 = vmatpush1.bf16.xpose.msra.mxu0 0
        %1422 = vmatprep.subr.bf16.mxu0 0
        %1423 = vmatpush1.bf16.xpose.msra.mxu0 0
        %1424 = vmatprep.subr.bf16.mxu0 0
        %1425 = vmatpush1.bf16.xpose.msra.mxu0 0
        %1426 = vmatprep.subr.bf16.mxu0 0
        %1427 = vmatpush1.bf16.xpose.msra.mxu0 0
        %1428 = vmatprep.subr.bf16.mxu0 0
        %1429 = vmatpush1.bf16.xpose.msra.mxu0 0
        %1430 = vmatprep.subr.bf16.mxu0 0
        %1431 = vmatpush1.bf16.xpose.msra.mxu0 0
        %1432 = vmatprep.subr.bf16.mxu0 0
        %1433 = vmatpush1.bf16.xpose.msra.mxu0 0
        %1434 = vmatprep.subr.bf16.mxu0 0
        %1435 = vmatpush1.bf16.xpose.msra.mxu0 0
        %1436 = vmatprep.mubr.bf16.mxu0 0
        %1437 = vmatmul.mubr.bf16.gmra.mrb[0].mxu0 %v1399
        %v1438 = vpop.f32.mrb[0].mxu0
        %v1439 = vadd.f32 0.0, %v1438
        %v1440 = vpop.f32.mrb[0].mxu0
        %v1441 = vpop.f32.mrb[0].mxu0
        %v1442 = vadd.f32 0.0, %v1441
        %v1443 = vpop.f32.mrb[0].mxu0
        %1444 = vdwg.mxu0
        %v1445 = vmul.f32 %v1439, 0.125
        %v1446 = vmul.f32 %v1442, 0.125
        %v1447 = vsel %vm1323, %v1445, -inf
        %1448 = vmax.xlane.f32.xlu0 %v1447
        %v1449 = vpop.xlane.xlu0 %1448
        %v1450 = vsel %vm1323, %v1446, -inf
        %1451 = vmax.xlane.f32.xlu0 %v1450
        %v1452 = vpop.xlane.xlu0 %1451
        %v1453 = vsub.f32 %v1445, %v1449
        %v1454 = vsub.f32 %v1446, %v1452
        %v1455 = vmul.f32 %v1453, 1.442695
        %v1456 = vpow.pop %v1455
        %v1457 = vmul.f32 %v1454, 1.442695
        %v1458 = vpow.pop %v1457
        %v1459 = vsel %vm1323, %v1456, 0.0
        %1460 = vadd.xlane.f32.xlu0 %v1459
        %v1461 = vpop.xlane.xlu0 %1460
        %v1462 = vsel %vm1323, %v1458, 0.0
        %1463 = vadd.xlane.f32.xlu0 %v1462
        %v1464 = vpop.xlane.xlu0 %1463
        %v1465 = vrcp.pop %v1461
        %v1466 = vmul.f32 %v1456, %v1465
        %v1467 = vrcp.pop %v1464
        %v1468 = vmul.f32 %v1458, %v1467
        %v1469 = vpack.c.bf16 %v1468, %v1466
        %1471 = vrot.lane.b32.xlu0 %v1272, 64
        %v1472 = vpop.permute.xlu0 %1471
        %v1475 = vsel %vm1323, %v1469, 0
        %1477 = vmatprep.subr.bf16.mxu0 0
        %1478 = vmatpush1.bf16.msra.mxu0 %v1472
        %1479 = vmatprep.subr.bf16.mxu0 0
        %1480 = vmatpush1.bf16.msra.mxu0 0
        %1481 = vmatprep.subr.bf16.mxu0 0
        %1482 = vmatpush1.bf16.msra.mxu0 0
        %1483 = vmatprep.subr.bf16.mxu0 0
        %1484 = vmatpush1.bf16.msra.mxu0 0
        %1485 = vmatprep.subr.bf16.mxu0 0
        %1486 = vmatpush1.bf16.msra.mxu0 0
        %1487 = vmatprep.subr.bf16.mxu0 0
        %1488 = vmatpush1.bf16.msra.mxu0 0
        %1489 = vmatprep.subr.bf16.mxu0 0
        %1490 = vmatpush1.bf16.msra.mxu0 0
        %1491 = vmatprep.subr.bf16.mxu0 0
        %1492 = vmatpush1.bf16.msra.mxu0 0
        %1493 = vmatprep.subr.bf16.mxu0 0
        %1494 = vmatpush1.bf16.msra.mxu0 0
        %1495 = vmatprep.subr.bf16.mxu0 0
        %1496 = vmatpush1.bf16.msra.mxu0 0
        %1497 = vmatprep.subr.bf16.mxu0 0
        %1498 = vmatpush1.bf16.msra.mxu0 0
        %1499 = vmatprep.subr.bf16.mxu0 0
        %1500 = vmatpush1.bf16.msra.mxu0 0
        %1501 = vmatprep.subr.bf16.mxu0 0
        %1502 = vmatpush1.bf16.msra.mxu0 0
        %1503 = vmatprep.subr.bf16.mxu0 0
        %1504 = vmatpush1.bf16.msra.mxu0 0
        %1505 = vmatprep.subr.bf16.mxu0 0
        %1506 = vmatpush1.bf16.msra.mxu0 0
        %1507 = vmatprep.subr.bf16.mxu0 0
        %1508 = vmatpush1.bf16.msra.mxu0 0
        %1509 = vmatprep.mubr.bf16.mxu0 0
        %1510 = vmatmul.mubr.bf16.gmra.mrb[0].mxu0 %v1475
        %v1511 = vpop.f32.mrb[0].mxu0
        %v1512 = vadd.f32 0.0, %v1511
        %v1513 = vpop.f32.mrb[0].mxu0
        %v1514 = vpop.f32.mrb[0].mxu0
        %v1515 = vadd.f32 0.0, %v1514
        %v1516 = vpop.f32.mrb[0].mxu0
        %1517 = vdwg.mxu0
        %v1518 = vpack.c.bf16 %v1515, %v1512
        %v1520 = vsel %vm1273, %v1518, 0
        %1522 = vmatprep.subr.bf16.mxu0 0
        %1523 = vmatpush1.bf16.msra.mxu0 %v1242
        %1524 = vmatprep.subr.bf16.mxu0 0
        %1525 = vmatpush1.bf16.msra.mxu0 %v1243
        %1526 = vmatprep.subr.bf16.mxu0 0
        %1527 = vmatpush1.bf16.msra.mxu0 %v1244
        %1528 = vmatprep.subr.bf16.mxu0 0
        %1529 = vmatpush1.bf16.msra.mxu0 %v1245
        %1530 = vmatprep.subr.bf16.mxu0 0
        %1531 = vmatpush1.bf16.msra.mxu0 0
        %1532 = vmatprep.subr.bf16.mxu0 0
        %1533 = vmatpush1.bf16.msra.mxu0 0
        %1534 = vmatprep.subr.bf16.mxu0 0
        %1535 = vmatpush1.bf16.msra.mxu0 0
        %1536 = vmatprep.subr.bf16.mxu0 0
        %1537 = vmatpush1.bf16.msra.mxu0 0
        %1538 = vmatprep.subr.bf16.mxu0 0
        %1539 = vmatpush1.bf16.msra.mxu0 0
        %1540 = vmatprep.subr.bf16.mxu0 0
        %1541 = vmatpush1.bf16.msra.mxu0 0
        %1542 = vmatprep.subr.bf16.mxu0 0
        %1543 = vmatpush1.bf16.msra.mxu0 0
        %1544 = vmatprep.subr.bf16.mxu0 0
        %1545 = vmatpush1.bf16.msra.mxu0 0
        %1546 = vmatprep.subr.bf16.mxu0 0
        %1547 = vmatpush1.bf16.msra.mxu0 0
        %1548 = vmatprep.subr.bf16.mxu0 0
        %1549 = vmatpush1.bf16.msra.mxu0 0
        %1550 = vmatprep.subr.bf16.mxu0 0
        %1551 = vmatpush1.bf16.msra.mxu0 0
        %1552 = vmatprep.subr.bf16.mxu0 0
        %1553 = vmatpush1.bf16.msra.mxu0 0
        %1554 = vmatprep.mubr.bf16.mxu0 0
        %1555 = vmatmul.mubr.bf16.gmra.mrb[0].mxu0 %v1520
        %v1556 = vpop.f32.mrb[0].mxu0
        %v1557 = vadd.f32 0.0, %v1556
        %v1558 = vpop.f32.mrb[0].mxu0
        %v1559 = vpop.f32.mrb[0].mxu0
        %v1560 = vadd.f32 0.0, %v1559
        %v1561 = vpop.f32.mrb[0].mxu0
        %1562 = vdwg.mxu0
        %v1564 = vsel %vm1273, %v1391, 0
        %1566 = vmatprep.subr.bf16.mxu0 0
        %1567 = vmatpush1.bf16.msra.mxu0 %v1238
        %1568 = vmatprep.subr.bf16.mxu0 0
        %1569 = vmatpush1.bf16.msra.mxu0 %v1239
        %1570 = vmatprep.subr.bf16.mxu0 0
        %1571 = vmatpush1.bf16.msra.mxu0 %v1240
        %1572 = vmatprep.subr.bf16.mxu0 0
        %1573 = vmatpush1.bf16.msra.mxu0 %v1241
        %1574 = vmatprep.subr.bf16.mxu0 0
        %1575 = vmatpush1.bf16.msra.mxu0 0
        %1576 = vmatprep.subr.bf16.mxu0 0
        %1577 = vmatpush1.bf16.msra.mxu0 0
        %1578 = vmatprep.subr.bf16.mxu0 0
        %1579 = vmatpush1.bf16.msra.mxu0 0
        %1580 = vmatprep.subr.bf16.mxu0 0
        %1581 = vmatpush1.bf16.msra.mxu0 0
        %1582 = vmatprep.subr.bf16.mxu0 0
        %1583 = vmatpush1.bf16.msra.mxu0 0
        %1584 = vmatprep.subr.bf16.mxu0 0
        %1585 = vmatpush1.bf16.msra.mxu0 0
        %1586 = vmatprep.subr.bf16.mxu0 0
        %1587 = vmatpush1.bf16.msra.mxu0 0
        %1588 = vmatprep.subr.bf16.mxu0 0
        %1589 = vmatpush1.bf16.msra.mxu0 0
        %1590 = vmatprep.subr.bf16.mxu0 0
        %1591 = vmatpush1.bf16.msra.mxu0 0
        %1592 = vmatprep.subr.bf16.mxu0 0
        %1593 = vmatpush1.bf16.msra.mxu0 0
        %1594 = vmatprep.subr.bf16.mxu0 0
        %1595 = vmatpush1.bf16.msra.mxu0 0
        %1596 = vmatprep.subr.bf16.mxu0 0
        %1597 = vmatpush1.bf16.msra.mxu0 0
        %1598 = vmatprep.mubr.bf16.mxu0 0
        %1599 = vmatmul.mubr.bf16.gmra.mrb[0].mxu0 %v1564
        %v1600 = vpop.f32.mrb[0].mxu0
        %v1601 = vadd.f32 %v1557, %v1600
        %v1602 = vpop.f32.mrb[0].mxu0
        %v1603 = vpop.f32.mrb[0].mxu0
        %v1604 = vadd.f32 %v1560, %v1603
        %v1605 = vpop.f32.mrb[0].mxu0
        %1606 = vdwg.mxu0
        %v1607 = vpack.c.bf16 %v957, %v953
        %v1608 = vpack.c.bf16 %v1043, %v1039
        %v1609 = vpack.c.bf16 %v1129, %v1125
        %v1611 = vsel %vm1273, %v1607, 0
        %v1614 = vsel %vm1273, %v1608, 0
        %1616 = vmatprep.subr.bf16.mxu0 0
        %1617 = vmatpush1.bf16.xpose.msra.mxu0 %v1614
        %1618 = vmatprep.subr.bf16.mxu0 0
        %1619 = vmatpush1.bf16.xpose.msra.mxu0 0
        %1620 = vmatprep.subr.bf16.mxu0 0
        %1621 = vmatpush1.bf16.xpose.msra.mxu0 0
        %1622 = vmatprep.subr.bf16.mxu0 0
        %1623 = vmatpush1.bf16.xpose.msra.mxu0 0
        %1624 = vmatprep.subr.bf16.mxu0 0
        %1625 = vmatpush1.bf16.xpose.msra.mxu0 0
        %1626 = vmatprep.subr.bf16.mxu0 0
        %1627 = vmatpush1.bf16.xpose.msra.mxu0 0
        %1628 = vmatprep.subr.bf16.mxu0 0
        %1629 = vmatpush1.bf16.xpose.msra.mxu0 0
        %1630 = vmatprep.subr.bf16.mxu0 0
        %1631 = vmatpush1.bf16.xpose.msra.mxu0 0
        %1632 = vmatprep.subr.bf16.mxu0 0
        %1633 = vmatpush1.bf16.xpose.msra.mxu0 0
        %1634 = vmatprep.subr.bf16.mxu0 0
        %1635 = vmatpush1.bf16.xpose.msra.mxu0 0
        %1636 = vmatprep.subr.bf16.mxu0 0
        %1637 = vmatpush1.bf16.xpose.msra.mxu0 0
        %1638 = vmatprep.subr.bf16.mxu0 0
        %1639 = vmatpush1.bf16.xpose.msra.mxu0 0
        %1640 = vmatprep.subr.bf16.mxu0 0
        %1641 = vmatpush1.bf16.xpose.msra.mxu0 0
        %1642 = vmatprep.subr.bf16.mxu0 0
        %1643 = vmatpush1.bf16.xpose.msra.mxu0 0
        %1644 = vmatprep.subr.bf16.mxu0 0
        %1645 = vmatpush1.bf16.xpose.msra.mxu0 0
        %1646 = vmatprep.subr.bf16.mxu0 0
        %1647 = vmatpush1.bf16.xpose.msra.mxu0 0
        %1648 = vmatprep.mubr.bf16.mxu0 0
        %1649 = vmatmul.mubr.bf16.gmra.mrb[0].mxu0 %v1611
        %v1650 = vpop.f32.mrb[0].mxu0
        %v1651 = vadd.f32 0.0, %v1650
        %v1652 = vpop.f32.mrb[0].mxu0
        %v1653 = vpop.f32.mrb[0].mxu0
        %v1654 = vadd.f32 0.0, %v1653
        %v1655 = vpop.f32.mrb[0].mxu0
        %1656 = vdwg.mxu0
        %v1657 = vmul.f32 %v1651, 0.125
        %v1658 = vmul.f32 %v1654, 0.125
        %v1659 = vsel %vm1323, %v1657, -inf
        %1660 = vmax.xlane.f32.xlu0 %v1659
        %v1661 = vpop.xlane.xlu0 %1660
        %v1662 = vsel %vm1323, %v1658, -inf
        %1663 = vmax.xlane.f32.xlu0 %v1662
        %v1664 = vpop.xlane.xlu0 %1663
        %v1665 = vsub.f32 %v1657, %v1661
        %v1666 = vsub.f32 %v1658, %v1664
        %v1667 = vmul.f32 %v1665, 1.442695
        %v1668 = vpow.pop %v1667
        %v1669 = vmul.f32 %v1666, 1.442695
        %v1670 = vpow.pop %v1669
        %v1671 = vsel %vm1323, %v1668, 0.0
        %1672 = vadd.xlane.f32.xlu0 %v1671
        %v1673 = vpop.xlane.xlu0 %1672
        %v1674 = vsel %vm1323, %v1670, 0.0
        %1675 = vadd.xlane.f32.xlu0 %v1674
        %v1676 = vpop.xlane.xlu0 %1675
        %v1677 = vrcp.pop %v1673
        %v1678 = vmul.f32 %v1668, %v1677
        %v1679 = vrcp.pop %v1676
        %v1680 = vmul.f32 %v1670, %v1679
        %v1681 = vpack.c.bf16 %v1680, %v1678
        %v1683 = vsel %vm1323, %v1681, 0
        %1685 = vmatprep.subr.bf16.mxu0 0
        %1686 = vmatpush1.bf16.msra.mxu0 %v1609
        %1687 = vmatprep.subr.bf16.mxu0 0
        %1688 = vmatpush1.bf16.msra.mxu0 0
        %1689 = vmatprep.subr.bf16.mxu0 0
        %1690 = vmatpush1.bf16.msra.mxu0 0
        %1691 = vmatprep.subr.bf16.mxu0 0
        %1692 = vmatpush1.bf16.msra.mxu0 0
        %1693 = vmatprep.subr.bf16.mxu0 0
        %1694 = vmatpush1.bf16.msra.mxu0 0
        %1695 = vmatprep.subr.bf16.mxu0 0
        %1696 = vmatpush1.bf16.msra.mxu0 0
        %1697 = vmatprep.subr.bf16.mxu0 0
        %1698 = vmatpush1.bf16.msra.mxu0 0
        %1699 = vmatprep.subr.bf16.mxu0 0
        %1700 = vmatpush1.bf16.msra.mxu0 0
        %1701 = vmatprep.subr.bf16.mxu0 0
        %1702 = vmatpush1.bf16.msra.mxu0 0
        %1703 = vmatprep.subr.bf16.mxu0 0
        %1704 = vmatpush1.bf16.msra.mxu0 0
        %1705 = vmatprep.subr.bf16.mxu0 0
        %1706 = vmatpush1.bf16.msra.mxu0 0
        %1707 = vmatprep.subr.bf16.mxu0 0
        %1708 = vmatpush1.bf16.msra.mxu0 0
        %1709 = vmatprep.subr.bf16.mxu0 0
        %1710 = vmatpush1.bf16.msra.mxu0 0
        %1711 = vmatprep.subr.bf16.mxu0 0
        %1712 = vmatpush1.bf16.msra.mxu0 0
        %1713 = vmatprep.subr.bf16.mxu0 0
        %1714 = vmatpush1.bf16.msra.mxu0 0
        %1715 = vmatprep.subr.bf16.mxu0 0
        %1716 = vmatpush1.bf16.msra.mxu0 0
        %1717 = vmatprep.mubr.bf16.mxu0 0
        %1718 = vmatmul.mubr.bf16.gmra.mrb[0].mxu0 %v1683
        %v1719 = vpop.f32.mrb[0].mxu0
        %v1720 = vadd.f32 0.0, %v1719
        %v1721 = vpop.f32.mrb[0].mxu0
        %v1722 = vpop.f32.mrb[0].mxu0
        %v1723 = vadd.f32 0.0, %v1722
        %v1724 = vpop.f32.mrb[0].mxu0
        %1725 = vdwg.mxu0
        %v1726 = vpack.c.bf16 %v1723, %v1720
        %v1728 = vsel %vm1273, %v1726, 0
        %1730 = vmatprep.subr.bf16.mxu0 0
        %1731 = vmatpush1.bf16.msra.mxu0 %v1246
        %1732 = vmatprep.subr.bf16.mxu0 0
        %1733 = vmatpush1.bf16.msra.mxu0 %v1247
        %1734 = vmatprep.subr.bf16.mxu0 0
        %1735 = vmatpush1.bf16.msra.mxu0 %v1248
        %1736 = vmatprep.subr.bf16.mxu0 0
        %1737 = vmatpush1.bf16.msra.mxu0 %v1249
        %1738 = vmatprep.subr.bf16.mxu0 0
        %1739 = vmatpush1.bf16.msra.mxu0 0
        %1740 = vmatprep.subr.bf16.mxu0 0
        %1741 = vmatpush1.bf16.msra.mxu0 0
        %1742 = vmatprep.subr.bf16.mxu0 0
        %1743 = vmatpush1.bf16.msra.mxu0 0
        %1744 = vmatprep.subr.bf16.mxu0 0
        %1745 = vmatpush1.bf16.msra.mxu0 0
        %1746 = vmatprep.subr.bf16.mxu0 0
        %1747 = vmatpush1.bf16.msra.mxu0 0
        %1748 = vmatprep.subr.bf16.mxu0 0
        %1749 = vmatpush1.bf16.msra.mxu0 0
        %1750 = vmatprep.subr.bf16.mxu0 0
        %1751 = vmatpush1.bf16.msra.mxu0 0
        %1752 = vmatprep.subr.bf16.mxu0 0
        %1753 = vmatpush1.bf16.msra.mxu0 0
        %1754 = vmatprep.subr.bf16.mxu0 0
        %1755 = vmatpush1.bf16.msra.mxu0 0
        %1756 = vmatprep.subr.bf16.mxu0 0
        %1757 = vmatpush1.bf16.msra.mxu0 0
        %1758 = vmatprep.subr.bf16.mxu0 0
        %1759 = vmatpush1.bf16.msra.mxu0 0
        %1760 = vmatprep.subr.bf16.mxu0 0
        %1761 = vmatpush1.bf16.msra.mxu0 0
        %1762 = vmatprep.mubr.bf16.mxu0 0
        %1763 = vmatmul.mubr.bf16.gmra.mrb[0].mxu0 %v1728
        %v1764 = vpop.f32.mrb[0].mxu0
        %v1765 = vadd.f32 0.0, %v1764
        %v1766 = vpop.f32.mrb[0].mxu0
        %v1767 = vpop.f32.mrb[0].mxu0
        %v1768 = vadd.f32 0.0, %v1767
        %v1769 = vpop.f32.mrb[0].mxu0
        %1770 = vdwg.mxu0
        %v1771 = vadd.f32 %v1601, %v1765
        %v1772 = vadd.f32 %v1604, %v1768
        %1774 = vrot.lane.b32.xlu0 %v1607, 64
        %v1775 = vpop.permute.xlu0 %1774
        %1777 = vrot.lane.b32.xlu0 %v1608, 64
        %v1778 = vpop.permute.xlu0 %1777
        %v1780 = vsel %vm1273, %v1775, 0
        %v1783 = vsel %vm1273, %v1778, 0
        %1785 = vmatprep.subr.bf16.mxu0 0
        %1786 = vmatpush1.bf16.xpose.msra.mxu0 %v1783
        %1787 = vmatprep.subr.bf16.mxu0 0
        %1788 = vmatpush1.bf16.xpose.msra.mxu0 0
        %1789 = vmatprep.subr.bf16.mxu0 0
        %1790 = vmatpush1.bf16.xpose.msra.mxu0 0
        %1791 = vmatprep.subr.bf16.mxu0 0
        %1792 = vmatpush1.bf16.xpose.msra.mxu0 0
        %1793 = vmatprep.subr.bf16.mxu0 0
        %1794 = vmatpush1.bf16.xpose.msra.mxu0 0
        %1795 = vmatprep.subr.bf16.mxu0 0
        %1796 = vmatpush1.bf16.xpose.msra.mxu0 0
        %1797 = vmatprep.subr.bf16.mxu0 0
        %1798 = vmatpush1.bf16.xpose.msra.mxu0 0
        %1799 = vmatprep.subr.bf16.mxu0 0
        %1800 = vmatpush1.bf16.xpose.msra.mxu0 0
        %1801 = vmatprep.subr.bf16.mxu0 0
        %1802 = vmatpush1.bf16.xpose.msra.mxu0 0
        %1803 = vmatprep.subr.bf16.mxu0 0
        %1804 = vmatpush1.bf16.xpose.msra.mxu0 0
        %1805 = vmatprep.subr.bf16.mxu0 0
        %1806 = vmatpush1.bf16.xpose.msra.mxu0 0
        %1807 = vmatprep.subr.bf16.mxu0 0
        %1808 = vmatpush1.bf16.xpose.msra.mxu0 0
        %1809 = vmatprep.subr.bf16.mxu0 0
        %1810 = vmatpush1.bf16.xpose.msra.mxu0 0
        %1811 = vmatprep.subr.bf16.mxu0 0
        %1812 = vmatpush1.bf16.xpose.msra.mxu0 0
        %1813 = vmatprep.subr.bf16.mxu0 0
        %1814 = vmatpush1.bf16.xpose.msra.mxu0 0
        %1815 = vmatprep.subr.bf16.mxu0 0
        %1816 = vmatpush1.bf16.xpose.msra.mxu0 0
        %1817 = vmatprep.mubr.bf16.mxu0 0
        %1818 = vmatmul.mubr.bf16.gmra.mrb[0].mxu0 %v1780
        %v1819 = vpop.f32.mrb[0].mxu0
        %v1820 = vadd.f32 0.0, %v1819
        %v1821 = vpop.f32.mrb[0].mxu0
        %v1822 = vpop.f32.mrb[0].mxu0
        %v1823 = vadd.f32 0.0, %v1822
        %v1824 = vpop.f32.mrb[0].mxu0
        %1825 = vdwg.mxu0
        %v1826 = vmul.f32 %v1820, 0.125
        %v1827 = vmul.f32 %v1823, 0.125
        %v1828 = vsel %vm1323, %v1826, -inf
        %1829 = vmax.xlane.f32.xlu0 %v1828
        %v1830 = vpop.xlane.xlu0 %1829
        %v1831 = vsel %vm1323, %v1827, -inf
        %1832 = vmax.xlane.f32.xlu0 %v1831
        %v1833 = vpop.xlane.xlu0 %1832
        %v1834 = vsub.f32 %v1826, %v1830
        %v1835 = vsub.f32 %v1827, %v1833
        %v1836 = vmul.f32 %v1834, 1.442695
        %v1837 = vpow.pop %v1836
        %v1838 = vmul.f32 %v1835, 1.442695
        %v1839 = vpow.pop %v1838
        %v1840 = vsel %vm1323, %v1837, 0.0
        %1841 = vadd.xlane.f32.xlu0 %v1840
        %v1842 = vpop.xlane.xlu0 %1841
        %v1843 = vsel %vm1323, %v1839, 0.0
        %1844 = vadd.xlane.f32.xlu0 %v1843
        %v1845 = vpop.xlane.xlu0 %1844
        %v1846 = vrcp.pop %v1842
        %v1847 = vmul.f32 %v1837, %v1846
        %v1848 = vrcp.pop %v1845
        %v1849 = vmul.f32 %v1839, %v1848
        %v1850 = vpack.c.bf16 %v1849, %v1847
        %1852 = vrot.lane.b32.xlu0 %v1609, 64
        %v1853 = vpop.permute.xlu0 %1852
        %v1856 = vsel %vm1323, %v1850, 0
        %1858 = vmatprep.subr.bf16.mxu0 0
        %1859 = vmatpush1.bf16.msra.mxu0 %v1853
        %1860 = vmatprep.subr.bf16.mxu0 0
        %1861 = vmatpush1.bf16.msra.mxu0 0
        %1862 = vmatprep.subr.bf16.mxu0 0
        %1863 = vmatpush1.bf16.msra.mxu0 0
        %1864 = vmatprep.subr.bf16.mxu0 0
        %1865 = vmatpush1.bf16.msra.mxu0 0
        %1866 = vmatprep.subr.bf16.mxu0 0
        %1867 = vmatpush1.bf16.msra.mxu0 0
        %1868 = vmatprep.subr.bf16.mxu0 0
        %1869 = vmatpush1.bf16.msra.mxu0 0
        %1870 = vmatprep.subr.bf16.mxu0 0
        %1871 = vmatpush1.bf16.msra.mxu0 0
        %1872 = vmatprep.subr.bf16.mxu0 0
        %1873 = vmatpush1.bf16.msra.mxu0 0
        %1874 = vmatprep.subr.bf16.mxu0 0
        %1875 = vmatpush1.bf16.msra.mxu0 0
        %1876 = vmatprep.subr.bf16.mxu0 0
        %1877 = vmatpush1.bf16.msra.mxu0 0
        %1878 = vmatprep.subr.bf16.mxu0 0
        %1879 = vmatpush1.bf16.msra.mxu0 0
        %1880 = vmatprep.subr.bf16.mxu0 0
        %1881 = vmatpush1.bf16.msra.mxu0 0
        %1882 = vmatprep.subr.bf16.mxu0 0
        %1883 = vmatpush1.bf16.msra.mxu0 0
        %1884 = vmatprep.subr.bf16.mxu0 0
        %1885 = vmatpush1.bf16.msra.mxu0 0
        %1886 = vmatprep.subr.bf16.mxu0 0
        %1887 = vmatpush1.bf16.msra.mxu0 0
        %1888 = vmatprep.subr.bf16.mxu0 0
        %1889 = vmatpush1.bf16.msra.mxu0 0
        %1890 = vmatprep.mubr.bf16.mxu0 0
        %1891 = vmatmul.mubr.bf16.gmra.mrb[0].mxu0 %v1856
        %v1892 = vpop.f32.mrb[0].mxu0
        %v1893 = vadd.f32 0.0, %v1892
        %v1894 = vpop.f32.mrb[0].mxu0
        %v1895 = vpop.f32.mrb[0].mxu0
        %v1896 = vadd.f32 0.0, %v1895
        %v1897 = vpop.f32.mrb[0].mxu0
        %1898 = vdwg.mxu0
        %v1899 = vpack.c.bf16 %v1896, %v1893
        %v1901 = vsel %vm1273, %v1899, 0
        %1903 = vmatprep.subr.bf16.mxu0 0
        %1904 = vmatpush1.bf16.msra.mxu0 %v1250
        %1905 = vmatprep.subr.bf16.mxu0 0
        %1906 = vmatpush1.bf16.msra.mxu0 %v1251
        %1907 = vmatprep.subr.bf16.mxu0 0
        %1908 = vmatpush1.bf16.msra.mxu0 %v1252
        %1909 = vmatprep.subr.bf16.mxu0 0
        %1910 = vmatpush1.bf16.msra.mxu0 %v1253
        %1911 = vmatprep.subr.bf16.mxu0 0
        %1912 = vmatpush1.bf16.msra.mxu0 0
        %1913 = vmatprep.subr.bf16.mxu0 0
        %1914 = vmatpush1.bf16.msra.mxu0 0
        %1915 = vmatprep.subr.bf16.mxu0 0
        %1916 = vmatpush1.bf16.msra.mxu0 0
        %1917 = vmatprep.subr.bf16.mxu0 0
        %1918 = vmatpush1.bf16.msra.mxu0 0
        %1919 = vmatprep.subr.bf16.mxu0 0
        %1920 = vmatpush1.bf16.msra.mxu0 0
        %1921 = vmatprep.subr.bf16.mxu0 0
        %1922 = vmatpush1.bf16.msra.mxu0 0
        %1923 = vmatprep.subr.bf16.mxu0 0
        %1924 = vmatpush1.bf16.msra.mxu0 0
        %1925 = vmatprep.subr.bf16.mxu0 0
        %1926 = vmatpush1.bf16.msra.mxu0 0
        %1927 = vmatprep.subr.bf16.mxu0 0
        %1928 = vmatpush1.bf16.msra.mxu0 0
        %1929 = vmatprep.subr.bf16.mxu0 0
        %1930 = vmatpush1.bf16.msra.mxu0 0
        %1931 = vmatprep.subr.bf16.mxu0 0
        %1932 = vmatpush1.bf16.msra.mxu0 0
        %1933 = vmatprep.subr.bf16.mxu0 0
        %1934 = vmatpush1.bf16.msra.mxu0 0
        %1935 = vmatprep.mubr.bf16.mxu0 0
        %1936 = vmatmul.mubr.bf16.gmra.mrb[0].mxu0 %v1901
        %v1937 = vpop.f32.mrb[0].mxu0
        %v1938 = vadd.f32 0.0, %v1937
        %v1939 = vpop.f32.mrb[0].mxu0
        %v1940 = vpop.f32.mrb[0].mxu0
        %v1941 = vadd.f32 0.0, %v1940
        %v1942 = vpop.f32.mrb[0].mxu0
        %1943 = vdwg.mxu0
        %v1944 = vadd.f32 %v1771, %v1938
        %v1945 = vadd.f32 %v1772, %v1941
        %v1946 = vpack.c.bf16 %v998, %v994
        %v1947 = vpack.c.bf16 %v1084, %v1080
        %v1948 = vpack.c.bf16 %v1170, %v1166
        %v1950 = vsel %vm1273, %v1946, 0
        %v1953 = vsel %vm1273, %v1947, 0
        %1955 = vmatprep.subr.bf16.mxu0 0
        %1956 = vmatpush1.bf16.xpose.msra.mxu0 %v1953
        %1957 = vmatprep.subr.bf16.mxu0 0
        %1958 = vmatpush1.bf16.xpose.msra.mxu0 0
        %1959 = vmatprep.subr.bf16.mxu0 0
        %1960 = vmatpush1.bf16.xpose.msra.mxu0 0
        %1961 = vmatprep.subr.bf16.mxu0 0
        %1962 = vmatpush1.bf16.xpose.msra.mxu0 0
        %1963 = vmatprep.subr.bf16.mxu0 0
        %1964 = vmatpush1.bf16.xpose.msra.mxu0 0
        %1965 = vmatprep.subr.bf16.mxu0 0
        %1966 = vmatpush1.bf16.xpose.msra.mxu0 0
        %1967 = vmatprep.subr.bf16.mxu0 0
        %1968 = vmatpush1.bf16.xpose.msra.mxu0 0
        %1969 = vmatprep.subr.bf16.mxu0 0
        %1970 = vmatpush1.bf16.xpose.msra.mxu0 0
        %1971 = vmatprep.subr.bf16.mxu0 0
        %1972 = vmatpush1.bf16.xpose.msra.mxu0 0
        %1973 = vmatprep.subr.bf16.mxu0 0
        %1974 = vmatpush1.bf16.xpose.msra.mxu0 0
        %1975 = vmatprep.subr.bf16.mxu0 0
        %1976 = vmatpush1.bf16.xpose.msra.mxu0 0
        %1977 = vmatprep.subr.bf16.mxu0 0
        %1978 = vmatpush1.bf16.xpose.msra.mxu0 0
        %1979 = vmatprep.subr.bf16.mxu0 0
        %1980 = vmatpush1.bf16.xpose.msra.mxu0 0
        %1981 = vmatprep.subr.bf16.mxu0 0
        %1982 = vmatpush1.bf16.xpose.msra.mxu0 0
        %1983 = vmatprep.subr.bf16.mxu0 0
        %1984 = vmatpush1.bf16.xpose.msra.mxu0 0
        %1985 = vmatprep.subr.bf16.mxu0 0
        %1986 = vmatpush1.bf16.xpose.msra.mxu0 0
        %1987 = vmatprep.mubr.bf16.mxu0 0
        %1988 = vmatmul.mubr.bf16.gmra.mrb[0].mxu0 %v1950
        %v1989 = vpop.f32.mrb[0].mxu0
        %v1990 = vadd.f32 0.0, %v1989
        %v1991 = vpop.f32.mrb[0].mxu0
        %v1992 = vpop.f32.mrb[0].mxu0
        %v1993 = vadd.f32 0.0, %v1992
        %v1994 = vpop.f32.mrb[0].mxu0
        %1995 = vdwg.mxu0
        %v1996 = vmul.f32 %v1990, 0.125
        %v1997 = vmul.f32 %v1993, 0.125
        %v1998 = vsel %vm1323, %v1996, -inf
        %1999 = vmax.xlane.f32.xlu0 %v1998
        %v2000 = vpop.xlane.xlu0 %1999
        %v2001 = vsel %vm1323, %v1997, -inf
        %2002 = vmax.xlane.f32.xlu0 %v2001
        %v2003 = vpop.xlane.xlu0 %2002
        %v2004 = vsub.f32 %v1996, %v2000
        %v2005 = vsub.f32 %v1997, %v2003
        %v2006 = vmul.f32 %v2004, 1.442695
        %v2007 = vpow.pop %v2006
        %v2008 = vmul.f32 %v2005, 1.442695
        %v2009 = vpow.pop %v2008
        %v2010 = vsel %vm1323, %v2007, 0.0
        %2011 = vadd.xlane.f32.xlu0 %v2010
        %v2012 = vpop.xlane.xlu0 %2011
        %v2013 = vsel %vm1323, %v2009, 0.0
        %2014 = vadd.xlane.f32.xlu0 %v2013
        %v2015 = vpop.xlane.xlu0 %2014
        %v2016 = vrcp.pop %v2012
        %v2017 = vmul.f32 %v2007, %v2016
        %v2018 = vrcp.pop %v2015
        %v2019 = vmul.f32 %v2009, %v2018
        %v2020 = vpack.c.bf16 %v2019, %v2017
        %v2022 = vsel %vm1323, %v2020, 0
        %2024 = vmatprep.subr.bf16.mxu0 0
        %2025 = vmatpush1.bf16.msra.mxu0 %v1948
        %2026 = vmatprep.subr.bf16.mxu0 0
        %2027 = vmatpush1.bf16.msra.mxu0 0
        %2028 = vmatprep.subr.bf16.mxu0 0
        %2029 = vmatpush1.bf16.msra.mxu0 0
        %2030 = vmatprep.subr.bf16.mxu0 0
        %2031 = vmatpush1.bf16.msra.mxu0 0
        %2032 = vmatprep.subr.bf16.mxu0 0
        %2033 = vmatpush1.bf16.msra.mxu0 0
        %2034 = vmatprep.subr.bf16.mxu0 0
        %2035 = vmatpush1.bf16.msra.mxu0 0
        %2036 = vmatprep.subr.bf16.mxu0 0
        %2037 = vmatpush1.bf16.msra.mxu0 0
        %2038 = vmatprep.subr.bf16.mxu0 0
        %2039 = vmatpush1.bf16.msra.mxu0 0
        %2040 = vmatprep.subr.bf16.mxu0 0
        %2041 = vmatpush1.bf16.msra.mxu0 0
        %2042 = vmatprep.subr.bf16.mxu0 0
        %2043 = vmatpush1.bf16.msra.mxu0 0
        %2044 = vmatprep.subr.bf16.mxu0 0
        %2045 = vmatpush1.bf16.msra.mxu0 0
        %2046 = vmatprep.subr.bf16.mxu0 0
        %2047 = vmatpush1.bf16.msra.mxu0 0
        %2048 = vmatprep.subr.bf16.mxu0 0
        %2049 = vmatpush1.bf16.msra.mxu0 0
        %2050 = vmatprep.subr.bf16.mxu0 0
        %2051 = vmatpush1.bf16.msra.mxu0 0
        %2052 = vmatprep.subr.bf16.mxu0 0
        %2053 = vmatpush1.bf16.msra.mxu0 0
        %2054 = vmatprep.subr.bf16.mxu0 0
        %2055 = vmatpush1.bf16.msra.mxu0 0
        %2056 = vmatprep.mubr.bf16.mxu0 0
        %2057 = vmatmul.mubr.bf16.gmra.mrb[0].mxu0 %v2022
        %v2058 = vpop.f32.mrb[0].mxu0
        %v2059 = vadd.f32 0.0, %v2058
        %v2060 = vpop.f32.mrb[0].mxu0
        %v2061 = vpop.f32.mrb[0].mxu0
        %v2062 = vadd.f32 0.0, %v2061
        %v2063 = vpop.f32.mrb[0].mxu0
        %2064 = vdwg.mxu0
        %v2065 = vpack.c.bf16 %v2062, %v2059
        %v2067 = vsel %vm1273, %v2065, 0
        %2069 = vmatprep.subr.bf16.mxu0 0
        %2070 = vmatpush1.bf16.msra.mxu0 %v1254
        %2071 = vmatprep.subr.bf16.mxu0 0
        %2072 = vmatpush1.bf16.msra.mxu0 %v1255
        %2073 = vmatprep.subr.bf16.mxu0 0
        %2074 = vmatpush1.bf16.msra.mxu0 %v1256
        %2075 = vmatprep.subr.bf16.mxu0 0
        %2076 = vmatpush1.bf16.msra.mxu0 %v1257
        %2077 = vmatprep.subr.bf16.mxu0 0
        %2078 = vmatpush1.bf16.msra.mxu0 0
        %2079 = vmatprep.subr.bf16.mxu0 0
        %2080 = vmatpush1.bf16.msra.mxu0 0
        %2081 = vmatprep.subr.bf16.mxu0 0
        %2082 = vmatpush1.bf16.msra.mxu0 0
        %2083 = vmatprep.subr.bf16.mxu0 0
        %2084 = vmatpush1.bf16.msra.mxu0 0
        %2085 = vmatprep.subr.bf16.mxu0 0
        %2086 = vmatpush1.bf16.msra.mxu0 0
        %2087 = vmatprep.subr.bf16.mxu0 0
        %2088 = vmatpush1.bf16.msra.mxu0 0
        %2089 = vmatprep.subr.bf16.mxu0 0
        %2090 = vmatpush1.bf16.msra.mxu0 0
        %2091 = vmatprep.subr.bf16.mxu0 0
        %2092 = vmatpush1.bf16.msra.mxu0 0
        %2093 = vmatprep.subr.bf16.mxu0 0
        %2094 = vmatpush1.bf16.msra.mxu0 0
        %2095 = vmatprep.subr.bf16.mxu0 0
        %2096 = vmatpush1.bf16.msra.mxu0 0
        %2097 = vmatprep.subr.bf16.mxu0 0
        %2098 = vmatpush1.bf16.msra.mxu0 0
        %2099 = vmatprep.subr.bf16.mxu0 0
        %2100 = vmatpush1.bf16.msra.mxu0 0
        %2101 = vmatprep.mubr.bf16.mxu0 0
        %2102 = vmatmul.mubr.bf16.gmra.mrb[0].mxu0 %v2067
        %v2103 = vpop.f32.mrb[0].mxu0
        %v2104 = vadd.f32 0.0, %v2103
        %v2105 = vpop.f32.mrb[0].mxu0
        %v2106 = vpop.f32.mrb[0].mxu0
        %v2107 = vadd.f32 0.0, %v2106
        %v2108 = vpop.f32.mrb[0].mxu0
        %2109 = vdwg.mxu0
        %v2110 = vadd.f32 %v1944, %v2104
        %v2111 = vadd.f32 %v1945, %v2107
        %2113 = vrot.lane.b32.xlu0 %v1946, 64
        %v2114 = vpop.permute.xlu0 %2113
        %2116 = vrot.lane.b32.xlu0 %v1947, 64
        %v2117 = vpop.permute.xlu0 %2116
        %v2119 = vsel %vm1273, %v2114, 0
        %v2122 = vsel %vm1273, %v2117, 0
        %2124 = vmatprep.subr.bf16.mxu0 0
        %2125 = vmatpush1.bf16.xpose.msra.mxu0 %v2122
        %2126 = vmatprep.subr.bf16.mxu0 0
        %2127 = vmatpush1.bf16.xpose.msra.mxu0 0
        %2128 = vmatprep.subr.bf16.mxu0 0
        %2129 = vmatpush1.bf16.xpose.msra.mxu0 0
        %2130 = vmatprep.subr.bf16.mxu0 0
        %2131 = vmatpush1.bf16.xpose.msra.mxu0 0
        %2132 = vmatprep.subr.bf16.mxu0 0
        %2133 = vmatpush1.bf16.xpose.msra.mxu0 0
        %2134 = vmatprep.subr.bf16.mxu0 0
        %2135 = vmatpush1.bf16.xpose.msra.mxu0 0
        %2136 = vmatprep.subr.bf16.mxu0 0
        %2137 = vmatpush1.bf16.xpose.msra.mxu0 0
        %2138 = vmatprep.subr.bf16.mxu0 0
        %2139 = vmatpush1.bf16.xpose.msra.mxu0 0
        %2140 = vmatprep.subr.bf16.mxu0 0
        %2141 = vmatpush1.bf16.xpose.msra.mxu0 0
        %2142 = vmatprep.subr.bf16.mxu0 0
        %2143 = vmatpush1.bf16.xpose.msra.mxu0 0
        %2144 = vmatprep.subr.bf16.mxu0 0
        %2145 = vmatpush1.bf16.xpose.msra.mxu0 0
        %2146 = vmatprep.subr.bf16.mxu0 0
        %2147 = vmatpush1.bf16.xpose.msra.mxu0 0
        %2148 = vmatprep.subr.bf16.mxu0 0
        %2149 = vmatpush1.bf16.xpose.msra.mxu0 0
        %2150 = vmatprep.subr.bf16.mxu0 0
        %2151 = vmatpush1.bf16.xpose.msra.mxu0 0
        %2152 = vmatprep.subr.bf16.mxu0 0
        %2153 = vmatpush1.bf16.xpose.msra.mxu0 0
        %2154 = vmatprep.subr.bf16.mxu0 0
        %2155 = vmatpush1.bf16.xpose.msra.mxu0 0
        %2156 = vmatprep.mubr.bf16.mxu0 0
        %2157 = vmatmul.mubr.bf16.gmra.mrb[0].mxu0 %v2119
        %v2158 = vpop.f32.mrb[0].mxu0
        %v2159 = vadd.f32 0.0, %v2158
        %v2160 = vpop.f32.mrb[0].mxu0
        %v2161 = vpop.f32.mrb[0].mxu0
        %v2162 = vadd.f32 0.0, %v2161
        %v2163 = vpop.f32.mrb[0].mxu0
        %2164 = vdwg.mxu0
        %v2165 = vmul.f32 %v2159, 0.125
        %v2166 = vmul.f32 %v2162, 0.125
        %v2167 = vsel %vm1323, %v2165, -inf
        %2168 = vmax.xlane.f32.xlu0 %v2167
        %v2169 = vpop.xlane.xlu0 %2168
        %v2170 = vsel %vm1323, %v2166, -inf
        %2171 = vmax.xlane.f32.xlu0 %v2170
        %v2172 = vpop.xlane.xlu0 %2171
        %v2173 = vsub.f32 %v2165, %v2169
        %v2174 = vsub.f32 %v2166, %v2172
        %v2175 = vmul.f32 %v2173, 1.442695
        %v2176 = vpow.pop %v2175
        %v2177 = vmul.f32 %v2174, 1.442695
        %v2178 = vpow.pop %v2177
        %v2179 = vsel %vm1323, %v2176, 0.0
        %2180 = vadd.xlane.f32.xlu0 %v2179
        %v2181 = vpop.xlane.xlu0 %2180
        %v2182 = vsel %vm1323, %v2178, 0.0
        %2183 = vadd.xlane.f32.xlu0 %v2182
        %v2184 = vpop.xlane.xlu0 %2183
        %v2185 = vrcp.pop %v2181
        %v2186 = vmul.f32 %v2176, %v2185
        %v2187 = vrcp.pop %v2184
        %v2188 = vmul.f32 %v2178, %v2187
        %v2189 = vpack.c.bf16 %v2188, %v2186
        %2191 = vrot.lane.b32.xlu0 %v1948, 64
        %v2192 = vpop.permute.xlu0 %2191
        %v2195 = vsel %vm1323, %v2189, 0
        %2197 = vmatprep.subr.bf16.mxu0 0
        %2198 = vmatpush1.bf16.msra.mxu0 %v2192
        %2199 = vmatprep.subr.bf16.mxu0 0
        %2200 = vmatpush1.bf16.msra.mxu0 0
        %2201 = vmatprep.subr.bf16.mxu0 0
        %2202 = vmatpush1.bf16.msra.mxu0 0
        %2203 = vmatprep.subr.bf16.mxu0 0
        %2204 = vmatpush1.bf16.msra.mxu0 0
        %2205 = vmatprep.subr.bf16.mxu0 0
        %2206 = vmatpush1.bf16.msra.mxu0 0
        %2207 = vmatprep.subr.bf16.mxu0 0
        %2208 = vmatpush1.bf16.msra.mxu0 0
        %2209 = vmatprep.subr.bf16.mxu0 0
        %2210 = vmatpush1.bf16.msra.mxu0 0
        %2211 = vmatprep.subr.bf16.mxu0 0
        %2212 = vmatpush1.bf16.msra.mxu0 0
        %2213 = vmatprep.subr.bf16.mxu0 0
        %2214 = vmatpush1.bf16.msra.mxu0 0
        %2215 = vmatprep.subr.bf16.mxu0 0
        %2216 = vmatpush1.bf16.msra.mxu0 0
        %2217 = vmatprep.subr.bf16.mxu0 0
        %2218 = vmatpush1.bf16.msra.mxu0 0
        %2219 = vmatprep.subr.bf16.mxu0 0
        %2220 = vmatpush1.bf16.msra.mxu0 0
        %2221 = vmatprep.subr.bf16.mxu0 0
        %2222 = vmatpush1.bf16.msra.mxu0 0
        %2223 = vmatprep.subr.bf16.mxu0 0
        %2224 = vmatpush1.bf16.msra.mxu0 0
        %2225 = vmatprep.subr.bf16.mxu0 0
        %2226 = vmatpush1.bf16.msra.mxu0 0
        %2227 = vmatprep.subr.bf16.mxu0 0
        %2228 = vmatpush1.bf16.msra.mxu0 0
        %2229 = vmatprep.mubr.bf16.mxu0 0
        %2230 = vmatmul.mubr.bf16.gmra.mrb[0].mxu0 %v2195
        %v2231 = vpop.f32.mrb[0].mxu0
        %v2232 = vadd.f32 0.0, %v2231
        %v2233 = vpop.f32.mrb[0].mxu0
        %v2234 = vpop.f32.mrb[0].mxu0
        %v2235 = vadd.f32 0.0, %v2234
        %v2236 = vpop.f32.mrb[0].mxu0
        %2237 = vdwg.mxu0
        %v2238 = vpack.c.bf16 %v2235, %v2232
        %v2240 = vsel %vm1273, %v2238, 0
        %2242 = vmatprep.subr.bf16.mxu0 0
        %2243 = vmatpush1.bf16.msra.mxu0 %v1258
        %2244 = vmatprep.subr.bf16.mxu0 0
        %2245 = vmatpush1.bf16.msra.mxu0 %v1259
        %2246 = vmatprep.subr.bf16.mxu0 0
        %2247 = vmatpush1.bf16.msra.mxu0 %v1260
        %2248 = vmatprep.subr.bf16.mxu0 0
        %2249 = vmatpush1.bf16.msra.mxu0 %v1261
        %2250 = vmatprep.subr.bf16.mxu0 0
        %2251 = vmatpush1.bf16.msra.mxu0 0
        %2252 = vmatprep.subr.bf16.mxu0 0
        %2253 = vmatpush1.bf16.msra.mxu0 0
        %2254 = vmatprep.subr.bf16.mxu0 0
        %2255 = vmatpush1.bf16.msra.mxu0 0
        %2256 = vmatprep.subr.bf16.mxu0 0
        %2257 = vmatpush1.bf16.msra.mxu0 0
        %2258 = vmatprep.subr.bf16.mxu0 0
        %2259 = vmatpush1.bf16.msra.mxu0 0
        %2260 = vmatprep.subr.bf16.mxu0 0
        %2261 = vmatpush1.bf16.msra.mxu0 0
        %2262 = vmatprep.subr.bf16.mxu0 0
        %2263 = vmatpush1.bf16.msra.mxu0 0
        %2264 = vmatprep.subr.bf16.mxu0 0
        %2265 = vmatpush1.bf16.msra.mxu0 0
        %2266 = vmatprep.subr.bf16.mxu0 0
        %2267 = vmatpush1.bf16.msra.mxu0 0
        %2268 = vmatprep.subr.bf16.mxu0 0
        %2269 = vmatpush1.bf16.msra.mxu0 0
        %2270 = vmatprep.subr.bf16.mxu0 0
        %2271 = vmatpush1.bf16.msra.mxu0 0
        %2272 = vmatprep.subr.bf16.mxu0 0
        %2273 = vmatpush1.bf16.msra.mxu0 0
        %2274 = vmatprep.mubr.bf16.mxu0 0
        %2275 = vmatmul.mubr.bf16.gmra.mrb[0].mxu0 %v2240
        %v2276 = vpop.f32.mrb[0].mxu0
        %v2277 = vadd.f32 0.0, %v2276
        %v2278 = vpop.f32.mrb[0].mxu0
        %v2279 = vpop.f32.mrb[0].mxu0
        %v2280 = vadd.f32 0.0, %v2279
        %v2281 = vpop.f32.mrb[0].mxu0
        %2282 = vdwg.mxu0
        %v2283 = vadd.f32 %v2110, %v2277
        %v2284 = vadd.f32 %v2111, %v2280
        %v2285 = vpack.c.bf16 %v1000, %v996
        %v2286 = vpack.c.bf16 %v1086, %v1082
        %v2287 = vpack.c.bf16 %v1172, %v1168
        %v2289 = vsel %vm1273, %v2285, 0
        %v2292 = vsel %vm1273, %v2286, 0
        %2294 = vmatprep.subr.bf16.mxu0 0
        %2295 = vmatpush1.bf16.xpose.msra.mxu0 %v2292
        %2296 = vmatprep.subr.bf16.mxu0 0
        %2297 = vmatpush1.bf16.xpose.msra.mxu0 0
        %2298 = vmatprep.subr.bf16.mxu0 0
        %2299 = vmatpush1.bf16.xpose.msra.mxu0 0
        %2300 = vmatprep.subr.bf16.mxu0 0
        %2301 = vmatpush1.bf16.xpose.msra.mxu0 0
        %2302 = vmatprep.subr.bf16.mxu0 0
        %2303 = vmatpush1.bf16.xpose.msra.mxu0 0
        %2304 = vmatprep.subr.bf16.mxu0 0
        %2305 = vmatpush1.bf16.xpose.msra.mxu0 0
        %2306 = vmatprep.subr.bf16.mxu0 0
        %2307 = vmatpush1.bf16.xpose.msra.mxu0 0
        %2308 = vmatprep.subr.bf16.mxu0 0
        %2309 = vmatpush1.bf16.xpose.msra.mxu0 0
        %2310 = vmatprep.subr.bf16.mxu0 0
        %2311 = vmatpush1.bf16.xpose.msra.mxu0 0
        %2312 = vmatprep.subr.bf16.mxu0 0
        %2313 = vmatpush1.bf16.xpose.msra.mxu0 0
        %2314 = vmatprep.subr.bf16.mxu0 0
        %2315 = vmatpush1.bf16.xpose.msra.mxu0 0
        %2316 = vmatprep.subr.bf16.mxu0 0
        %2317 = vmatpush1.bf16.xpose.msra.mxu0 0
        %2318 = vmatprep.subr.bf16.mxu0 0
        %2319 = vmatpush1.bf16.xpose.msra.mxu0 0
        %2320 = vmatprep.subr.bf16.mxu0 0
        %2321 = vmatpush1.bf16.xpose.msra.mxu0 0
        %2322 = vmatprep.subr.bf16.mxu0 0
        %2323 = vmatpush1.bf16.xpose.msra.mxu0 0
        %2324 = vmatprep.subr.bf16.mxu0 0
        %2325 = vmatpush1.bf16.xpose.msra.mxu0 0
        %2326 = vmatprep.mubr.bf16.mxu0 0
        %2327 = vmatmul.mubr.bf16.gmra.mrb[0].mxu0 %v2289
        %v2328 = vpop.f32.mrb[0].mxu0
        %v2329 = vadd.f32 0.0, %v2328
        %v2330 = vpop.f32.mrb[0].mxu0
        %v2331 = vpop.f32.mrb[0].mxu0
        %v2332 = vadd.f32 0.0, %v2331
        %v2333 = vpop.f32.mrb[0].mxu0
        %2334 = vdwg.mxu0
        %v2335 = vmul.f32 %v2329, 0.125
        %v2336 = vmul.f32 %v2332, 0.125
        %v2337 = vsel %vm1323, %v2335, -inf
        %2338 = vmax.xlane.f32.xlu0 %v2337
        %v2339 = vpop.xlane.xlu0 %2338
        %v2340 = vsel %vm1323, %v2336, -inf
        %2341 = vmax.xlane.f32.xlu0 %v2340
        %v2342 = vpop.xlane.xlu0 %2341
        %v2343 = vsub.f32 %v2335, %v2339
        %v2344 = vsub.f32 %v2336, %v2342
        %v2345 = vmul.f32 %v2343, 1.442695
        %v2346 = vpow.pop %v2345
        %v2347 = vmul.f32 %v2344, 1.442695
        %v2348 = vpow.pop %v2347
        %v2349 = vsel %vm1323, %v2346, 0.0
        %2350 = vadd.xlane.f32.xlu0 %v2349
        %v2351 = vpop.xlane.xlu0 %2350
        %v2352 = vsel %vm1323, %v2348, 0.0
        %2353 = vadd.xlane.f32.xlu0 %v2352
        %v2354 = vpop.xlane.xlu0 %2353
        %v2355 = vrcp.pop %v2351
        %v2356 = vmul.f32 %v2346, %v2355
        %v2357 = vrcp.pop %v2354
        %v2358 = vmul.f32 %v2348, %v2357
        %v2359 = vpack.c.bf16 %v2358, %v2356
        %v2361 = vsel %vm1323, %v2359, 0
        %2363 = vmatprep.subr.bf16.mxu0 0
        %2364 = vmatpush1.bf16.msra.mxu0 %v2287
        %2365 = vmatprep.subr.bf16.mxu0 0
        %2366 = vmatpush1.bf16.msra.mxu0 0
        %2367 = vmatprep.subr.bf16.mxu0 0
        %2368 = vmatpush1.bf16.msra.mxu0 0
        %2369 = vmatprep.subr.bf16.mxu0 0
        %2370 = vmatpush1.bf16.msra.mxu0 0
        %2371 = vmatprep.subr.bf16.mxu0 0
        %2372 = vmatpush1.bf16.msra.mxu0 0
        %2373 = vmatprep.subr.bf16.mxu0 0
        %2374 = vmatpush1.bf16.msra.mxu0 0
        %2375 = vmatprep.subr.bf16.mxu0 0
        %2376 = vmatpush1.bf16.msra.mxu0 0
        %2377 = vmatprep.subr.bf16.mxu0 0
        %2378 = vmatpush1.bf16.msra.mxu0 0
        %2379 = vmatprep.subr.bf16.mxu0 0
        %2380 = vmatpush1.bf16.msra.mxu0 0
        %2381 = vmatprep.subr.bf16.mxu0 0
        %2382 = vmatpush1.bf16.msra.mxu0 0
        %2383 = vmatprep.subr.bf16.mxu0 0
        %2384 = vmatpush1.bf16.msra.mxu0 0
        %2385 = vmatprep.subr.bf16.mxu0 0
        %2386 = vmatpush1.bf16.msra.mxu0 0
        %2387 = vmatprep.subr.bf16.mxu0 0
        %2388 = vmatpush1.bf16.msra.mxu0 0
        %2389 = vmatprep.subr.bf16.mxu0 0
        %2390 = vmatpush1.bf16.msra.mxu0 0
        %2391 = vmatprep.subr.bf16.mxu0 0
        %2392 = vmatpush1.bf16.msra.mxu0 0
        %2393 = vmatprep.subr.bf16.mxu0 0
        %2394 = vmatpush1.bf16.msra.mxu0 0
        %2395 = vmatprep.mubr.bf16.mxu0 0
        %2396 = vmatmul.mubr.bf16.gmra.mrb[0].mxu0 %v2361
        %v2397 = vpop.f32.mrb[0].mxu0
        %v2398 = vadd.f32 0.0, %v2397
        %v2399 = vpop.f32.mrb[0].mxu0
        %v2400 = vpop.f32.mrb[0].mxu0
        %v2401 = vadd.f32 0.0, %v2400
        %v2402 = vpop.f32.mrb[0].mxu0
        %2403 = vdwg.mxu0
        %v2404 = vpack.c.bf16 %v2401, %v2398
        %v2406 = vsel %vm1273, %v2404, 0
        %2408 = vmatprep.subr.bf16.mxu0 0
        %2409 = vmatpush1.bf16.msra.mxu0 %v1262
        %2410 = vmatprep.subr.bf16.mxu0 0
        %2411 = vmatpush1.bf16.msra.mxu0 %v1263
        %2412 = vmatprep.subr.bf16.mxu0 0
        %2413 = vmatpush1.bf16.msra.mxu0 %v1264
        %2414 = vmatprep.subr.bf16.mxu0 0
        %2415 = vmatpush1.bf16.msra.mxu0 %v1265
        %2416 = vmatprep.subr.bf16.mxu0 0
        %2417 = vmatpush1.bf16.msra.mxu0 0
        %2418 = vmatprep.subr.bf16.mxu0 0
        %2419 = vmatpush1.bf16.msra.mxu0 0
        %2420 = vmatprep.subr.bf16.mxu0 0
        %2421 = vmatpush1.bf16.msra.mxu0 0
        %2422 = vmatprep.subr.bf16.mxu0 0
        %2423 = vmatpush1.bf16.msra.mxu0 0
        %2424 = vmatprep.subr.bf16.mxu0 0
        %2425 = vmatpush1.bf16.msra.mxu0 0
        %2426 = vmatprep.subr.bf16.mxu0 0
        %2427 = vmatpush1.bf16.msra.mxu0 0
        %2428 = vmatprep.subr.bf16.mxu0 0
        %2429 = vmatpush1.bf16.msra.mxu0 0
        %2430 = vmatprep.subr.bf16.mxu0 0
        %2431 = vmatpush1.bf16.msra.mxu0 0
        %2432 = vmatprep.subr.bf16.mxu0 0
        %2433 = vmatpush1.bf16.msra.mxu0 0
        %2434 = vmatprep.subr.bf16.mxu0 0
        %2435 = vmatpush1.bf16.msra.mxu0 0
        %2436 = vmatprep.subr.bf16.mxu0 0
        %2437 = vmatpush1.bf16.msra.mxu0 0
        %2438 = vmatprep.subr.bf16.mxu0 0
        %2439 = vmatpush1.bf16.msra.mxu0 0
        %2440 = vmatprep.mubr.bf16.mxu0 0
        %2441 = vmatmul.mubr.bf16.gmra.mrb[0].mxu0 %v2406
        %v2442 = vpop.f32.mrb[0].mxu0
        %v2443 = vadd.f32 0.0, %v2442
        %v2444 = vpop.f32.mrb[0].mxu0
        %v2445 = vpop.f32.mrb[0].mxu0
        %v2446 = vadd.f32 0.0, %v2445
        %v2447 = vpop.f32.mrb[0].mxu0
        %2448 = vdwg.mxu0
        %v2449 = vadd.f32 %v2283, %v2443
        %v2450 = vadd.f32 %v2284, %v2446
        %2452 = vrot.lane.b32.xlu0 %v2285, 64
        %v2453 = vpop.permute.xlu0 %2452
        %2455 = vrot.lane.b32.xlu0 %v2286, 64
        %v2456 = vpop.permute.xlu0 %2455
        %v2458 = vsel %vm1273, %v2453, 0
        %v2461 = vsel %vm1273, %v2456, 0
        %2463 = vmatprep.subr.bf16.mxu0 0
        %2464 = vmatpush1.bf16.xpose.msra.mxu0 %v2461
        %2465 = vmatprep.subr.bf16.mxu0 0
        %2466 = vmatpush1.bf16.xpose.msra.mxu0 0
        %2467 = vmatprep.subr.bf16.mxu0 0
        %2468 = vmatpush1.bf16.xpose.msra.mxu0 0
        %2469 = vmatprep.subr.bf16.mxu0 0
        %2470 = vmatpush1.bf16.xpose.msra.mxu0 0
        %2471 = vmatprep.subr.bf16.mxu0 0
        %2472 = vmatpush1.bf16.xpose.msra.mxu0 0
        %2473 = vmatprep.subr.bf16.mxu0 0
        %2474 = vmatpush1.bf16.xpose.msra.mxu0 0
        %2475 = vmatprep.subr.bf16.mxu0 0
        %2476 = vmatpush1.bf16.xpose.msra.mxu0 0
        %2477 = vmatprep.subr.bf16.mxu0 0
        %2478 = vmatpush1.bf16.xpose.msra.mxu0 0
        %2479 = vmatprep.subr.bf16.mxu0 0
        %2480 = vmatpush1.bf16.xpose.msra.mxu0 0
        %2481 = vmatprep.subr.bf16.mxu0 0
        %2482 = vmatpush1.bf16.xpose.msra.mxu0 0
        %2483 = vmatprep.subr.bf16.mxu0 0
        %2484 = vmatpush1.bf16.xpose.msra.mxu0 0
        %2485 = vmatprep.subr.bf16.mxu0 0
        %2486 = vmatpush1.bf16.xpose.msra.mxu0 0
        %2487 = vmatprep.subr.bf16.mxu0 0
        %2488 = vmatpush1.bf16.xpose.msra.mxu0 0
        %2489 = vmatprep.subr.bf16.mxu0 0
        %2490 = vmatpush1.bf16.xpose.msra.mxu0 0
        %2491 = vmatprep.subr.bf16.mxu0 0
        %2492 = vmatpush1.bf16.xpose.msra.mxu0 0
        %2493 = vmatprep.subr.bf16.mxu0 0
        %2494 = vmatpush1.bf16.xpose.msra.mxu0 0
        %2495 = vmatprep.mubr.bf16.mxu0 0
        %2496 = vmatmul.mubr.bf16.gmra.mrb[0].mxu0 %v2458
        %v2497 = vpop.f32.mrb[0].mxu0
        %v2498 = vadd.f32 0.0, %v2497
        %v2499 = vpop.f32.mrb[0].mxu0
        %v2500 = vpop.f32.mrb[0].mxu0
        %v2501 = vadd.f32 0.0, %v2500
        %v2502 = vpop.f32.mrb[0].mxu0
        %2503 = vdwg.mxu0
        %v2504 = vmul.f32 %v2498, 0.125
        %v2505 = vmul.f32 %v2501, 0.125
        %v2506 = vsel %vm1323, %v2504, -inf
        %2507 = vmax.xlane.f32.xlu0 %v2506
        %v2508 = vpop.xlane.xlu0 %2507
        %v2509 = vsel %vm1323, %v2505, -inf
        %2510 = vmax.xlane.f32.xlu0 %v2509
        %v2511 = vpop.xlane.xlu0 %2510
        %v2512 = vsub.f32 %v2504, %v2508
        %v2513 = vsub.f32 %v2505, %v2511
        %v2514 = vmul.f32 %v2512, 1.442695
        %v2515 = vpow.pop %v2514
        %v2516 = vmul.f32 %v2513, 1.442695
        %v2517 = vpow.pop %v2516
        %v2518 = vsel %vm1323, %v2515, 0.0
        %2519 = vadd.xlane.f32.xlu0 %v2518
        %v2520 = vpop.xlane.xlu0 %2519
        %v2521 = vsel %vm1323, %v2517, 0.0
        %2522 = vadd.xlane.f32.xlu0 %v2521
        %v2523 = vpop.xlane.xlu0 %2522
        %v2524 = vrcp.pop %v2520
        %v2525 = vmul.f32 %v2515, %v2524
        %v2526 = vrcp.pop %v2523
        %v2527 = vmul.f32 %v2517, %v2526
        %v2528 = vpack.c.bf16 %v2527, %v2525
        %2530 = vrot.lane.b32.xlu0 %v2287, 64
        %v2531 = vpop.permute.xlu0 %2530
        %v2534 = vsel %vm1323, %v2528, 0
        %2536 = vmatprep.subr.bf16.mxu0 0
        %2537 = vmatpush1.bf16.msra.mxu0 %v2531
        %2538 = vmatprep.subr.bf16.mxu0 0
        %2539 = vmatpush1.bf16.msra.mxu0 0
        %2540 = vmatprep.subr.bf16.mxu0 0
        %2541 = vmatpush1.bf16.msra.mxu0 0
        %2542 = vmatprep.subr.bf16.mxu0 0
        %2543 = vmatpush1.bf16.msra.mxu0 0
        %2544 = vmatprep.subr.bf16.mxu0 0
        %2545 = vmatpush1.bf16.msra.mxu0 0
        %2546 = vmatprep.subr.bf16.mxu0 0
        %2547 = vmatpush1.bf16.msra.mxu0 0
        %2548 = vmatprep.subr.bf16.mxu0 0
        %2549 = vmatpush1.bf16.msra.mxu0 0
        %2550 = vmatprep.subr.bf16.mxu0 0
        %2551 = vmatpush1.bf16.msra.mxu0 0
        %2552 = vmatprep.subr.bf16.mxu0 0
        %2553 = vmatpush1.bf16.msra.mxu0 0
        %2554 = vmatprep.subr.bf16.mxu0 0
        %2555 = vmatpush1.bf16.msra.mxu0 0
        %2556 = vmatprep.subr.bf16.mxu0 0
        %2557 = vmatpush1.bf16.msra.mxu0 0
        %2558 = vmatprep.subr.bf16.mxu0 0
        %2559 = vmatpush1.bf16.msra.mxu0 0
        %2560 = vmatprep.subr.bf16.mxu0 0
        %2561 = vmatpush1.bf16.msra.mxu0 0
        %2562 = vmatprep.subr.bf16.mxu0 0
        %2563 = vmatpush1.bf16.msra.mxu0 0
        %2564 = vmatprep.subr.bf16.mxu0 0
        %2565 = vmatpush1.bf16.msra.mxu0 0
        %2566 = vmatprep.subr.bf16.mxu0 0
        %2567 = vmatpush1.bf16.msra.mxu0 0
        %2568 = vmatprep.mubr.bf16.mxu0 0
        %2569 = vmatmul.mubr.bf16.gmra.mrb[0].mxu0 %v2534
        %v2570 = vpop.f32.mrb[0].mxu0
        %v2571 = vadd.f32 0.0, %v2570
        %v2572 = vpop.f32.mrb[0].mxu0
        %v2573 = vpop.f32.mrb[0].mxu0
        %v2574 = vadd.f32 0.0, %v2573
        %v2575 = vpop.f32.mrb[0].mxu0
        %2576 = vdwg.mxu0
        %v2577 = vpack.c.bf16 %v2574, %v2571
        %v2579 = vsel %vm1273, %v2577, 0
        %2581 = vmatprep.subr.bf16.mxu0 0
        %2582 = vmatpush1.bf16.msra.mxu0 %v1266
        %2583 = vmatprep.subr.bf16.mxu0 0
        %2584 = vmatpush1.bf16.msra.mxu0 %v1267
        %2585 = vmatprep.subr.bf16.mxu0 0
        %2586 = vmatpush1.bf16.msra.mxu0 %v1268
        %2587 = vmatprep.subr.bf16.mxu0 0
        %2588 = vmatpush1.bf16.msra.mxu0 %v1269
        %2589 = vmatprep.subr.bf16.mxu0 0
        %2590 = vmatpush1.bf16.msra.mxu0 0
        %2591 = vmatprep.subr.bf16.mxu0 0
        %2592 = vmatpush1.bf16.msra.mxu0 0
        %2593 = vmatprep.subr.bf16.mxu0 0
        %2594 = vmatpush1.bf16.msra.mxu0 0
        %2595 = vmatprep.subr.bf16.mxu0 0
        %2596 = vmatpush1.bf16.msra.mxu0 0
        %2597 = vmatprep.subr.bf16.mxu0 0
        %2598 = vmatpush1.bf16.msra.mxu0 0
        %2599 = vmatprep.subr.bf16.mxu0 0
        %2600 = vmatpush1.bf16.msra.mxu0 0
        %2601 = vmatprep.subr.bf16.mxu0 0
        %2602 = vmatpush1.bf16.msra.mxu0 0
        %2603 = vmatprep.subr.bf16.mxu0 0
        %2604 = vmatpush1.bf16.msra.mxu0 0
        %2605 = vmatprep.subr.bf16.mxu0 0
        %2606 = vmatpush1.bf16.msra.mxu0 0
        %2607 = vmatprep.subr.bf16.mxu0 0
        %2608 = vmatpush1.bf16.msra.mxu0 0
        %2609 = vmatprep.subr.bf16.mxu0 0
        %2610 = vmatpush1.bf16.msra.mxu0 0
        %2611 = vmatprep.subr.bf16.mxu0 0
        %2612 = vmatpush1.bf16.msra.mxu0 0
        %2613 = vmatprep.mubr.bf16.mxu0 0
        %2614 = vmatmul.mubr.bf16.gmra.mrb[0].mxu0 %v2579
        %v2615 = vpop.f32.mrb[0].mxu0
        %v2616 = vadd.f32 0.0, %v2615
        %v2617 = vpop.f32.mrb[0].mxu0
        %v2618 = vpop.f32.mrb[0].mxu0
        %v2619 = vadd.f32 0.0, %v2618
        %v2620 = vpop.f32.mrb[0].mxu0
        %2621 = vdwg.mxu0
        %v2622 = vadd.f32 %v2449, %v2616
        %v2623 = vadd.f32 %v2450, %v2619
        %v2624 = vld [vmem:[#allocation11] sm:$0x1]
        %v2626 = vlaneseq
        %v2627 = vshrl.u32 %v2626, 7
        %v2628 = vsub.s32 0, %v2627
        %v2629 = vrot.slane %v2624, %v2628
        %v2631 = vadd.f32 %v2622, %v2629
        %v2632 = vadd.f32 %v2623, %v2629
        %v2633 = vadd.f32 %v2631, %v579
        %v2634 = vadd.f32 %v2632, %v580
        %v2635 = vld [vmem:[#allocation13] sm:$0x1]
        %v2636 = vld [vmem:[#allocation14] sm:$0x1]
        %2637 = vadd.xlane.f32.xlu0 %v2633
        %v2638 = vpop.xlane.xlu0 %2637
        %2639 = vadd.xlane.f32.xlu0 %v2634
        %v2640 = vpop.xlane.xlu0 %2639
        %v2641 = vmul.f32 %v2638, 0.010416667
        %v2642 = vmul.f32 %v2640, 0.010416667
        %v2643 = vmul.f32 %v2633, %v2633
        %v2644 = vmul.f32 %v2634, %v2634
        %2645 = vadd.xlane.f32.xlu0 %v2643
        %v2646 = vpop.xlane.xlu0 %2645
        %2647 = vadd.xlane.f32.xlu0 %v2644
        %v2648 = vpop.xlane.xlu0 %2647
        %v2649 = vmul.f32 %v2646, 0.010416667
        %v2650 = vmul.f32 %v2648, 0.010416667
        %v2651 = vmul.f32 %v2641, %v2641
        %v2652 = vmul.f32 %v2642, %v2642
        %v2653 = vsub.f32 %v2649, %v2651
        %v2654 = vsub.f32 %v2650, %v2652
        %v2655 = vmax.f32 %v2653, 0.0
        %v2656 = vmax.f32 %v2654, 0.0
        %v2657 = vsub.f32 %v2633, %v2641
        %v2658 = vsub.f32 %v2634, %v2642
        %v2659 = vadd.f32 %v2655, 1e-05
        %v2660 = vadd.f32 %v2656, 1e-05
        %v2661 = vrsqrt.pop %v2659
        %v2662 = vrsqrt.pop %v2660
        %v2663 = vmul.f32 %v2657, %v2661
        %v2664 = vmul.f32 %v2658, %v2662
        %v2666 = vlaneseq
        %v2667 = vshrl.u32 %v2666, 7
        %v2668 = vsub.s32 0, %v2667
        %v2669 = vrot.slane %v2635, %v2668
        %v2671 = vmul.f32 %v2663, %v2669
        %v2672 = vmul.f32 %v2664, %v2669
        %v2674 = vlaneseq
        %v2675 = vshrl.u32 %v2674, 7
        %v2676 = vsub.s32 0, %v2675
        %v2677 = vrot.slane %v2636, %v2676
        %v2679 = vadd.f32 %v2671, %v2677
        %v2680 = vadd.f32 %v2672, %v2677
        %v2681 = vld [vmem:[#allocation16] sm:$0xff]
        %v2682 = vld [vmem:[#allocation16 + $0x8] sm:$0xff]
        %v2683 = vld [vmem:[#allocation16 + $0x10] sm:$0xff]
        %v2684 = vld [vmem:[#allocation16 + $0x18] sm:$0xff]
        %v2685 = vld [vmem:[#allocation16 + $0x20] sm:$0xff]
        %v2686 = vld [vmem:[#allocation16 + $0x28] sm:$0xff]
        %v2687 = vld [vmem:[#allocation16 + $0x30] sm:$0xff]
        %v2688 = vld [vmem:[#allocation16 + $0x38] sm:$0xff]
        %v2689 = vld [vmem:[#allocation16 + $0x40] sm:$0xff]
        %v2690 = vld [vmem:[#allocation16 + $0x48] sm:$0xff]
        %v2691 = vld [vmem:[#allocation16 + $0x50] sm:$0xff]
        %v2692 = vld [vmem:[#allocation16 + $0x58] sm:$0xff]
        %v2693 = vld [vmem:[#allocation16 + $0x60] sm:$0xff]
        %v2694 = vld [vmem:[#allocation16 + $0x68] sm:$0xff]
        %v2695 = vld [vmem:[#allocation16 + $0x70] sm:$0xff]
        %v2696 = vld [vmem:[#allocation16 + $0x78] sm:$0xff]
        %v2697 = vld [vmem:[#allocation16 + $0x80] sm:$0xff]
        %v2698 = vld [vmem:[#allocation16 + $0x88] sm:$0xff]
        %v2699 = vld [vmem:[#allocation16 + $0x90] sm:$0xff]
        %v2700 = vld [vmem:[#allocation16 + $0x98] sm:$0xff]
        %v2701 = vld [vmem:[#allocation16 + $0xa0] sm:$0xff]
        %v2702 = vld [vmem:[#allocation16 + $0xa8] sm:$0xff]
        %v2703 = vld [vmem:[#allocation16 + $0xb0] sm:$0xff]
        %v2704 = vld [vmem:[#allocation16 + $0xb8] sm:$0xff]
        %v2705 = vld [vmem:[#allocation16 + $0xc0] sm:$0xff]
        %v2706 = vld [vmem:[#allocation16 + $0xc8] sm:$0xff]
        %v2707 = vld [vmem:[#allocation16 + $0xd0] sm:$0xff]
        %v2708 = vld [vmem:[#allocation16 + $0xd8] sm:$0xff]
        %v2709 = vld [vmem:[#allocation16 + $0xe0] sm:$0xff]
        %v2710 = vld [vmem:[#allocation16 + $0xe8] sm:$0xff]
        %v2711 = vld [vmem:[#allocation16 + $0xf0] sm:$0xff]
        %v2712 = vld [vmem:[#allocation16 + $0xf8] sm:$0xff]
        %v2713 = vld [vmem:[#allocation16 + $0x100] sm:$0xff]
        %v2714 = vld [vmem:[#allocation16 + $0x108] sm:$0xff]
        %v2715 = vld [vmem:[#allocation16 + $0x110] sm:$0xff]
        %v2716 = vld [vmem:[#allocation16 + $0x118] sm:$0xff]
        %v2717 = vld [vmem:[#allocation16 + $0x120] sm:$0xff]
        %v2718 = vld [vmem:[#allocation16 + $0x128] sm:$0xff]
        %v2719 = vld [vmem:[#allocation16 + $0x130] sm:$0xff]
        %v2720 = vld [vmem:[#allocation16 + $0x138] sm:$0xff]
        %v2721 = vld [vmem:[#allocation16 + $0x140] sm:$0xff]
        %v2722 = vld [vmem:[#allocation16 + $0x148] sm:$0xff]
        %v2723 = vld [vmem:[#allocation16 + $0x150] sm:$0xff]
        %v2724 = vld [vmem:[#allocation16 + $0x158] sm:$0xff]
        %v2725 = vld [vmem:[#allocation16 + $0x160] sm:$0xff]
        %v2726 = vld [vmem:[#allocation16 + $0x168] sm:$0xff]
        %v2727 = vld [vmem:[#allocation16 + $0x170] sm:$0xff]
        %v2728 = vld [vmem:[#allocation16 + $0x178] sm:$0xff]
        %v2729 = vpack.c.bf16 %v2680, %v2679
        %v2730 = vpack.c.bf16 %v2684, %v2681
        %v2731 = vpack.c.bf16 %v2685, %v2682
        %v2732 = vpack.c.bf16 %v2686, %v2683
        %v2733 = vpack.c.bf16 %v2690, %v2687
        %v2734 = vpack.c.bf16 %v2691, %v2688
        %v2735 = vpack.c.bf16 %v2692, %v2689
        %v2736 = vpack.c.bf16 %v2696, %v2693
        %v2737 = vpack.c.bf16 %v2697, %v2694
        %v2738 = vpack.c.bf16 %v2698, %v2695
        %v2739 = vpack.c.bf16 %v2702, %v2699
        %v2740 = vpack.c.bf16 %v2703, %v2700
        %v2741 = vpack.c.bf16 %v2704, %v2701
        %v2742 = vpack.c.bf16 %v2708, %v2705
        %v2743 = vpack.c.bf16 %v2709, %v2706
        %v2744 = vpack.c.bf16 %v2710, %v2707
        %v2745 = vpack.c.bf16 %v2714, %v2711
        %v2746 = vpack.c.bf16 %v2715, %v2712
        %v2747 = vpack.c.bf16 %v2716, %v2713
        %v2748 = vpack.c.bf16 %v2720, %v2717
        %v2749 = vpack.c.bf16 %v2721, %v2718
        %v2750 = vpack.c.bf16 %v2722, %v2719
        %v2751 = vpack.c.bf16 %v2726, %v2723
        %v2752 = vpack.c.bf16 %v2727, %v2724
        %v2753 = vpack.c.bf16 %v2728, %v2725
        %v2754 = vld [vmem:[#allocation17] sm:$0x7]
        %v2756 = vlaneseq
        %v2757 = vshrl.u32 %v2756, 7
        %v2758 = vsub.s32 0, %v2757
        %v2759 = vrot.slane %v2754, %v2758
        %v2760 = vlaneseq
        %v2761 = vshrl.u32 %v2760, 7
        %v2762 = vsub.s32 1, %v2761
        %v2763 = vrot.slane %v2754, %v2762
        %v2764 = vlaneseq
        %v2765 = vshrl.u32 %v2764, 7
        %v2766 = vsub.s32 2, %v2765
        %v2767 = vrot.slane %v2754, %v2766
        %2771 = vmatprep.subr.bf16.mxu0 %v2731
        %2772 = vmatpush1.bf16.msra.mxu0 %v2730
        %2773 = vmatprep.subr.bf16.mxu0 %v2734
        %2774 = vmatpush1.bf16.msra.mxu0 %v2733
        %2775 = vmatprep.subr.bf16.mxu0 %v2737
        %2776 = vmatpush1.bf16.msra.mxu0 %v2736
        %2777 = vmatprep.subr.bf16.mxu0 %v2740
        %2778 = vmatpush1.bf16.msra.mxu0 %v2739
        %2779 = vmatprep.subr.bf16.mxu0 %v2743
        %2780 = vmatpush1.bf16.msra.mxu0 %v2742
        %2781 = vmatprep.subr.bf16.mxu0 %v2746
        %2782 = vmatpush1.bf16.msra.mxu0 %v2745
        %2783 = vmatprep.subr.bf16.mxu0 %v2749
        %2784 = vmatpush1.bf16.msra.mxu0 %v2748
        %2785 = vmatprep.subr.bf16.mxu0 %v2752
        %2786 = vmatpush1.bf16.msra.mxu0 %v2751
        %2787 = vmatprep.subr.bf16.mxu0 0
        %2788 = vmatpush1.bf16.msra.mxu0 0
        %2789 = vmatprep.subr.bf16.mxu0 0
        %2790 = vmatpush1.bf16.msra.mxu0 0
        %2791 = vmatprep.subr.bf16.mxu0 0
        %2792 = vmatpush1.bf16.msra.mxu0 0
        %2793 = vmatprep.subr.bf16.mxu0 0
        %2794 = vmatpush1.bf16.msra.mxu0 0
        %2795 = vmatprep.subr.bf16.mxu0 0
        %2796 = vmatpush1.bf16.msra.mxu0 0
        %2797 = vmatprep.subr.bf16.mxu0 0
        %2798 = vmatpush1.bf16.msra.mxu0 0
        %2799 = vmatprep.subr.bf16.mxu0 0
        %2800 = vmatpush1.bf16.msra.mxu0 0
        %2801 = vmatprep.subr.bf16.mxu0 0
        %2802 = vmatpush1.bf16.msra.mxu0 0
        %2803 = vmatprep.mubr.bf16.mxu0 0
        %2804 = vmatmul.mubr.bf16.gmra.mrb[0].mxu0 %v2729
        %v2805 = vpop.f32.mrb[0].mxu0
        %v2806 = vadd.f32 %v2759, %v2805
        %v2807 = vpop.f32.mrb[0].mxu0
        %v2808 = vadd.f32 %v2763, %v2807
        %v2809 = vpop.f32.mrb[0].mxu0
        %v2810 = vadd.f32 %v2759, %v2809
        %v2811 = vpop.f32.mrb[0].mxu0
        %v2812 = vadd.f32 %v2763, %v2811
        %2813 = vdwg.mxu0
        %2814 = vmatprep.subr.bf16.mxu0 0
        %2815 = vmatpush1.bf16.msra.mxu0 %v2732
        %2816 = vmatprep.subr.bf16.mxu0 0
        %2817 = vmatpush1.bf16.msra.mxu0 %v2735
        %2818 = vmatprep.subr.bf16.mxu0 0
        %2819 = vmatpush1.bf16.msra.mxu0 %v2738
        %2820 = vmatprep.subr.bf16.mxu0 0
        %2821 = vmatpush1.bf16.msra.mxu0 %v2741
        %2822 = vmatprep.subr.bf16.mxu0 0
        %2823 = vmatpush1.bf16.msra.mxu0 %v2744
        %2824 = vmatprep.subr.bf16.mxu0 0
        %2825 = vmatpush1.bf16.msra.mxu0 %v2747
        %2826 = vmatprep.subr.bf16.mxu0 0
        %2827 = vmatpush1.bf16.msra.mxu0 %v2750
        %2828 = vmatprep.subr.bf16.mxu0 0
        %2829 = vmatpush1.bf16.msra.mxu0 %v2753
        %2830 = vmatprep.subr.bf16.mxu0 0
        %2831 = vmatpush1.bf16.msra.mxu0 0
        %2832 = vmatprep.subr.bf16.mxu0 0
        %2833 = vmatpush1.bf16.msra.mxu0 0
        %2834 = vmatprep.subr.bf16.mxu0 0
        %2835 = vmatpush1.bf16.msra.mxu0 0
        %2836 = vmatprep.subr.bf16.mxu0 0
        %2837 = vmatpush1.bf16.msra.mxu0 0
        %2838 = vmatprep.subr.bf16.mxu0 0
        %2839 = vmatpush1.bf16.msra.mxu0 0
        %2840 = vmatprep.subr.bf16.mxu0 0
        %2841 = vmatpush1.bf16.msra.mxu0 0
        %2842 = vmatprep.subr.bf16.mxu0 0
        %2843 = vmatpush1.bf16.msra.mxu0 0
        %2844 = vmatprep.subr.bf16.mxu0 0
        %2845 = vmatpush1.bf16.msra.mxu0 0
        %2846 = vmatprep.mubr.bf16.mxu0 0
        %2847 = vmatmul.mubr.bf16.gmra.mrb[0].mxu0 %v2729
        %v2848 = vpop.f32.mrb[0].mxu0
        %v2849 = vadd.f32 %v2767, %v2848
        %v2850 = vpop.f32.mrb[0].mxu0
        %v2851 = vpop.f32.mrb[0].mxu0
        %v2852 = vadd.f32 %v2767, %v2851
        %v2853 = vpop.f32.mrb[0].mxu0
        %2854 = vdwg.mxu0
        %v2855 = vmul.f32 %v2806, 0.5
        %v2856 = vmul.f32 %v2808, 0.5
        %v2857 = vmul.f32 %v2849, 0.5
        %v2858 = vmul.f32 %v2810, 0.5
        %v2859 = vmul.f32 %v2812, 0.5
        %v2860 = vmul.f32 %v2852, 0.5
        %v2861 = vmul.f32 %v2806, 0.70710677
        %v2862 = vmul.f32 %v2808, 0.70710677
        %v2863 = vmul.f32 %v2849, 0.70710677
        %v2864 = vmul.f32 %v2810, 0.70710677
        %v2865 = vmul.f32 %v2812, 0.70710677
        %v2866 = vmul.f32 %v2852, 0.70710677
        %v2867 = vand.u32 2147483647, %v2861
        %v2868 = vand.u32 2147483647, %v2862
        %v2869 = vand.u32 2147483647, %v2863
        %v2870 = vand.u32 2147483647, %v2864
        %v2871 = vand.u32 2147483647, %v2865
        %v2872 = vand.u32 2147483647, %v2866
        %v2873 = vmul.f32 %v2867, 0.3275911
        %v2874 = vmul.f32 %v2868, 0.3275911
        %v2875 = vmul.f32 %v2869, 0.3275911
        %v2876 = vmul.f32 %v2870, 0.3275911
        %v2877 = vmul.f32 %v2871, 0.3275911
        %v2878 = vmul.f32 %v2872, 0.3275911
        %v2879 = vadd.f32 %v2873, 1.0
        %v2880 = vadd.f32 %v2874, 1.0
        %v2881 = vadd.f32 %v2875, 1.0
        %v2882 = vadd.f32 %v2876, 1.0
        %v2883 = vadd.f32 %v2877, 1.0
        %v2884 = vadd.f32 %v2878, 1.0
        %v2885 = vrcp.pop %v2879
        %v2886 = vmul.f32 1.0, %v2885
        %v2887 = vrcp.pop %v2880
        %v2888 = vmul.f32 1.0, %v2887
        %v2889 = vrcp.pop %v2881
        %v2890 = vmul.f32 1.0, %v2889
        %v2891 = vrcp.pop %v2882
        %v2892 = vmul.f32 1.0, %v2891
        %v2893 = vrcp.pop %v2883
        %v2894 = vmul.f32 1.0, %v2893
        %v2895 = vrcp.pop %v2884
        %v2896 = vmul.f32 1.0, %v2895
        %v2897 = vmul.f32 %v2886, 1.0614054
        %v2898 = vmul.f32 %v2888, 1.0614054
        %v2899 = vmul.f32 %v2890, 1.0614054
        %v2900 = vmul.f32 %v2892, 1.0614054
        %v2901 = vmul.f32 %v2894, 1.0614054
        %v2902 = vmul.f32 %v2896, 1.0614054
        %v2903 = vadd.f32 %v2897, -1.4531521
        %v2904 = vadd.f32 %v2898, -1.4531521
        %v2905 = vadd.f32 %v2899, -1.4531521
        %v2906 = vadd.f32 %v2900, -1.4531521
        %v2907 = vadd.f32 %v2901, -1.4531521
        %v2908 = vadd.f32 %v2902, -1.4531521
        %v2909 = vmul.f32 %v2903, %v2886
        %v2910 = vmul.f32 %v2904, %v2888
        %v2911 = vmul.f32 %v2905, %v2890
        %v2912 = vmul.f32 %v2906, %v2892
        %v2913 = vmul.f32 %v2907, %v2894
        %v2914 = vmul.f32 %v2908, %v2896
        %v2915 = vadd.f32 %v2909, 1.4214138
        %v2916 = vadd.f32 %v2910, 1.4214138
        %v2917 = vadd.f32 %v2911, 1.4214138
        %v2918 = vadd.f32 %v2912, 1.4214138
        %v2919 = vadd.f32 %v2913, 1.4214138
        %v2920 = vadd.f32 %v2914, 1.4214138
        %v2921 = vmul.f32 %v2915, %v2886
        %v2922 = vmul.f32 %v2916, %v2888
        %v2923 = vmul.f32 %v2917, %v2890
        %v2924 = vmul.f32 %v2918, %v2892
        %v2925 = vmul.f32 %v2919, %v2894
        %v2926 = vmul.f32 %v2920, %v2896
        %v2927 = vadd.f32 %v2921, -0.28449672
        %v2928 = vadd.f32 %v2922, -0.28449672
        %v2929 = vadd.f32 %v2923, -0.28449672
        %v2930 = vadd.f32 %v2924, -0.28449672
        %v2931 = vadd.f32 %v2925, -0.28449672
        %v2932 = vadd.f32 %v2926, -0.28449672
        %v2933 = vmul.f32 %v2927, %v2886
        %v2934 = vmul.f32 %v2928, %v2888
        %v2935 = vmul.f32 %v2929, %v2890
        %v2936 = vmul.f32 %v2930, %v2892
        %v2937 = vmul.f32 %v2931, %v2894
        %v2938 = vmul.f32 %v2932, %v2896
        %v2939 = vadd.f32 %v2933, 0.2548296
        %v2940 = vadd.f32 %v2934, 0.2548296
        %v2941 = vadd.f32 %v2935, 0.2548296
        %v2942 = vadd.f32 %v2936, 0.2548296
        %v2943 = vadd.f32 %v2937, 0.2548296
        %v2944 = vadd.f32 %v2938, 0.2548296
        %v2945 = vmul.f32 %v2939, %v2886
        %v2946 = vmul.f32 %v2940, %v2888
        %v2947 = vmul.f32 %v2941, %v2890
        %v2948 = vmul.f32 %v2942, %v2892
        %v2949 = vmul.f32 %v2943, %v2894
        %v2950 = vmul.f32 %v2944, %v2896
        %v2951 = vsub.f32 0.0, %v2867
        %v2952 = vsub.f32 0.0, %v2868
        %v2953 = vsub.f32 0.0, %v2869
        %v2954 = vsub.f32 0.0, %v2870
        %v2955 = vsub.f32 0.0, %v2871
        %v2956 = vsub.f32 0.0, %v2872
        %v2957 = vmul.f32 %v2951, %v2867
        %v2958 = vmul.f32 %v2952, %v2868
        %v2959 = vmul.f32 %v2953, %v2869
        %v2960 = vmul.f32 %v2954, %v2870
        %v2961 = vmul.f32 %v2955, %v2871
        %v2962 = vmul.f32 %v2956, %v2872
        %v2963 = vmul.f32 %v2957, 1.442695
        %v2964 = vpow.pop %v2963
        %v2965 = vmul.f32 %v2958, 1.442695
        %v2966 = vpow.pop %v2965
        %v2967 = vmul.f32 %v2959, 1.442695
        %v2968 = vpow.pop %v2967
        %v2969 = vmul.f32 %v2960, 1.442695
        %v2970 = vpow.pop %v2969
        %v2971 = vmul.f32 %v2961, 1.442695
        %v2972 = vpow.pop %v2971
        %v2973 = vmul.f32 %v2962, 1.442695
        %v2974 = vpow.pop %v2973
        %v2975 = vmul.f32 %v2945, %v2964
        %v2976 = vmul.f32 %v2946, %v2966
        %v2977 = vmul.f32 %v2947, %v2968
        %v2978 = vmul.f32 %v2948, %v2970
        %v2979 = vmul.f32 %v2949, %v2972
        %v2980 = vmul.f32 %v2950, %v2974
        %v2981 = vsub.f32 1.0, %v2975
        %v2982 = vsub.f32 1.0, %v2976
        %v2983 = vsub.f32 1.0, %v2977
        %v2984 = vsub.f32 1.0, %v2978
        %v2985 = vsub.f32 1.0, %v2979
        %v2986 = vsub.f32 1.0, %v2980
        %vm2987 = vcmp.ge.f32.partialorder %v2861, 0.0
        %vm2988 = vcmp.ge.f32.partialorder %v2862, 0.0
        %vm2989 = vcmp.ge.f32.partialorder %v2863, 0.0
        %vm2990 = vcmp.ge.f32.partialorder %v2864, 0.0
        %vm2991 = vcmp.ge.f32.partialorder %v2865, 0.0
        %vm2992 = vcmp.ge.f32.partialorder %v2866, 0.0
        %v2993 = vsub.f32 0.0, %v2981
        %v2994 = vsub.f32 0.0, %v2982
        %v2995 = vsub.f32 0.0, %v2983
        %v2996 = vsub.f32 0.0, %v2984
        %v2997 = vsub.f32 0.0, %v2985
        %v2998 = vsub.f32 0.0, %v2986
        %v2999 = vsel %vm2987, %v2981, %v2993
        %v3000 = vsel %vm2988, %v2982, %v2994
        %v3001 = vsel %vm2989, %v2983, %v2995
        %v3002 = vsel %vm2990, %v2984, %v2996
        %v3003 = vsel %vm2991, %v2985, %v2997
        %v3004 = vsel %vm2992, %v2986, %v2998
        %v3005 = vadd.f32 %v2999, 1.0
        %v3006 = vadd.f32 %v3000, 1.0
        %v3007 = vadd.f32 %v3001, 1.0
        %v3008 = vadd.f32 %v3002, 1.0
        %v3009 = vadd.f32 %v3003, 1.0
        %v3010 = vadd.f32 %v3004, 1.0
        %v3011 = vmul.f32 %v2855, %v3005
        %v3012 = vmul.f32 %v2856, %v3006
        %v3013 = vmul.f32 %v2857, %v3007
        %v3014 = vmul.f32 %v2858, %v3008
        %v3015 = vmul.f32 %v2859, %v3009
        %v3016 = vmul.f32 %v2860, %v3010
        %v3017 = vld [vmem:[#allocation19] sm:$0xff]
        %v3018 = vld [vmem:[#allocation19 + $0x8] sm:$0xff]
        %v3019 = vld [vmem:[#allocation19 + $0x10] sm:$0xff]
        %v3020 = vld [vmem:[#allocation19 + $0x18] sm:$0xff]
        %v3021 = vld [vmem:[#allocation19 + $0x20] sm:$0xff]
        %v3022 = vld [vmem:[#allocation19 + $0x28] sm:$0xff]
        %v3023 = vld [vmem:[#allocation19 + $0x30] sm:$0xff]
        %v3024 = vld [vmem:[#allocation19 + $0x38] sm:$0xff]
        %v3025 = vld [vmem:[#allocation19 + $0x40] sm:$0xff]
        %v3026 = vld [vmem:[#allocation19 + $0x48] sm:$0xff]
        %v3027 = vld [vmem:[#allocation19 + $0x50] sm:$0xff]
        %v3028 = vld [vmem:[#allocation19 + $0x58] sm:$0xff]
        %v3029 = vld [vmem:[#allocation19 + $0x60] sm:$0xff]
        %v3030 = vld [vmem:[#allocation19 + $0x68] sm:$0xff]
        %v3031 = vld [vmem:[#allocation19 + $0x70] sm:$0xff]
        %v3032 = vld [vmem:[#allocation19 + $0x78] sm:$0xff]
        %v3033 = vld [vmem:[#allocation19 + $0x80] sm:$0xff]
        %v3034 = vld [vmem:[#allocation19 + $0x88] sm:$0xff]
        %v3035 = vld [vmem:[#allocation19 + $0x90] sm:$0xff]
        %v3036 = vld [vmem:[#allocation19 + $0x98] sm:$0xff]
        %v3037 = vld [vmem:[#allocation19 + $0xa0] sm:$0xff]
        %v3038 = vld [vmem:[#allocation19 + $0xa8] sm:$0xff]
        %v3039 = vld [vmem:[#allocation19 + $0xb0] sm:$0xff]
        %v3040 = vld [vmem:[#allocation19 + $0xb8] sm:$0xff]
        %v3041 = vld [vmem:[#allocation19 + $0xc0] sm:$0xff]
        %v3042 = vld [vmem:[#allocation19 + $0xc8] sm:$0xff]
        %v3043 = vld [vmem:[#allocation19 + $0xd0] sm:$0xff]
        %v3044 = vld [vmem:[#allocation19 + $0xd8] sm:$0xff]
        %v3045 = vld [vmem:[#allocation19 + $0xe0] sm:$0xff]
        %v3046 = vld [vmem:[#allocation19 + $0xe8] sm:$0xff]
        %v3047 = vld [vmem:[#allocation19 + $0xf0] sm:$0xff]
        %v3048 = vld [vmem:[#allocation19 + $0xf8] sm:$0xff]
        %v3049 = vld [vmem:[#allocation19 + $0x100] sm:$0xff]
        %v3050 = vld [vmem:[#allocation19 + $0x108] sm:$0xff]
        %v3051 = vld [vmem:[#allocation19 + $0x110] sm:$0xff]
        %v3052 = vld [vmem:[#allocation19 + $0x118] sm:$0xff]
        %v3053 = vld [vmem:[#allocation19 + $0x120] sm:$0xff]
        %v3054 = vld [vmem:[#allocation19 + $0x128] sm:$0xff]
        %v3055 = vld [vmem:[#allocation19 + $0x130] sm:$0xff]
        %v3056 = vld [vmem:[#allocation19 + $0x138] sm:$0xff]
        %v3057 = vld [vmem:[#allocation19 + $0x140] sm:$0xff]
        %v3058 = vld [vmem:[#allocation19 + $0x148] sm:$0xff]
        %v3059 = vld [vmem:[#allocation19 + $0x150] sm:$0xff]
        %v3060 = vld [vmem:[#allocation19 + $0x158] sm:$0xff]
        %v3061 = vld [vmem:[#allocation19 + $0x160] sm:$0xff]
        %v3062 = vld [vmem:[#allocation19 + $0x168] sm:$0xff]
        %v3063 = vld [vmem:[#allocation19 + $0x170] sm:$0xff]
        %v3064 = vld [vmem:[#allocation19 + $0x178] sm:$0xff]
        %v3065 = vpack.c.bf16 %v3014, %v3011
        %v3066 = vpack.c.bf16 %v3015, %v3012
        %v3067 = vpack.c.bf16 %v3016, %v3013
        %v3068 = vpack.c.bf16 %v3018, %v3017
        %v3069 = vpack.c.bf16 %v3020, %v3019
        %v3070 = vpack.c.bf16 %v3022, %v3021
        %v3071 = vpack.c.bf16 %v3024, %v3023
        %v3072 = vpack.c.bf16 %v3026, %v3025
        %v3073 = vpack.c.bf16 %v3028, %v3027
        %v3074 = vpack.c.bf16 %v3030, %v3029
        %v3075 = vpack.c.bf16 %v3032, %v3031
        %v3076 = vpack.c.bf16 %v3034, %v3033
        %v3077 = vpack.c.bf16 %v3036, %v3035
        %v3078 = vpack.c.bf16 %v3038, %v3037
        %v3079 = vpack.c.bf16 %v3040, %v3039
        %v3080 = vpack.c.bf16 %v3042, %v3041
        %v3081 = vpack.c.bf16 %v3044, %v3043
        %v3082 = vpack.c.bf16 %v3046, %v3045
        %v3083 = vpack.c.bf16 %v3048, %v3047
        %v3084 = vpack.c.bf16 %v3050, %v3049
        %v3085 = vpack.c.bf16 %v3052, %v3051
        %v3086 = vpack.c.bf16 %v3054, %v3053
        %v3087 = vpack.c.bf16 %v3056, %v3055
        %v3088 = vpack.c.bf16 %v3058, %v3057
        %v3089 = vpack.c.bf16 %v3060, %v3059
        %v3090 = vpack.c.bf16 %v3062, %v3061
        %v3091 = vpack.c.bf16 %v3064, %v3063
        %v3092 = vld [vmem:[#allocation20] sm:$0x1]
        %v3094 = vlaneseq
        %v3095 = vshrl.u32 %v3094, 7
        %v3096 = vsub.s32 0, %v3095
        %v3097 = vrot.slane %v3092, %v3096
        %3099 = vmatprep.subr.bf16.mxu0 0
        %3100 = vmatpush1.bf16.msra.mxu0 %v3068
        %3101 = vmatprep.subr.bf16.mxu0 0
        %3102 = vmatpush1.bf16.msra.mxu0 %v3069
        %3103 = vmatprep.subr.bf16.mxu0 0
        %3104 = vmatpush1.bf16.msra.mxu0 %v3070
        %3105 = vmatprep.subr.bf16.mxu0 0
        %3106 = vmatpush1.bf16.msra.mxu0 %v3071
        %3107 = vmatprep.subr.bf16.mxu0 0
        %3108 = vmatpush1.bf16.msra.mxu0 %v3072
        %3109 = vmatprep.subr.bf16.mxu0 0
        %3110 = vmatpush1.bf16.msra.mxu0 %v3073
        %3111 = vmatprep.subr.bf16.mxu0 0
        %3112 = vmatpush1.bf16.msra.mxu0 %v3074
        %3113 = vmatprep.subr.bf16.mxu0 0
        %3114 = vmatpush1.bf16.msra.mxu0 %v3075
        %3115 = vmatprep.subr.bf16.mxu0 0
        %3116 = vmatpush1.bf16.msra.mxu0 %v3076
        %3117 = vmatprep.subr.bf16.mxu0 0
        %3118 = vmatpush1.bf16.msra.mxu0 %v3077
        %3119 = vmatprep.subr.bf16.mxu0 0
        %3120 = vmatpush1.bf16.msra.mxu0 %v3078
        %3121 = vmatprep.subr.bf16.mxu0 0
        %3122 = vmatpush1.bf16.msra.mxu0 %v3079
        %3123 = vmatprep.subr.bf16.mxu0 0
        %3124 = vmatpush1.bf16.msra.mxu0 %v3080
        %3125 = vmatprep.subr.bf16.mxu0 0
        %3126 = vmatpush1.bf16.msra.mxu0 %v3081
        %3127 = vmatprep.subr.bf16.mxu0 0
        %3128 = vmatpush1.bf16.msra.mxu0 %v3082
        %3129 = vmatprep.subr.bf16.mxu0 0
        %3130 = vmatpush1.bf16.msra.mxu0 %v3083
        %3131 = vmatprep.mubr.bf16.mxu0 %v3066
        %3132 = vmatmul.mubr.bf16.gmra.mrb[0].mxu0 %v3065
        %v3133 = vpop.f32.mrb[0].mxu0
        %v3134 = vadd.f32 %v3097, %v3133
        %v3135 = vpop.f32.mrb[0].mxu0
        %v3136 = vpop.f32.mrb[0].mxu0
        %v3137 = vadd.f32 %v3097, %v3136
        %v3138 = vpop.f32.mrb[0].mxu0
        %3139 = vdwg.mxu0
        %3140 = vmatprep.subr.bf16.mxu0 0
        %3141 = vmatpush1.bf16.msra.mxu0 %v3084
        %3142 = vmatprep.subr.bf16.mxu0 0
        %3143 = vmatpush1.bf16.msra.mxu0 %v3085
        %3144 = vmatprep.subr.bf16.mxu0 0
        %3145 = vmatpush1.bf16.msra.mxu0 %v3086
        %3146 = vmatprep.subr.bf16.mxu0 0
        %3147 = vmatpush1.bf16.msra.mxu0 %v3087
        %3148 = vmatprep.subr.bf16.mxu0 0
        %3149 = vmatpush1.bf16.msra.mxu0 %v3088
        %3150 = vmatprep.subr.bf16.mxu0 0
        %3151 = vmatpush1.bf16.msra.mxu0 %v3089
        %3152 = vmatprep.subr.bf16.mxu0 0
        %3153 = vmatpush1.bf16.msra.mxu0 %v3090
        %3154 = vmatprep.subr.bf16.mxu0 0
        %3155 = vmatpush1.bf16.msra.mxu0 %v3091
        %3156 = vmatprep.subr.bf16.mxu0 0
        %3157 = vmatpush1.bf16.msra.mxu0 0
        %3158 = vmatprep.subr.bf16.mxu0 0
        %3159 = vmatpush1.bf16.msra.mxu0 0
        %3160 = vmatprep.subr.bf16.mxu0 0
        %3161 = vmatpush1.bf16.msra.mxu0 0
        %3162 = vmatprep.subr.bf16.mxu0 0
        %3163 = vmatpush1.bf16.msra.mxu0 0
        %3164 = vmatprep.subr.bf16.mxu0 0
        %3165 = vmatpush1.bf16.msra.mxu0 0
        %3166 = vmatprep.subr.bf16.mxu0 0
        %3167 = vmatpush1.bf16.msra.mxu0 0
        %3168 = vmatprep.subr.bf16.mxu0 0
        %3169 = vmatpush1.bf16.msra.mxu0 0
        %3170 = vmatprep.subr.bf16.mxu0 0
        %3171 = vmatpush1.bf16.msra.mxu0 0
        %3172 = vmatprep.mubr.bf16.mxu0 0
        %3173 = vmatmul.mubr.bf16.gmra.mrb[0].mxu0 %v3067
        %v3174 = vpop.f32.mrb[0].mxu0
        %v3175 = vadd.f32 %v3134, %v3174
        %v3176 = vpop.f32.mrb[0].mxu0
        %v3177 = vpop.f32.mrb[0].mxu0
        %v3178 = vadd.f32 %v3137, %v3177
        %v3179 = vpop.f32.mrb[0].mxu0
        %3180 = vdwg.mxu0
        %v3181 = vadd.f32 %v3175, %v2633
        %v3182 = vadd.f32 %v3178, %v2634
        %3183 = vst [vmem:[%s577] sm:$0xff] %v3181
        %3184 = vst [vmem:[%s577 + $0x8] sm:$0xff] %v3182
        %s3185 = sand.u32 %s300, 1
        %s3186 = scalar_lea.sflag [#allocation4], %s3185
        %s3187 = sand.u32 %s300, 1
        %s3188 = smul.addr %s3187, 16
        %s3189 = scalar_lea.vmem [#allocation22], %s3188
        // Predicated region
        $region117: #{transformer_layer_forward.5} parent=67 // pred_check
          %p3190 = pneg %p310
        $region118: #{transformer_layer_forward.5} parent=67 // pred_check_branch
          %3192 = sbr.rel (%p3190) target = $region120
        $region119: #{transformer_layer_forward.5} parent=67 // pred_region
          %s3194 = ssub.s32 256, 256
          %3195 = vsyncadd %s3186, %s3194
          %s3196 = smul.addr %s35, 2
          %s3197 = smul.addr %s3196, 128
          %s3198 = scalar_lea.hbm %s12, %s3197
          %s3199 = sshll.u32 %s3189, 4
          %s3200 = int_to_ptr.vmem [resolvable:$true] %s3199
          %3205 = dma.vmem_to_hbm [thread:$0]  %s3200, 256, %s3198, %s3186, 128, 128, 8
        $region120: #{transformer_layer_forward.5} parent=67 // pred_fallthru
          _
      $region68: #{transformer_layer_forward.5} parent=5 // pred_fallthru
        _
      %p3206 = scmp.le.s32.totalorder 2, %s30
      // Predicated region
      $region121: #{transformer_layer_forward.5} parent=5 // pred_check
        %p3207 = pneg %p3206
      $region122: #{transformer_layer_forward.5} parent=5 // pred_check_branch
        %3209 = sbr.rel (%p3207) target = $region124
      $region123: #{transformer_layer_forward.5} parent=5 // pred_region
        %s3210 = ssub.s32 %s30, 2
        // Predicated region
        $region125: #{transformer_layer_forward.5} parent=123 // pred_check
          %p3211 = pneg %p316
        $region126: #{transformer_layer_forward.5} parent=123 // pred_check_branch
          %3213 = sbr.rel (%p3211) target = $region128
        $region127: #{transformer_layer_forward.5} parent=123 // pred_region
          %s3214 = sand.u32 %s301, 1
          %s3215 = scalar_lea.sflag [#allocation4], %s3214
          %s3216 = sand.u32 %s301, 1
          %s3217 = smul.addr %s3216, 16
          %s3218 = scalar_lea.vmem [#allocation22], %s3217
          %3219 = dma.done %s3215, 256
        $region128: #{transformer_layer_forward.5} parent=123 // pred_fallthru
          _
      $region124: #{transformer_layer_forward.5} parent=5 // pred_fallthru
        _
    $region6: #{transformer_layer_forward.5} parent=1 // loop_footer
      %s34 = sadd.s32 1, %s30
    $region7: #{transformer_layer_forward.5} parent=1 // loop_footer_branch
      %29 = sbr.rel target = $region3
    $region8: #{transformer_layer_forward.5} parent=1 // loop_exit
      _
    %3220 = vsyncpa [#allocation3], 1
    %s3221 = scalar_lea.sflag [#allocation3], 1
    %3222 = vsyncpa %s3221, 1
    %3223 = vsyncpa [#allocation6], 1
    %3224 = vsyncpa [#allocation9], 1
    %3225 = vsyncpa [#allocation12], 1
    %3226 = vsyncpa [#allocation15], 1
    %3227 = vsyncpa [#allocation18], 1
    %3228 = vsyncpa [#allocation21], 1
    %3229 = vsyncpa [#allocation4], 1
    %s3230 = scalar_lea.sflag [#allocation4], 1
    %3231 = vsyncpa %s3230, 1

</llo_original>
